<compile_context>
chip_gen: v6e
topology: v6e:2x2x1
jax: 0.10.0
libtpu: 0.0.40
codegen_flags: <defaults>
</compile_context>

<pallas_src>
import jax
import jax.numpy as jnp
from jax.experimental import pallas as pl
from jax.experimental.pallas import tpu as pltpu


# ---------------------------------------------------------------------------
# Fused forward kernel: one grid step = block_b images
# ---------------------------------------------------------------------------

def _lenet_kernel(x_ref, a1_ref, b1_ref, cp1_ref, rp1_ref,
                  a2_ref, b2_ref, cp2_ref, rp2_ref, g2_ref,
                  r1g_ref, wf1_ref, bf1_ref, wf2_ref, bf2_ref,
                  wf3_ref, bf3_ref, o_ref):
    f32 = jnp.float32
    cd = a1_ref.dtype                     # compute dtype for matmul inputs
    bb = x_ref.shape[0]                   # images per grid step

    x = x_ref[...]                        # (bb, 28, 28) f32

    # ---- conv1 (1->6, k=5): single wide-K Toeplitz matmul over width -------
    # LHS lanes packed kh*28 + w; RHS rows match; cols packed j*6 + c_out.
    lhs1 = jnp.concatenate(
        [x[:, kh:kh + 24, :].reshape(bb * 24, 28) for kh in range(5)],
        axis=1).astype(cd)                                            # (bb*24, 140)
    y1 = jnp.dot(lhs1, a1_ref[...], preferred_element_type=f32)
    y1 = jnp.maximum(y1 + b1_ref[...], 0.0).astype(cd)               # (bb*24, 144)

    # ---- maxpool 2x2 after conv1: exact 0/1 selection matmuls + max --------
    c1 = jnp.maximum(jnp.dot(y1, cp1_ref[0], preferred_element_type=f32),
                     jnp.dot(y1, cp1_ref[1], preferred_element_type=f32)).astype(cd)
    p1 = jnp.maximum(jnp.dot(rp1_ref[0], c1, preferred_element_type=f32),
                     jnp.dot(rp1_ref[1], c1, preferred_element_type=f32)).astype(cd)
    # p1: (bb*12, 72), rows = b*12 + i_pool, lanes = pj*6 + c

    # ---- conv2 (6->16, k=5): per-kh row-gather matmul + wide-K matmul ------
    lhs2 = jnp.concatenate(
        [jnp.dot(g2_ref[kh], p1, preferred_element_type=f32).astype(cd)
         for kh in range(5)], axis=1)                                 # (bb*8, 360)
    y2 = jnp.dot(lhs2, a2_ref[...], preferred_element_type=f32)
    y2 = jnp.maximum(y2 + b2_ref[...], 0.0).astype(cd)               # (bb*8, 128)

    # ---- maxpool 2x2 after conv2 -------------------------------------------
    c2 = jnp.maximum(jnp.dot(y2, cp2_ref[0], preferred_element_type=f32),
                     jnp.dot(y2, cp2_ref[1], preferred_element_type=f32)).astype(cd)
    p2 = jnp.maximum(jnp.dot(rp2_ref[0], c2, preferred_element_type=f32),
                     jnp.dot(rp2_ref[1], c2, preferred_element_type=f32)).astype(cd)
    # p2: (bb*4, 64), rows = b*4 + ri, lanes = rj*16 + c

    # ---- fc1: flatten folded into the weight (sum of four (B,64)@(64,120)) -
    h = jnp.dot(jnp.dot(r1g_ref[0], p2, preferred_element_type=f32).astype(cd),
                wf1_ref[0], preferred_element_type=f32)
    for ri in range(1, 4):
        h = h + jnp.dot(
            jnp.dot(r1g_ref[ri], p2, preferred_element_type=f32).astype(cd),
            wf1_ref[ri], preferred_element_type=f32)
    h = jnp.maximum(h + bf1_ref[...], 0.0).astype(cd)                # (bb, 120)

    # ---- fc2 / fc3 (fc3 zero-padded to 128 output lanes: dense store) ------
    h = jnp.maximum(jnp.dot(h, wf2_ref[...], preferred_element_type=f32)
                    + bf2_ref[...], 0.0).astype(cd)                  # (bb, 84)
    out = jnp.dot(h, wf3_ref[...], preferred_element_type=f32) + bf3_ref[...]
    o_ref[...] = out                                                 # (bb, 128)


# ---------------------------------------------------------------------------
# One-time weight / selector transforms (pure JAX, run once at factory time)
# ---------------------------------------------------------------------------

def _col_pool_selectors(n_out_w, chans):
    """Even/odd column selectors for 2x2 pooling a (w, c)-packed lane axis."""
    g = jnp.arange(n_out_w * chans)
    grp, ch = g // chans, g % chans
    f = jnp.arange(2 * n_out_w * chans)[:, None]
    even = f == (2 * grp * chans + ch)[None, :]
    odd = f == ((2 * grp + 1) * chans + ch)[None, :]
    return jnp.stack([even, odd]).astype(jnp.float32)


def _prepare_operands(params, block_b, compute_dtype):
    (w1, b1, w2, b2, wf1, bf1, wf2, bf2, wf3, bf3) = params
    f32 = jnp.float32
    cd = compute_dtype
    bb = block_b

    # conv1 -> width-Toeplitz, stacked over kh: row = kh*28 + w, col = j*6 + co
    w1t = jnp.transpose(w1[:, 0, :, :], (1, 2, 0)).astype(f32)       # (kh, kw, co)
    kw1 = jnp.arange(28)[:, None] - jnp.arange(24)[None, :]          # (w, j)
    a1 = w1t[:, jnp.clip(kw1, 0, 4), :]                              # (5, 28, 24, 6)
    a1 = jnp.where(((kw1 >= 0) & (kw1 < 5))[None, :, :, None], a1, 0.0)
    a1s = a1.reshape(5 * 28, 24 * 6).astype(cd)                      # (140, 144)
    b1t = jnp.tile(b1.astype(f32), 24).reshape(1, 144)

    # conv2 -> Toeplitz over packed (pj*6+ci) lanes, stacked over kh
    w2t = jnp.transpose(w2, (2, 3, 1, 0)).astype(f32)                # (kh, kw, ci, do)
    kw2 = jnp.arange(12)[:, None] - jnp.arange(8)[None, :]           # (pj, qj)
    a2 = w2t[:, jnp.clip(kw2, 0, 4), :, :]                           # (5, 12, 8, 6, 16)
    a2 = jnp.transpose(a2, (0, 1, 3, 2, 4))                          # (5, 12, 6, 8, 16)
    a2 = jnp.where(((kw2 >= 0) & (kw2 < 5))[None, :, None, :, None], a2, 0.0)
    a2s = a2.reshape(5 * 72, 128).astype(cd)                         # (360, 128)
    b2t = jnp.tile(b2.astype(f32), 8).reshape(1, 128)

    # column (width) pool selectors — exact 0/1 matrices
    cp1 = _col_pool_selectors(12, 6).astype(cd)                      # (2, 144, 72)
    cp2 = _col_pool_selectors(4, 16).astype(cd)                      # (2, 128, 64)

    # row (height) pool selectors, batch-wide: out row q <- in rows 2q / 2q+1
    q1 = jnp.arange(12 * bb)[:, None]
    r1 = jnp.arange(24 * bb)[None, :]
    rp1 = jnp.stack([r1 == 2 * q1, r1 == 2 * q1 + 1]).astype(cd)     # (2, 12B, 24B)
    q2 = jnp.arange(4 * bb)[:, None]
    r2 = jnp.arange(8 * bb)[None, :]
    rp2 = jnp.stack([r2 == 2 * q2, r2 == 2 * q2 + 1]).astype(cd)     # (2, 4B, 8B)

    # conv2 per-kh row gather: lhs row b*8+q picks pooled row b*12 + q + kh
    m = jnp.arange(8 * bb)
    base = (m // 8) * 12 + (m % 8)
    rr = jnp.arange(12 * bb)[None, :]
    g2 = jnp.stack([rr == (base + kh)[:, None] for kh in range(5)]).astype(cd)

    # fc1 per-ri row gather: row b picks pooled row b*4 + ri
    bcol = jnp.arange(bb) * 4
    rr2 = jnp.arange(4 * bb)[None, :]
    r1g = jnp.stack([rr2 == (bcol + ri)[:, None] for ri in range(4)]).astype(cd)

    # fc1 weight regrouped so fc1 = sum_ri slab_ri @ wf1s[ri]
    # (matches PyTorch's NCHW flatten index c*16 + ri*4 + rj exactly)
    ri = jnp.arange(4)[:, None, None]
    rj = jnp.arange(4)[None, :, None]
    do = jnp.arange(16)[None, None, :]
    torch_col = do * 16 + ri * 4 + rj                                # (4, 4, 16)
    wf1s = jnp.transpose(wf1.astype(f32)[:, torch_col], (1, 2, 3, 0))
    wf1s = wf1s.reshape(4, 64, 120).astype(cd)
    bf1r = bf1.astype(f32).reshape(1, 120)

    wf2t = wf2.astype(f32).T.astype(cd)                              # (120, 84)
    bf2r = bf2.astype(f32).reshape(1, 84)

    # fc3 zero-padded to 128 output lanes for a lane-dense output store
    wf3p = jnp.zeros((84, 128), f32).at[:, :10].set(wf3.astype(f32).T).astype(cd)
    bf3p = jnp.zeros((1, 128), f32).at[:, :10].set(bf3.astype(f32).reshape(1, 10))

    return (a1s, b1t, cp1, rp1, a2s, b2t, cp2, rp2, g2, r1g,
            wf1s, bf1r, wf2t, bf2r, wf3p, bf3p)


# ---------------------------------------------------------------------------
# Factory: prepare operands ONCE, return a jitted batched forward
# ---------------------------------------------------------------------------

def _const_spec(shape):
    nd = len(shape)
    return pl.BlockSpec(shape, lambda n, _nd=nd: (0,) * _nd)


def make_forward_fn(params, *, block_b=16, compute_dtype=jnp.bfloat16):
    """Returns forward(x) for x of shape (N, 1, 28, 28) NCHW float32."""
    ops = _prepare_operands(params, block_b, compute_dtype)

    in_specs = [pl.BlockSpec((block_b, 28, 28), lambda n: (n, 0, 0))]
    in_specs += [_const_spec(w.shape) for w in ops]
    out_spec = pl.BlockSpec((block_b, 128), lambda n: (n, 0))

    @jax.jit
    def forward(x):
        n = x.shape[0]
        xi = x.reshape(n, 28, 28).astype(jnp.float32)
        n_pad = ((n + block_b - 1) // block_b) * block_b
        if n_pad != n:
            xi = jnp.pad(xi, ((0, n_pad - n), (0, 0), (0, 0)))
        out = pl.pallas_call(
            _lenet_kernel,
            out_shape=jax.ShapeDtypeStruct((n_pad, 128), jnp.float32),
            grid=(n_pad // block_b,),
            in_specs=in_specs,
            out_specs=out_spec,
            compiler_params=pltpu.CompilerParams(
                dimension_semantics=("parallel",)),
        )(xi, *ops)
        return out[:n, :10]

    return forward


def garment_classifier_forward(x, params, *, block_b=16,
                               compute_dtype=jnp.bfloat16):
    return make_forward_fn(params, block_b=block_b,
                           compute_dtype=compute_dtype)(x)


# ---------------------------------------------------------------------------
# Pure-JAX reference (independent path: lax.conv + reduce_window)
# ---------------------------------------------------------------------------

def reference_forward(x, params):
    (w1, b1, w2, b2, wf1, bf1, wf2, bf2, wf3, bf3) = params
    dn = ("NCHW", "OIHW", "NCHW")

    def pool(t):
        return jax.lax.reduce_window(t, -jnp.inf, jax.lax.max,
                                     (1, 1, 2, 2), (1, 1, 2, 2), "VALID")

    y = jax.lax.conv_general_dilated(x, w1, (1, 1), "VALID",
                                     dimension_numbers=dn)
    y = pool(jax.nn.relu(y + b1[None, :, None, None]))
    y = jax.lax.conv_general_dilated(y, w2, (1, 1), "VALID",
                                     dimension_numbers=dn)
    y = pool(jax.nn.relu(y + b2[None, :, None, None]))
    y = y.reshape(y.shape[0], -1)
    y = jax.nn.relu(y @ wf1.T + bf1)
    y = jax.nn.relu(y @ wf2.T + bf2)
    y = y @ wf3.T + bf3
    return y


# ---------------------------------------------------------------------------
# Deterministic parameter init (shapes from GarmentClassifier.__init__)
# ---------------------------------------------------------------------------

def init_params(key):
    ks = jax.random.split(key, 10)
    f32 = jnp.float32
    w1 = 0.1 * jax.random.normal(ks[0], (6, 1, 5, 5), f32)
    b1 = 0.1 * jax.random.normal(ks[1], (6,), f32)
    w2 = 0.1 * jax.random.normal(ks[2], (16, 6, 5, 5), f32)
    b2 = 0.1 * jax.random.normal(ks[3], (16,), f32)
    wf1 = 0.1 * jax.random.normal(ks[4], (120, 256), f32)
    bf1 = 0.1 * jax.random.normal(ks[5], (120,), f32)
    wf2 = 0.1 * jax.random.normal(ks[6], (84, 120), f32)
    bf2 = 0.1 * jax.random.normal(ks[7], (84,), f32)
    wf3 = 0.1 * jax.random.normal(ks[8], (10, 84), f32)
    bf3 = 0.1 * jax.random.normal(ks[9], (10,), f32)
    return (w1, b1, w2, b2, wf1, bf1, wf2, bf2, wf3, bf3)


if __name__ == "__main__":
    root = jax.random.PRNGKey(0)
    k_x, k_p = jax.random.split(root)
    params = init_params(k_p)

    # --- exactness check: small batch, f32 compute path ---------------------
    x_small = jax.random.normal(k_x, (2, 1, 28, 28), jnp.float32)
    fwd_f32 = make_forward_fn(params, block_b=2, compute_dtype=jnp.float32)
    out_small = jax.block_until_ready(fwd_f32(x_small))
    ref_small = reference_forward(x_small, params)
    assert out_small.shape == (2, 10), out_small.shape
    assert bool(jnp.allclose(out_small, ref_small, rtol=1e-3, atol=1e-3)), (
        "f32 Pallas output mismatch vs reference")

    # --- performance path: 16 images / grid step, bf16 matmul inputs --------
    x_big = jax.random.normal(k_x, (32, 1, 28, 28), jnp.float32)
    fwd_bf16 = make_forward_fn(params, block_b=16, compute_dtype=jnp.bfloat16)
    out_big = jax.block_until_ready(fwd_bf16(x_big))
    ref_big = reference_forward(x_big, params)
    assert out_big.shape == (32, 10), out_big.shape
    assert bool(jnp.allclose(out_big, ref_big, rtol=5e-2, atol=5e-2)), (
        "bf16 Pallas output mismatch vs reference")

    print("KERNEL_OK")
</pallas_src>

<mosaic_0001>
module attributes {stable_mosaic.version = 11 : i64} {
  func.func @_lenet_kernel(%arg0: i32, %arg1: memref<2x28x28xf32, #tpu.memory_space<vmem>>, %arg2: memref<140x144xf32, #tpu.memory_space<vmem>>, %arg3: memref<1x144xf32, #tpu.memory_space<vmem>>, %arg4: memref<2x144x72xf32, #tpu.memory_space<vmem>>, %arg5: memref<2x24x48xf32, #tpu.memory_space<vmem>>, %arg6: memref<360x128xf32, #tpu.memory_space<vmem>>, %arg7: memref<1x128xf32, #tpu.memory_space<vmem>>, %arg8: memref<2x128x64xf32, #tpu.memory_space<vmem>>, %arg9: memref<2x8x16xf32, #tpu.memory_space<vmem>>, %arg10: memref<5x16x24xf32, #tpu.memory_space<vmem>>, %arg11: memref<4x2x8xf32, #tpu.memory_space<vmem>>, %arg12: memref<4x64x120xf32, #tpu.memory_space<vmem>>, %arg13: memref<1x120xf32, #tpu.memory_space<vmem>>, %arg14: memref<120x84xf32, #tpu.memory_space<vmem>>, %arg15: memref<1x84xf32, #tpu.memory_space<vmem>>, %arg16: memref<84x128xf32, #tpu.memory_space<vmem>>, %arg17: memref<1x128xf32, #tpu.memory_space<vmem>>, %arg18: memref<2x128xf32, #tpu.memory_space<vmem>>) attributes {dimension_semantics = [#tpu.dimension_semantics<parallel>], iteration_bounds = array<i64: 1>, scalar_prefetch = 0 : i64, scratch_operands = 0 : i64, tpu.core_type = #tpu.core_type<tc>, window_params = [{transform_indices = @transform_0, window_bounds = array<i64: 2, 28, 28>}, {pipeline_mode = #tpu.pipeline_mode<synchronous>, transform_indices = @transform_1, window_bounds = array<i64: 140, 144>}, {pipeline_mode = #tpu.pipeline_mode<synchronous>, transform_indices = @transform_2, window_bounds = array<i64: 1, 144>}, {pipeline_mode = #tpu.pipeline_mode<synchronous>, transform_indices = @transform_3, window_bounds = array<i64: 2, 144, 72>}, {pipeline_mode = #tpu.pipeline_mode<synchronous>, transform_indices = @transform_4, window_bounds = array<i64: 2, 24, 48>}, {pipeline_mode = #tpu.pipeline_mode<synchronous>, transform_indices = @transform_5, window_bounds = array<i64: 360, 128>}, {pipeline_mode = #tpu.pipeline_mode<synchronous>, transform_indices = @transform_6, window_bounds = array<i64: 1, 128>}, {pipeline_mode = #tpu.pipeline_mode<synchronous>, transform_indices = @transform_7, window_bounds = array<i64: 2, 128, 64>}, {pipeline_mode = #tpu.pipeline_mode<synchronous>, transform_indices = @transform_8, window_bounds = array<i64: 2, 8, 16>}, {pipeline_mode = #tpu.pipeline_mode<synchronous>, transform_indices = @transform_9, window_bounds = array<i64: 5, 16, 24>}, {pipeline_mode = #tpu.pipeline_mode<synchronous>, transform_indices = @transform_10, window_bounds = array<i64: 4, 2, 8>}, {pipeline_mode = #tpu.pipeline_mode<synchronous>, transform_indices = @transform_11, window_bounds = array<i64: 4, 64, 120>}, {pipeline_mode = #tpu.pipeline_mode<synchronous>, transform_indices = @transform_12, window_bounds = array<i64: 1, 120>}, {pipeline_mode = #tpu.pipeline_mode<synchronous>, transform_indices = @transform_13, window_bounds = array<i64: 120, 84>}, {pipeline_mode = #tpu.pipeline_mode<synchronous>, transform_indices = @transform_14, window_bounds = array<i64: 1, 84>}, {pipeline_mode = #tpu.pipeline_mode<synchronous>, transform_indices = @transform_15, window_bounds = array<i64: 84, 128>}, {pipeline_mode = #tpu.pipeline_mode<synchronous>, transform_indices = @transform_16, window_bounds = array<i64: 1, 128>}, {transform_indices = @transform_17, window_bounds = array<i64: 2, 128>}]} {
    %c0 = arith.constant 0 : index
    %c0_0 = arith.constant 0 : index
    %c0_1 = arith.constant 0 : index
    %0 = vector.load %arg1[%c0, %c0_0, %c0_1] : memref<2x28x28xf32, #tpu.memory_space<vmem>>, vector<2x28x28xf32>
    %1 = vector.extract_strided_slice %0 {offsets = [0, 0, 0], sizes = [2, 24, 28], strides = [1, 1, 1]} : vector<2x28x28xf32> to vector<2x24x28xf32>
    %2 = vector.shape_cast %1 : vector<2x24x28xf32> to vector<48x28xf32>
    %3 = vector.extract_strided_slice %0 {offsets = [0, 1, 0], sizes = [2, 24, 28], strides = [1, 1, 1]} : vector<2x28x28xf32> to vector<2x24x28xf32>
    %4 = vector.shape_cast %3 : vector<2x24x28xf32> to vector<48x28xf32>
    %5 = vector.extract_strided_slice %0 {offsets = [0, 2, 0], sizes = [2, 24, 28], strides = [1, 1, 1]} : vector<2x28x28xf32> to vector<2x24x28xf32>
    %6 = vector.shape_cast %5 : vector<2x24x28xf32> to vector<48x28xf32>
    %7 = vector.extract_strided_slice %0 {offsets = [0, 3, 0], sizes = [2, 24, 28], strides = [1, 1, 1]} : vector<2x28x28xf32> to vector<2x24x28xf32>
    %8 = vector.shape_cast %7 : vector<2x24x28xf32> to vector<48x28xf32>
    %9 = vector.extract_strided_slice %0 {offsets = [0, 4, 0], sizes = [2, 24, 28], strides = [1, 1, 1]} : vector<2x28x28xf32> to vector<2x24x28xf32>
    %10 = vector.shape_cast %9 : vector<2x24x28xf32> to vector<48x28xf32>
    %11 = tpu.concatenate %2, %4, %6, %8, %10 in 1 : vector<48x28xf32>, vector<48x28xf32>, vector<48x28xf32>, vector<48x28xf32>, vector<48x28xf32> -> vector<48x140xf32>
    %c0_2 = arith.constant 0 : index
    %c0_3 = arith.constant 0 : index
    %12 = vector.load %arg2[%c0_2, %c0_3] : memref<140x144xf32, #tpu.memory_space<vmem>>, vector<140x144xf32>
    %cst = arith.constant dense<0.000000e+00> : vector<48x144xf32>
    %13 = tpu.matmul %11, %12, %cst {dimension_numbers = #tpu.dot_dimension_numbers<[1], [0], [0], [1], [0, 0, 1, 1], [], []>} : vector<48x140xf32>, vector<140x144xf32>, vector<48x144xf32> -> vector<48x144xf32>
    %c0_4 = arith.constant 0 : index
    %c0_5 = arith.constant 0 : index
    %14 = vector.load %arg3[%c0_4, %c0_5] : memref<1x144xf32, #tpu.memory_space<vmem>>, vector<1x144xf32>
    %15 = vector.broadcast %14 : vector<1x144xf32> to vector<48x144xf32>
    %16 = arith.addf %13, %15 : vector<48x144xf32>
    %cst_6 = arith.constant 0.000000e+00 : f32
    %17 = vector.broadcast %cst_6 : f32 to vector<48x144xf32>
    %18 = arith.maximumf %16, %17 : vector<48x144xf32>
    %c0_7 = arith.constant 0 : index
    %c0_8 = arith.constant 0 : index
    %c0_9 = arith.constant 0 : index
    %19 = vector.load %arg4[%c0_7, %c0_8, %c0_9] : memref<2x144x72xf32, #tpu.memory_space<vmem>>, vector<1x144x72xf32>
    %20 = vector.shape_cast %19 : vector<1x144x72xf32> to vector<144x72xf32>
    %cst_10 = arith.constant dense<0.000000e+00> : vector<48x72xf32>
    %21 = tpu.matmul %18, %20, %cst_10 {dimension_numbers = #tpu.dot_dimension_numbers<[1], [0], [0], [1], [0, 0, 1, 1], [], []>} : vector<48x144xf32>, vector<144x72xf32>, vector<48x72xf32> -> vector<48x72xf32>
    %c1 = arith.constant 1 : index
    %c0_11 = arith.constant 0 : index
    %c0_12 = arith.constant 0 : index
    %22 = vector.load %arg4[%c1, %c0_11, %c0_12] : memref<2x144x72xf32, #tpu.memory_space<vmem>>, vector<1x144x72xf32>
    %23 = vector.shape_cast %22 : vector<1x144x72xf32> to vector<144x72xf32>
    %cst_13 = arith.constant dense<0.000000e+00> : vector<48x72xf32>
    %24 = tpu.matmul %18, %23, %cst_13 {dimension_numbers = #tpu.dot_dimension_numbers<[1], [0], [0], [1], [0, 0, 1, 1], [], []>} : vector<48x144xf32>, vector<144x72xf32>, vector<48x72xf32> -> vector<48x72xf32>
    %25 = arith.maximumf %21, %24 : vector<48x72xf32>
    %c0_14 = arith.constant 0 : index
    %c0_15 = arith.constant 0 : index
    %c0_16 = arith.constant 0 : index
    %26 = vector.load %arg5[%c0_14, %c0_15, %c0_16] : memref<2x24x48xf32, #tpu.memory_space<vmem>>, vector<1x24x48xf32>
    %27 = vector.shape_cast %26 : vector<1x24x48xf32> to vector<24x48xf32>
    %cst_17 = arith.constant dense<0.000000e+00> : vector<24x72xf32>
    %28 = tpu.matmul %27, %25, %cst_17 {dimension_numbers = #tpu.dot_dimension_numbers<[1], [0], [0], [1], [0, 0, 1, 1], [], []>} : vector<24x48xf32>, vector<48x72xf32>, vector<24x72xf32> -> vector<24x72xf32>
    %c1_18 = arith.constant 1 : index
    %c0_19 = arith.constant 0 : index
    %c0_20 = arith.constant 0 : index
    %29 = vector.load %arg5[%c1_18, %c0_19, %c0_20] : memref<2x24x48xf32, #tpu.memory_space<vmem>>, vector<1x24x48xf32>
    %30 = vector.shape_cast %29 : vector<1x24x48xf32> to vector<24x48xf32>
    %cst_21 = arith.constant dense<0.000000e+00> : vector<24x72xf32>
    %31 = tpu.matmul %30, %25, %cst_21 {dimension_numbers = #tpu.dot_dimension_numbers<[1], [0], [0], [1], [0, 0, 1, 1], [], []>} : vector<24x48xf32>, vector<48x72xf32>, vector<24x72xf32> -> vector<24x72xf32>
    %32 = arith.maximumf %28, %31 : vector<24x72xf32>
    %c0_22 = arith.constant 0 : index
    %c0_23 = arith.constant 0 : index
    %c0_24 = arith.constant 0 : index
    %33 = vector.load %arg10[%c0_22, %c0_23, %c0_24] : memref<5x16x24xf32, #tpu.memory_space<vmem>>, vector<1x16x24xf32>
    %34 = vector.shape_cast %33 : vector<1x16x24xf32> to vector<16x24xf32>
    %cst_25 = arith.constant dense<0.000000e+00> : vector<16x72xf32>
    %35 = tpu.matmul %34, %32, %cst_25 {dimension_numbers = #tpu.dot_dimension_numbers<[1], [0], [0], [1], [0, 0, 1, 1], [], []>} : vector<16x24xf32>, vector<24x72xf32>, vector<16x72xf32> -> vector<16x72xf32>
    %c1_26 = arith.constant 1 : index
    %c0_27 = arith.constant 0 : index
    %c0_28 = arith.constant 0 : index
    %36 = vector.load %arg10[%c1_26, %c0_27, %c0_28] : memref<5x16x24xf32, #tpu.memory_space<vmem>>, vector<1x16x24xf32>
    %37 = vector.shape_cast %36 : vector<1x16x24xf32> to vector<16x24xf32>
    %cst_29 = arith.constant dense<0.000000e+00> : vector<16x72xf32>
    %38 = tpu.matmul %37, %32, %cst_29 {dimension_numbers = #tpu.dot_dimension_numbers<[1], [0], [0], [1], [0, 0, 1, 1], [], []>} : vector<16x24xf32>, vector<24x72xf32>, vector<16x72xf32> -> vector<16x72xf32>
    %c2 = arith.constant 2 : index
    %c0_30 = arith.constant 0 : index
    %c0_31 = arith.constant 0 : index
    %39 = vector.load %arg10[%c2, %c0_30, %c0_31] : memref<5x16x24xf32, #tpu.memory_space<vmem>>, vector<1x16x24xf32>
    %40 = vector.shape_cast %39 : vector<1x16x24xf32> to vector<16x24xf32>
    %cst_32 = arith.constant dense<0.000000e+00> : vector<16x72xf32>
    %41 = tpu.matmul %40, %32, %cst_32 {dimension_numbers = #tpu.dot_dimension_numbers<[1], [0], [0], [1], [0, 0, 1, 1], [], []>} : vector<16x24xf32>, vector<24x72xf32>, vector<16x72xf32> -> vector<16x72xf32>
    %c3 = arith.constant 3 : index
    %c0_33 = arith.constant 0 : index
    %c0_34 = arith.constant 0 : index
    %42 = vector.load %arg10[%c3, %c0_33, %c0_34] : memref<5x16x24xf32, #tpu.memory_space<vmem>>, vector<1x16x24xf32>
    %43 = vector.shape_cast %42 : vector<1x16x24xf32> to vector<16x24xf32>
    %cst_35 = arith.constant dense<0.000000e+00> : vector<16x72xf32>
    %44 = tpu.matmul %43, %32, %cst_35 {dimension_numbers = #tpu.dot_dimension_numbers<[1], [0], [0], [1], [0, 0, 1, 1], [], []>} : vector<16x24xf32>, vector<24x72xf32>, vector<16x72xf32> -> vector<16x72xf32>
    %c4 = arith.constant 4 : index
    %c0_36 = arith.constant 0 : index
    %c0_37 = arith.constant 0 : index
    %45 = vector.load %arg10[%c4, %c0_36, %c0_37] : memref<5x16x24xf32, #tpu.memory_space<vmem>>, vector<1x16x24xf32>
    %46 = vector.shape_cast %45 : vector<1x16x24xf32> to vector<16x24xf32>
    %cst_38 = arith.constant dense<0.000000e+00> : vector<16x72xf32>
    %47 = tpu.matmul %46, %32, %cst_38 {dimension_numbers = #tpu.dot_dimension_numbers<[1], [0], [0], [1], [0, 0, 1, 1], [], []>} : vector<16x24xf32>, vector<24x72xf32>, vector<16x72xf32> -> vector<16x72xf32>
    %48 = tpu.concatenate %35, %38, %41, %44, %47 in 1 : vector<16x72xf32>, vector<16x72xf32>, vector<16x72xf32>, vector<16x72xf32>, vector<16x72xf32> -> vector<16x360xf32>
    %c0_39 = arith.constant 0 : index
    %c0_40 = arith.constant 0 : index
    %49 = vector.load %arg6[%c0_39, %c0_40] : memref<360x128xf32, #tpu.memory_space<vmem>>, vector<360x128xf32>
    %cst_41 = arith.constant dense<0.000000e+00> : vector<16x128xf32>
    %50 = tpu.matmul %48, %49, %cst_41 {dimension_numbers = #tpu.dot_dimension_numbers<[1], [0], [0], [1], [0, 0, 1, 1], [], []>} : vector<16x360xf32>, vector<360x128xf32>, vector<16x128xf32> -> vector<16x128xf32>
    %c0_42 = arith.constant 0 : index
    %c0_43 = arith.constant 0 : index
    %51 = vector.load %arg7[%c0_42, %c0_43] : memref<1x128xf32, #tpu.memory_space<vmem>>, vector<1x128xf32>
    %52 = vector.broadcast %51 : vector<1x128xf32> to vector<16x128xf32>
    %53 = arith.addf %50, %52 : vector<16x128xf32>
    %cst_44 = arith.constant 0.000000e+00 : f32
    %54 = vector.broadcast %cst_44 : f32 to vector<16x128xf32>
    %55 = arith.maximumf %53, %54 : vector<16x128xf32>
    %c0_45 = arith.constant 0 : index
    %c0_46 = arith.constant 0 : index
    %c0_47 = arith.constant 0 : index
    %56 = vector.load %arg8[%c0_45, %c0_46, %c0_47] : memref<2x128x64xf32, #tpu.memory_space<vmem>>, vector<1x128x64xf32>
    %57 = vector.shape_cast %56 : vector<1x128x64xf32> to vector<128x64xf32>
    %cst_48 = arith.constant dense<0.000000e+00> : vector<16x64xf32>
    %58 = tpu.matmul %55, %57, %cst_48 {dimension_numbers = #tpu.dot_dimension_numbers<[1], [0], [0], [1], [0, 0, 1, 1], [], []>} : vector<16x128xf32>, vector<128x64xf32>, vector<16x64xf32> -> vector<16x64xf32>
    %c1_49 = arith.constant 1 : index
    %c0_50 = arith.constant 0 : index
    %c0_51 = arith.constant 0 : index
    %59 = vector.load %arg8[%c1_49, %c0_50, %c0_51] : memref<2x128x64xf32, #tpu.memory_space<vmem>>, vector<1x128x64xf32>
    %60 = vector.shape_cast %59 : vector<1x128x64xf32> to vector<128x64xf32>
    %cst_52 = arith.constant dense<0.000000e+00> : vector<16x64xf32>
    %61 = tpu.matmul %55, %60, %cst_52 {dimension_numbers = #tpu.dot_dimension_numbers<[1], [0], [0], [1], [0, 0, 1, 1], [], []>} : vector<16x128xf32>, vector<128x64xf32>, vector<16x64xf32> -> vector<16x64xf32>
    %62 = arith.maximumf %58, %61 : vector<16x64xf32>
    %c0_53 = arith.constant 0 : index
    %c0_54 = arith.constant 0 : index
    %c0_55 = arith.constant 0 : index
    %63 = vector.load %arg9[%c0_53, %c0_54, %c0_55] : memref<2x8x16xf32, #tpu.memory_space<vmem>>, vector<1x8x16xf32>
    %64 = vector.shape_cast %63 : vector<1x8x16xf32> to vector<8x16xf32>
    %cst_56 = arith.constant dense<0.000000e+00> : vector<8x64xf32>
    %65 = tpu.matmul %64, %62, %cst_56 {dimension_numbers = #tpu.dot_dimension_numbers<[1], [0], [0], [1], [0, 0, 1, 1], [], []>} : vector<8x16xf32>, vector<16x64xf32>, vector<8x64xf32> -> vector<8x64xf32>
    %c1_57 = arith.constant 1 : index
    %c0_58 = arith.constant 0 : index
    %c0_59 = arith.constant 0 : index
    %66 = vector.load %arg9[%c1_57, %c0_58, %c0_59] : memref<2x8x16xf32, #tpu.memory_space<vmem>>, vector<1x8x16xf32>
    %67 = vector.shape_cast %66 : vector<1x8x16xf32> to vector<8x16xf32>
    %cst_60 = arith.constant dense<0.000000e+00> : vector<8x64xf32>
    %68 = tpu.matmul %67, %62, %cst_60 {dimension_numbers = #tpu.dot_dimension_numbers<[1], [0], [0], [1], [0, 0, 1, 1], [], []>} : vector<8x16xf32>, vector<16x64xf32>, vector<8x64xf32> -> vector<8x64xf32>
    %69 = arith.maximumf %65, %68 : vector<8x64xf32>
    %c0_61 = arith.constant 0 : index
    %c0_62 = arith.constant 0 : index
    %c0_63 = arith.constant 0 : index
    %70 = vector.load %arg11[%c0_61, %c0_62, %c0_63] : memref<4x2x8xf32, #tpu.memory_space<vmem>>, vector<1x2x8xf32>
    %71 = vector.shape_cast %70 : vector<1x2x8xf32> to vector<2x8xf32>
    %cst_64 = arith.constant dense<0.000000e+00> : vector<2x64xf32>
    %72 = tpu.matmul %71, %69, %cst_64 {dimension_numbers = #tpu.dot_dimension_numbers<[1], [0], [0], [1], [0, 0, 1, 1], [], []>} : vector<2x8xf32>, vector<8x64xf32>, vector<2x64xf32> -> vector<2x64xf32>
    %c0_65 = arith.constant 0 : index
    %c0_66 = arith.constant 0 : index
    %c0_67 = arith.constant 0 : index
    %73 = vector.load %arg12[%c0_65, %c0_66, %c0_67] : memref<4x64x120xf32, #tpu.memory_space<vmem>>, vector<1x64x120xf32>
    %74 = vector.shape_cast %73 : vector<1x64x120xf32> to vector<64x120xf32>
    %cst_68 = arith.constant dense<0.000000e+00> : vector<2x120xf32>
    %75 = tpu.matmul %72, %74, %cst_68 {dimension_numbers = #tpu.dot_dimension_numbers<[1], [0], [0], [1], [0, 0, 1, 1], [], []>} : vector<2x64xf32>, vector<64x120xf32>, vector<2x120xf32> -> vector<2x120xf32>
    %c1_69 = arith.constant 1 : index
    %c0_70 = arith.constant 0 : index
    %c0_71 = arith.constant 0 : index
    %76 = vector.load %arg11[%c1_69, %c0_70, %c0_71] : memref<4x2x8xf32, #tpu.memory_space<vmem>>, vector<1x2x8xf32>
    %77 = vector.shape_cast %76 : vector<1x2x8xf32> to vector<2x8xf32>
    %cst_72 = arith.constant dense<0.000000e+00> : vector<2x64xf32>
    %78 = tpu.matmul %77, %69, %cst_72 {dimension_numbers = #tpu.dot_dimension_numbers<[1], [0], [0], [1], [0, 0, 1, 1], [], []>} : vector<2x8xf32>, vector<8x64xf32>, vector<2x64xf32> -> vector<2x64xf32>
    %c1_73 = arith.constant 1 : index
    %c0_74 = arith.constant 0 : index
    %c0_75 = arith.constant 0 : index
    %79 = vector.load %arg12[%c1_73, %c0_74, %c0_75] : memref<4x64x120xf32, #tpu.memory_space<vmem>>, vector<1x64x120xf32>
    %80 = vector.shape_cast %79 : vector<1x64x120xf32> to vector<64x120xf32>
    %cst_76 = arith.constant dense<0.000000e+00> : vector<2x120xf32>
    %81 = tpu.matmul %78, %80, %cst_76 {dimension_numbers = #tpu.dot_dimension_numbers<[1], [0], [0], [1], [0, 0, 1, 1], [], []>} : vector<2x64xf32>, vector<64x120xf32>, vector<2x120xf32> -> vector<2x120xf32>
    %82 = arith.addf %75, %81 : vector<2x120xf32>
    %c2_77 = arith.constant 2 : index
    %c0_78 = arith.constant 0 : index
    %c0_79 = arith.constant 0 : index
    %83 = vector.load %arg11[%c2_77, %c0_78, %c0_79] : memref<4x2x8xf32, #tpu.memory_space<vmem>>, vector<1x2x8xf32>
    %84 = vector.shape_cast %83 : vector<1x2x8xf32> to vector<2x8xf32>
    %cst_80 = arith.constant dense<0.000000e+00> : vector<2x64xf32>
    %85 = tpu.matmul %84, %69, %cst_80 {dimension_numbers = #tpu.dot_dimension_numbers<[1], [0], [0], [1], [0, 0, 1, 1], [], []>} : vector<2x8xf32>, vector<8x64xf32>, vector<2x64xf32> -> vector<2x64xf32>
    %c2_81 = arith.constant 2 : index
    %c0_82 = arith.constant 0 : index
    %c0_83 = arith.constant 0 : index
    %86 = vector.load %arg12[%c2_81, %c0_82, %c0_83] : memref<4x64x120xf32, #tpu.memory_space<vmem>>, vector<1x64x120xf32>
    %87 = vector.shape_cast %86 : vector<1x64x120xf32> to vector<64x120xf32>
    %cst_84 = arith.constant dense<0.000000e+00> : vector<2x120xf32>
    %88 = tpu.matmul %85, %87, %cst_84 {dimension_numbers = #tpu.dot_dimension_numbers<[1], [0], [0], [1], [0, 0, 1, 1], [], []>} : vector<2x64xf32>, vector<64x120xf32>, vector<2x120xf32> -> vector<2x120xf32>
    %89 = arith.addf %82, %88 : vector<2x120xf32>
    %c3_85 = arith.constant 3 : index
    %c0_86 = arith.constant 0 : index
    %c0_87 = arith.constant 0 : index
    %90 = vector.load %arg11[%c3_85, %c0_86, %c0_87] : memref<4x2x8xf32, #tpu.memory_space<vmem>>, vector<1x2x8xf32>
    %91 = vector.shape_cast %90 : vector<1x2x8xf32> to vector<2x8xf32>
    %cst_88 = arith.constant dense<0.000000e+00> : vector<2x64xf32>
    %92 = tpu.matmul %91, %69, %cst_88 {dimension_numbers = #tpu.dot_dimension_numbers<[1], [0], [0], [1], [0, 0, 1, 1], [], []>} : vector<2x8xf32>, vector<8x64xf32>, vector<2x64xf32> -> vector<2x64xf32>
    %c3_89 = arith.constant 3 : index
    %c0_90 = arith.constant 0 : index
    %c0_91 = arith.constant 0 : index
    %93 = vector.load %arg12[%c3_89, %c0_90, %c0_91] : memref<4x64x120xf32, #tpu.memory_space<vmem>>, vector<1x64x120xf32>
    %94 = vector.shape_cast %93 : vector<1x64x120xf32> to vector<64x120xf32>
    %cst_92 = arith.constant dense<0.000000e+00> : vector<2x120xf32>
    %95 = tpu.matmul %92, %94, %cst_92 {dimension_numbers = #tpu.dot_dimension_numbers<[1], [0], [0], [1], [0, 0, 1, 1], [], []>} : vector<2x64xf32>, vector<64x120xf32>, vector<2x120xf32> -> vector<2x120xf32>
    %96 = arith.addf %89, %95 : vector<2x120xf32>
    %c0_93 = arith.constant 0 : index
    %c0_94 = arith.constant 0 : index
    %97 = vector.load %arg13[%c0_93, %c0_94] : memref<1x120xf32, #tpu.memory_space<vmem>>, vector<1x120xf32>
    %98 = vector.broadcast %97 : vector<1x120xf32> to vector<2x120xf32>
    %99 = arith.addf %96, %98 : vector<2x120xf32>
    %cst_95 = arith.constant 0.000000e+00 : f32
    %100 = vector.broadcast %cst_95 : f32 to vector<2x120xf32>
    %101 = arith.maximumf %99, %100 : vector<2x120xf32>
    %c0_96 = arith.constant 0 : index
    %c0_97 = arith.constant 0 : index
    %102 = vector.load %arg14[%c0_96, %c0_97] : memref<120x84xf32, #tpu.memory_space<vmem>>, vector<120x84xf32>
    %cst_98 = arith.constant dense<0.000000e+00> : vector<2x84xf32>
    %103 = tpu.matmul %101, %102, %cst_98 {dimension_numbers = #tpu.dot_dimension_numbers<[1], [0], [0], [1], [0, 0, 1, 1], [], []>} : vector<2x120xf32>, vector<120x84xf32>, vector<2x84xf32> -> vector<2x84xf32>
    %c0_99 = arith.constant 0 : index
    %c0_100 = arith.constant 0 : index
    %104 = vector.load %arg15[%c0_99, %c0_100] : memref<1x84xf32, #tpu.memory_space<vmem>>, vector<1x84xf32>
    %105 = vector.broadcast %104 : vector<1x84xf32> to vector<2x84xf32>
    %106 = arith.addf %103, %105 : vector<2x84xf32>
    %cst_101 = arith.constant 0.000000e+00 : f32
    %107 = vector.broadcast %cst_101 : f32 to vector<2x84xf32>
    %108 = arith.maximumf %106, %107 : vector<2x84xf32>
    %c0_102 = arith.constant 0 : index
    %c0_103 = arith.constant 0 : index
    %109 = vector.load %arg16[%c0_102, %c0_103] : memref<84x128xf32, #tpu.memory_space<vmem>>, vector<84x128xf32>
    %cst_104 = arith.constant dense<0.000000e+00> : vector<2x128xf32>
    %110 = tpu.matmul %108, %109, %cst_104 {dimension_numbers = #tpu.dot_dimension_numbers<[1], [0], [0], [1], [0, 0, 1, 1], [], []>} : vector<2x84xf32>, vector<84x128xf32>, vector<2x128xf32> -> vector<2x128xf32>
    %c0_105 = arith.constant 0 : index
    %c0_106 = arith.constant 0 : index
    %111 = vector.load %arg17[%c0_105, %c0_106] : memref<1x128xf32, #tpu.memory_space<vmem>>, vector<1x128xf32>
    %112 = vector.broadcast %111 : vector<1x128xf32> to vector<2x128xf32>
    %113 = arith.addf %110, %112 : vector<2x128xf32>
    %c0_107 = arith.constant 0 : index
    %c0_108 = arith.constant 0 : index
    %114 = vector.load %arg18[%c0_107, %c0_108] : memref<2x128xf32, #tpu.memory_space<vmem>>, vector<2x128xf32>
    tpu.vector_store %arg18[%c0_107, %c0_108], %113 {strides = array<i32>} : memref<2x128xf32, #tpu.memory_space<vmem>>, vector<2x128xf32>,
    return
  }
  func.func @transform_0(%arg0: i32) -> (i32, i32, i32) {
    %c0_i32 = arith.constant 0 : i32
    %c0_i32_0 = arith.constant 0 : i32
    %c0_i32_1 = arith.constant 0 : i32
    return %arg0, %c0_i32, %c0_i32_0 : i32, i32, i32
  }
  func.func @transform_1(%arg0: i32) -> (i32, i32) {
    %c0_i32 = arith.constant 0 : i32
    %c0_i32_0 = arith.constant 0 : i32
    %c0_i32_1 = arith.constant 0 : i32
    return %c0_i32, %c0_i32_0 : i32, i32
  }
  func.func @transform_2(%arg0: i32) -> (i32, i32) {
    %c0_i32 = arith.constant 0 : i32
    %c0_i32_0 = arith.constant 0 : i32
    %c0_i32_1 = arith.constant 0 : i32
    return %c0_i32, %c0_i32_0 : i32, i32
  }
  func.func @transform_3(%arg0: i32) -> (i32, i32, i32) {
    %c0_i32 = arith.constant 0 : i32
    %c0_i32_0 = arith.constant 0 : i32
    %c0_i32_1 = arith.constant 0 : i32
    %c0_i32_2 = arith.constant 0 : i32
    return %c0_i32, %c0_i32_0, %c0_i32_1 : i32, i32, i32
  }
  func.func @transform_4(%arg0: i32) -> (i32, i32, i32) {
    %c0_i32 = arith.constant 0 : i32
    %c0_i32_0 = arith.constant 0 : i32
    %c0_i32_1 = arith.constant 0 : i32
    %c0_i32_2 = arith.constant 0 : i32
    return %c0_i32, %c0_i32_0, %c0_i32_1 : i32, i32, i32
  }
  func.func @transform_5(%arg0: i32) -> (i32, i32) {
    %c0_i32 = arith.constant 0 : i32
    %c0_i32_0 = arith.constant 0 : i32
    %c0_i32_1 = arith.constant 0 : i32
    return %c0_i32, %c0_i32_0 : i32, i32
  }
  func.func @transform_6(%arg0: i32) -> (i32, i32) {
    %c0_i32 = arith.constant 0 : i32
    %c0_i32_0 = arith.constant 0 : i32
    %c0_i32_1 = arith.constant 0 : i32
    return %c0_i32, %c0_i32_0 : i32, i32
  }
  func.func @transform_7(%arg0: i32) -> (i32, i32, i32) {
    %c0_i32 = arith.constant 0 : i32
    %c0_i32_0 = arith.constant 0 : i32
    %c0_i32_1 = arith.constant 0 : i32
    %c0_i32_2 = arith.constant 0 : i32
    return %c0_i32, %c0_i32_0, %c0_i32_1 : i32, i32, i32
  }
  func.func @transform_8(%arg0: i32) -> (i32, i32, i32) {
    %c0_i32 = arith.constant 0 : i32
    %c0_i32_0 = arith.constant 0 : i32
    %c0_i32_1 = arith.constant 0 : i32
    %c0_i32_2 = arith.constant 0 : i32
    return %c0_i32, %c0_i32_0, %c0_i32_1 : i32, i32, i32
  }
  func.func @transform_9(%arg0: i32) -> (i32, i32, i32) {
    %c0_i32 = arith.constant 0 : i32
    %c0_i32_0 = arith.constant 0 : i32
    %c0_i32_1 = arith.constant 0 : i32
    %c0_i32_2 = arith.constant 0 : i32
    return %c0_i32, %c0_i32_0, %c0_i32_1 : i32, i32, i32
  }
  func.func @transform_10(%arg0: i32) -> (i32, i32, i32) {
    %c0_i32 = arith.constant 0 : i32
    %c0_i32_0 = arith.constant 0 : i32
    %c0_i32_1 = arith.constant 0 : i32
    %c0_i32_2 = arith.constant 0 : i32
    return %c0_i32, %c0_i32_0, %c0_i32_1 : i32, i32, i32
  }
  func.func @transform_11(%arg0: i32) -> (i32, i32, i32) {
    %c0_i32 = arith.constant 0 : i32
    %c0_i32_0 = arith.constant 0 : i32
    %c0_i32_1 = arith.constant 0 : i32
    %c0_i32_2 = arith.constant 0 : i32
    return %c0_i32, %c0_i32_0, %c0_i32_1 : i32, i32, i32
  }
  func.func @transform_12(%arg0: i32) -> (i32, i32) {
    %c0_i32 = arith.constant 0 : i32
    %c0_i32_0 = arith.constant 0 : i32
    %c0_i32_1 = arith.constant 0 : i32
    return %c0_i32, %c0_i32_0 : i32, i32
  }
  func.func @transform_13(%arg0: i32) -> (i32, i32) {
    %c0_i32 = arith.constant 0 : i32
    %c0_i32_0 = arith.constant 0 : i32
    %c0_i32_1 = arith.constant 0 : i32
    return %c0_i32, %c0_i32_0 : i32, i32
  }
  func.func @transform_14(%arg0: i32) -> (i32, i32) {
    %c0_i32 = arith.constant 0 : i32
    %c0_i32_0 = arith.constant 0 : i32
    %c0_i32_1 = arith.constant 0 : i32
    return %c0_i32, %c0_i32_0 : i32, i32
  }
  func.func @transform_15(%arg0: i32) -> (i32, i32) {
    %c0_i32 = arith.constant 0 : i32
    %c0_i32_0 = arith.constant 0 : i32
    %c0_i32_1 = arith.constant 0 : i32
    return %c0_i32, %c0_i32_0 : i32, i32
  }
  func.func @transform_16(%arg0: i32) -> (i32, i32) {
    %c0_i32 = arith.constant 0 : i32
    %c0_i32_0 = arith.constant 0 : i32
    %c0_i32_1 = arith.constant 0 : i32
    return %c0_i32, %c0_i32_0 : i32, i32
  }
  func.func @transform_17(%arg0: i32) -> (i32, i32) {
    %c0_i32 = arith.constant 0 : i32
    %c0_i32_0 = arith.constant 0 : i32
    return %arg0, %c0_i32 : i32, i32
  }
}

</mosaic_0001>

<llo_original>
// kernel: forward.1
$region0: #{forward.1}
  #allocation0 [shape = 'u32[]', space=smem, size = 0x4, offset = 0x4, fixed_abs, tag = 'smem constant byte address 0x4 - core index']
  #allocation1 [shape = 'u32[144,128]{1,0:T(1,128)}', space=vmem, size = 0x12000, scoped, tag = 'internal scratch']
  %s0 = inlined_call_operand.vmem [shape: f32[2,28,28], index: 0, kind: input, shape index: {}]
  %s1 = inlined_call_operand.hbm [shape: f32[140,144], index: 1, kind: input, shape index: {}]
  %s2 = inlined_call_operand.vmem [shape: f32[1,144], index: 2, kind: input, shape index: {}]
  %s3 = inlined_call_operand.hbm [shape: f32[2,144,72], index: 3, kind: input, shape index: {}]
  %s4 = inlined_call_operand.hbm [shape: f32[2,24,48], index: 4, kind: input, shape index: {}]
  %s5 = inlined_call_operand.hbm [shape: f32[360,128], index: 5, kind: input, shape index: {}]
  %s6 = inlined_call_operand.vmem [shape: f32[1,128], index: 6, kind: input, shape index: {}]
  %s7 = inlined_call_operand.hbm [shape: f32[2,128,64], index: 7, kind: input, shape index: {}]
  %s8 = inlined_call_operand.vmem [shape: f32[2,8,16], index: 8, kind: input, shape index: {}]
  %s9 = inlined_call_operand.hbm [shape: f32[5,16,24], index: 9, kind: input, shape index: {}]
  %s10 = inlined_call_operand.vmem [shape: f32[4,2,8], index: 10, kind: input, shape index: {}]
  %s11 = inlined_call_operand.hbm [shape: f32[4,64,120], index: 11, kind: input, shape index: {}]
  %s12 = inlined_call_operand.vmem [shape: f32[1,120], index: 12, kind: input, shape index: {}]
  %s13 = inlined_call_operand.vmem [shape: f32[120,84], index: 13, kind: input, shape index: {}]
  %s14 = inlined_call_operand.vmem [shape: f32[1,84], index: 14, kind: input, shape index: {}]
  %s15 = inlined_call_operand.vmem [shape: f32[84,128], index: 15, kind: input, shape index: {}]
  %s16 = inlined_call_operand.vmem [shape: f32[1,128], index: 16, kind: input, shape index: {}]
  %s17 = inlined_call_operand.hbm [shape: f32[2,128], index: 17, kind: output, shape index: {}]
  %s18 = sld [smem:[#allocation0]]
  $region106: #{forward.1} parent=0
    _
  %s20 = ssub.s32 1, %s18
  %s21 = scalar_select 0, %s20, %s18
  $region1: #{forward.1} parent=0
    #allocation2 [shape = 'u8[147456]{0}', space=vmem, size = 0x24000, scoped, tag = 'input window, operand 1, single buffered']
    #allocation3 [shape = 's32[1]{0}', space=sflag, size = 0x4, scoped, tag = 'scoped memory for forward.1']
    #allocation4 [shape = 's32[1]{0}', space=sflag, size = 0x4, scoped, tag = 'scoped memory for forward.1']
    #allocation5 [shape = 'u8[147456]{0}', space=vmem, size = 0x24000, scoped, tag = 'input window, operand 3, single buffered']
    #allocation6 [shape = 's32[1]{0}', space=sflag, size = 0x4, scoped, tag = 'scoped memory for forward.1']
    #allocation7 [shape = 'u8[24576]{0}', space=vmem, size = 0x6000, scoped, tag = 'input window, operand 4, single buffered']
    #allocation8 [shape = 'u8[184320]{0}', space=vmem, size = 0x2d000, scoped, tag = 'input window, operand 5, single buffered']
    #allocation9 [shape = 's32[1]{0}', space=sflag, size = 0x4, scoped, tag = 'scoped memory for forward.1']
    #allocation10 [shape = 'u8[131072]{0}', space=vmem, size = 0x20000, scoped, tag = 'input window, operand 7, single buffered']
    #allocation11 [shape = 'u8[40960]{0}', space=vmem, size = 0xa000, scoped, tag = 'input window, operand 9, single buffered']
    #allocation12 [shape = 's32[1]{0}', space=sflag, size = 0x4, scoped, tag = 'scoped memory for forward.1']
    #allocation13 [shape = 'u8[131072]{0}', space=vmem, size = 0x20000, scoped, tag = 'input window, operand 11, single buffered']
    #allocation14 [shape = 'u8[1024]{0}', space=vmem, size = 0x400, scoped, tag = 'output window, operand 0, single buffered']
    %22 = vsyncpa [#allocation3], 0
    %23 = vsyncpa [#allocation6], 0
    %24 = vsyncpa [#allocation9], 0
    %25 = vsyncpa [#allocation12], 0
    %26 = vsyncpa [#allocation4], 0
    // Predicated region
    $region2: #{forward.1} parent=1 // pred_check
      _
    $region3: #{forward.1} parent=1 // pred_check_branch
      %28 = sbr.rel (0) target = $region5
    $region4: #{forward.1} parent=1 // pred_region
      _
    $region5: #{forward.1} parent=1 // pred_fallthru
      _
    // Predicated region
    $region6: #{forward.1} parent=1 // pred_check
      _
    $region7: #{forward.1} parent=1 // pred_check_branch
      %30 = sbr.rel (0) target = $region9
    $region8: #{forward.1} parent=1 // pred_region
      %s32 = ssub.s32 4608, 4608
      %33 = vsyncadd [#allocation3], %s32
      %s34 = sshll.u32 [#allocation2], 4
      %s35 = int_to_ptr.vmem [resolvable:$true] %s34
      %40 = dma.hbm_to_vmem [thread:$0]  %s1, 4608, %s35, [#allocation3], 256, 256, 16
    $region9: #{forward.1} parent=1 // pred_fallthru
      _
    // Predicated region
    $region10: #{forward.1} parent=1 // pred_check
      _
    $region11: #{forward.1} parent=1 // pred_check_branch
      %42 = sbr.rel (0) target = $region13
    $region12: #{forward.1} parent=1 // pred_region
      _
    $region13: #{forward.1} parent=1 // pred_fallthru
      _
    // Predicated region
    $region14: #{forward.1} parent=1 // pred_check
      _
    $region15: #{forward.1} parent=1 // pred_check_branch
      %44 = sbr.rel (0) target = $region17
    $region16: #{forward.1} parent=1 // pred_region
      %s46 = ssub.s32 4608, 4608
      %47 = vsyncadd [#allocation6], %s46
      %s48 = sshll.u32 [#allocation5], 4
      %s49 = int_to_ptr.vmem [resolvable:$true] %s48
      %54 = dma.hbm_to_vmem [thread:$0]  %s3, 4608, %s49, [#allocation6], 128, 128, 8
    $region17: #{forward.1} parent=1 // pred_fallthru
      _
    // Predicated region
    $region18: #{forward.1} parent=1 // pred_check
      _
    $region19: #{forward.1} parent=1 // pred_check_branch
      %56 = sbr.rel (0) target = $region21
    $region20: #{forward.1} parent=1 // pred_region
      %s58 = ssub.s32 768, 768
      %59 = vsyncadd [#allocation6], %s58
      %s60 = sshll.u32 [#allocation7], 4
      %s61 = int_to_ptr.vmem [resolvable:$true] %s60
      %66 = dma.hbm_to_vmem [thread:$0]  %s4, 768, %s61, [#allocation6], 128, 128, 8
    $region21: #{forward.1} parent=1 // pred_fallthru
      _
    // Predicated region
    $region22: #{forward.1} parent=1 // pred_check
      _
    $region23: #{forward.1} parent=1 // pred_check_branch
      %68 = sbr.rel (0) target = $region25
    $region24: #{forward.1} parent=1 // pred_region
      %s70 = ssub.s32 5760, 5760
      %71 = vsyncadd [#allocation9], %s70
      %s72 = sshll.u32 [#allocation8], 4
      %s73 = int_to_ptr.vmem [resolvable:$true] %s72
      %78 = dma.hbm_to_vmem [thread:$0]  %s5, 5760, %s73, [#allocation9], 128, 128, 8
    $region25: #{forward.1} parent=1 // pred_fallthru
      _
    // Predicated region
    $region26: #{forward.1} parent=1 // pred_check
      _
    $region27: #{forward.1} parent=1 // pred_check_branch
      %80 = sbr.rel (0) target = $region29
    $region28: #{forward.1} parent=1 // pred_region
      _
    $region29: #{forward.1} parent=1 // pred_fallthru
      _
    // Predicated region
    $region30: #{forward.1} parent=1 // pred_check
      _
    $region31: #{forward.1} parent=1 // pred_check_branch
      %82 = sbr.rel (0) target = $region33
    $region32: #{forward.1} parent=1 // pred_region
      %s84 = ssub.s32 4096, 4096
      %85 = vsyncadd [#allocation9], %s84
      %s86 = sshll.u32 [#allocation10], 4
      %s87 = int_to_ptr.vmem [resolvable:$true] %s86
      %92 = dma.hbm_to_vmem [thread:$0]  %s7, 4096, %s87, [#allocation9], 128, 128, 8
    $region33: #{forward.1} parent=1 // pred_fallthru
      _
    // Predicated region
    $region34: #{forward.1} parent=1 // pred_check
      _
    $region35: #{forward.1} parent=1 // pred_check_branch
      %94 = sbr.rel (0) target = $region37
    $region36: #{forward.1} parent=1 // pred_region
      _
    $region37: #{forward.1} parent=1 // pred_fallthru
      _
    // Predicated region
    $region38: #{forward.1} parent=1 // pred_check
      _
    $region39: #{forward.1} parent=1 // pred_check_branch
      %96 = sbr.rel (0) target = $region41
    $region40: #{forward.1} parent=1 // pred_region
      %s98 = ssub.s32 1280, 1280
      %99 = vsyncadd [#allocation12], %s98
      %s100 = sshll.u32 [#allocation11], 4
      %s101 = int_to_ptr.vmem [resolvable:$true] %s100
      %106 = dma.hbm_to_vmem [thread:$0]  %s9, 1280, %s101, [#allocation12], 128, 128, 8
    $region41: #{forward.1} parent=1 // pred_fallthru
      _
    // Predicated region
    $region42: #{forward.1} parent=1 // pred_check
      _
    $region43: #{forward.1} parent=1 // pred_check_branch
      %108 = sbr.rel (0) target = $region45
    $region44: #{forward.1} parent=1 // pred_region
      _
    $region45: #{forward.1} parent=1 // pred_fallthru
      _
    // Predicated region
    $region46: #{forward.1} parent=1 // pred_check
      _
    $region47: #{forward.1} parent=1 // pred_check_branch
      %110 = sbr.rel (0) target = $region49
    $region48: #{forward.1} parent=1 // pred_region
      %s112 = ssub.s32 4096, 4096
      %113 = vsyncadd [#allocation12], %s112
      %s114 = sshll.u32 [#allocation13], 4
      %s115 = int_to_ptr.vmem [resolvable:$true] %s114
      %120 = dma.hbm_to_vmem [thread:$0]  %s11, 4096, %s115, [#allocation12], 128, 128, 8
    $region49: #{forward.1} parent=1 // pred_fallthru
      _
    // Predicated region
    $region50: #{forward.1} parent=1 // pred_check
      _
    $region51: #{forward.1} parent=1 // pred_check_branch
      %122 = sbr.rel (0) target = $region53
    $region52: #{forward.1} parent=1 // pred_region
      _
    $region53: #{forward.1} parent=1 // pred_fallthru
      _
    // Predicated region
    $region54: #{forward.1} parent=1 // pred_check
      _
    $region55: #{forward.1} parent=1 // pred_check_branch
      %124 = sbr.rel (0) target = $region57
    $region56: #{forward.1} parent=1 // pred_region
      _
    $region57: #{forward.1} parent=1 // pred_fallthru
      _
    // Predicated region
    $region58: #{forward.1} parent=1 // pred_check
      _
    $region59: #{forward.1} parent=1 // pred_check_branch
      %126 = sbr.rel (0) target = $region61
    $region60: #{forward.1} parent=1 // pred_region
      _
    $region61: #{forward.1} parent=1 // pred_fallthru
      _
    // Predicated region
    $region62: #{forward.1} parent=1 // pred_check
      _
    $region63: #{forward.1} parent=1 // pred_check_branch
      %128 = sbr.rel (0) target = $region65
    $region64: #{forward.1} parent=1 // pred_region
      _
    $region65: #{forward.1} parent=1 // pred_fallthru
      _
    // Predicated region
    $region66: #{forward.1} parent=1 // pred_check
      _
    $region67: #{forward.1} parent=1 // pred_check_branch
      %130 = sbr.rel (0) target = $region69
    $region68: #{forward.1} parent=1 // pred_region
      _
    $region69: #{forward.1} parent=1 // pred_fallthru
      _
    // Predicated region
    $region70: #{forward.1} parent=1 // pred_check
      _
    $region71: #{forward.1} parent=1 // pred_check_branch
      %132 = sbr.rel (0) target = $region73
    $region72: #{forward.1} parent=1 // pred_region
      %133 = dma.done [#allocation3], 4608
    $region73: #{forward.1} parent=1 // pred_fallthru
      _
    // Predicated region
    $region74: #{forward.1} parent=1 // pred_check
      _
    $region75: #{forward.1} parent=1 // pred_check_branch
      %135 = sbr.rel (0) target = $region77
    $region76: #{forward.1} parent=1 // pred_region
      %136 = dma.done [#allocation6], 4608
    $region77: #{forward.1} parent=1 // pred_fallthru
      _
    // Predicated region
    $region78: #{forward.1} parent=1 // pred_check
      _
    $region79: #{forward.1} parent=1 // pred_check_branch
      %138 = sbr.rel (0) target = $region81
    $region80: #{forward.1} parent=1 // pred_region
      %139 = dma.done [#allocation6], 768
    $region81: #{forward.1} parent=1 // pred_fallthru
      _
    // Predicated region
    $region82: #{forward.1} parent=1 // pred_check
      _
    $region83: #{forward.1} parent=1 // pred_check_branch
      %141 = sbr.rel (0) target = $region85
    $region84: #{forward.1} parent=1 // pred_region
      %142 = dma.done [#allocation9], 5760
    $region85: #{forward.1} parent=1 // pred_fallthru
      _
    // Predicated region
    $region86: #{forward.1} parent=1 // pred_check
      _
    $region87: #{forward.1} parent=1 // pred_check_branch
      %144 = sbr.rel (0) target = $region89
    $region88: #{forward.1} parent=1 // pred_region
      %145 = dma.done [#allocation9], 4096
    $region89: #{forward.1} parent=1 // pred_fallthru
      _
    // Predicated region
    $region90: #{forward.1} parent=1 // pred_check
      _
    $region91: #{forward.1} parent=1 // pred_check_branch
      %147 = sbr.rel (0) target = $region93
    $region92: #{forward.1} parent=1 // pred_region
      %148 = dma.done [#allocation12], 1280
    $region93: #{forward.1} parent=1 // pred_fallthru
      _
    // Predicated region
    $region94: #{forward.1} parent=1 // pred_check
      _
    $region95: #{forward.1} parent=1 // pred_check_branch
      %150 = sbr.rel (0) target = $region97
    $region96: #{forward.1} parent=1 // pred_region
      %151 = dma.done [#allocation12], 4096
    $region97: #{forward.1} parent=1 // pred_fallthru
      _
    %v152 = vld [vmem:[%s0] sm:$0xff]
    %v153 = vld [vmem:[%s0 + $0x8] sm:$0xff]
    %v154 = vld [vmem:[%s0 + $0x10] sm:$0xff]
    %v155 = vld [vmem:[%s0 + $0x18] sm:$0xf]
    %v156 = vld [vmem:[%s0 + $0x20] sm:$0xff]
    %v157 = vld [vmem:[%s0 + $0x28] sm:$0xff]
    %v158 = vld [vmem:[%s0 + $0x30] sm:$0xff]
    %v159 = vld [vmem:[%s0 + $0x38] sm:$0xf]
    %vm168 = vcmask 1046528
    %v169 = vrot.slane %v152, 1
    %v170 = vrot.slane %v153, 1
    %v171 = vsel %vm168, %v169, %v170
    %v172 = vrot.slane %v154, 1
    %v173 = vsel %vm168, %v170, %v172
    %v174 = vrot.slane %v155, 1
    %v175 = vsel %vm168, %v172, %v174
    %v176 = vrot.slane %v156, 1
    %v177 = vrot.slane %v157, 1
    %v178 = vsel %vm168, %v176, %v177
    %v179 = vrot.slane %v158, 1
    %v180 = vsel %vm168, %v177, %v179
    %v181 = vrot.slane %v159, 1
    %v182 = vsel %vm168, %v179, %v181
    %vm183 = vcmask 1045504
    %v184 = vrot.slane %v152, 2
    %v185 = vrot.slane %v153, 2
    %v186 = vsel %vm183, %v184, %v185
    %v187 = vrot.slane %v154, 2
    %v188 = vsel %vm183, %v185, %v187
    %v189 = vrot.slane %v155, 2
    %v190 = vsel %vm183, %v187, %v189
    %v191 = vrot.slane %v156, 2
    %v192 = vrot.slane %v157, 2
    %v193 = vsel %vm183, %v191, %v192
    %v194 = vrot.slane %v158, 2
    %v195 = vsel %vm183, %v192, %v194
    %v196 = vrot.slane %v159, 2
    %v197 = vsel %vm183, %v194, %v196
    %vm198 = vcmask 1044480
    %v199 = vrot.slane %v152, 3
    %v200 = vrot.slane %v153, 3
    %v201 = vsel %vm198, %v199, %v200
    %v202 = vrot.slane %v154, 3
    %v203 = vsel %vm198, %v200, %v202
    %v204 = vrot.slane %v155, 3
    %v205 = vsel %vm198, %v202, %v204
    %v206 = vrot.slane %v156, 3
    %v207 = vrot.slane %v157, 3
    %v208 = vsel %vm198, %v206, %v207
    %v209 = vrot.slane %v158, 3
    %v210 = vsel %vm198, %v207, %v209
    %v211 = vrot.slane %v159, 3
    %v212 = vsel %vm198, %v209, %v211
    %vm213 = vcmask 1043456
    %v214 = vrot.slane %v152, 4
    %v215 = vrot.slane %v153, 4
    %v216 = vsel %vm213, %v214, %v215
    %v217 = vrot.slane %v154, 4
    %v218 = vsel %vm213, %v215, %v217
    %v219 = vrot.slane %v155, 4
    %v220 = vsel %vm213, %v217, %v219
    %v221 = vrot.slane %v156, 4
    %v222 = vrot.slane %v157, 4
    %v223 = vsel %vm213, %v221, %v222
    %v224 = vrot.slane %v158, 4
    %v225 = vsel %vm213, %v222, %v224
    %v226 = vrot.slane %v159, 4
    %v227 = vsel %vm213, %v224, %v226
    %228 = vrot.lane.b32.xlu0 %v171, 28
    %v229 = vpop.permute.xlu0 %228
    %230 = vrot.lane.b32.xlu0 %v173, 28
    %v231 = vpop.permute.xlu0 %230
    %232 = vrot.lane.b32.xlu0 %v175, 28
    %v233 = vpop.permute.xlu0 %232
    %234 = vrot.lane.b32.xlu0 %v178, 28
    %v235 = vpop.permute.xlu0 %234
    %236 = vrot.lane.b32.xlu0 %v180, 28
    %v237 = vpop.permute.xlu0 %236
    %238 = vrot.lane.b32.xlu0 %v182, 28
    %v239 = vpop.permute.xlu0 %238
    %246 = vrot.lane.b32.xlu0 %v186, 56
    %v247 = vpop.permute.xlu0 %246
    %248 = vrot.lane.b32.xlu0 %v188, 56
    %v249 = vpop.permute.xlu0 %248
    %250 = vrot.lane.b32.xlu0 %v190, 56
    %v251 = vpop.permute.xlu0 %250
    %252 = vrot.lane.b32.xlu0 %v193, 56
    %v253 = vpop.permute.xlu0 %252
    %254 = vrot.lane.b32.xlu0 %v195, 56
    %v255 = vpop.permute.xlu0 %254
    %256 = vrot.lane.b32.xlu0 %v197, 56
    %v257 = vpop.permute.xlu0 %256
    %264 = vrot.lane.b32.xlu0 %v201, 84
    %v265 = vpop.permute.xlu0 %264
    %266 = vrot.lane.b32.xlu0 %v203, 84
    %v267 = vpop.permute.xlu0 %266
    %268 = vrot.lane.b32.xlu0 %v205, 84
    %v269 = vpop.permute.xlu0 %268
    %270 = vrot.lane.b32.xlu0 %v208, 84
    %v271 = vpop.permute.xlu0 %270
    %272 = vrot.lane.b32.xlu0 %v210, 84
    %v273 = vpop.permute.xlu0 %272
    %274 = vrot.lane.b32.xlu0 %v212, 84
    %v275 = vpop.permute.xlu0 %274
    %282 = vrot.lane.b32.xlu0 %v216, 112
    %v283 = vpop.permute.xlu0 %282
    %284 = vrot.lane.b32.xlu0 %v218, 112
    %v285 = vpop.permute.xlu0 %284
    %286 = vrot.lane.b32.xlu0 %v220, 112
    %v287 = vpop.permute.xlu0 %286
    %288 = vrot.lane.b32.xlu0 %v223, 112
    %v289 = vpop.permute.xlu0 %288
    %290 = vrot.lane.b32.xlu0 %v225, 112
    %v291 = vpop.permute.xlu0 %290
    %292 = vrot.lane.b32.xlu0 %v227, 112
    %v293 = vpop.permute.xlu0 %292
    %vm300 = vcmask 228352
    %v301 = vsel %vm300, %v152, %v229
    %v302 = vsel %vm300, %v153, %v231
    %v303 = vsel %vm300, %v154, %v233
    %v304 = vsel %vm300, %v156, %v235
    %v305 = vsel %vm300, %v157, %v237
    %v306 = vsel %vm300, %v158, %v239
    %vm307 = vcmask 457728
    %v308 = vsel %vm307, %v301, %v247
    %v309 = vsel %vm307, %v302, %v249
    %v310 = vsel %vm307, %v303, %v251
    %v311 = vsel %vm307, %v304, %v253
    %v312 = vsel %vm307, %v305, %v255
    %v313 = vsel %vm307, %v306, %v257
    %vm314 = vcmask 687104
    %v315 = vsel %vm314, %v308, %v265
    %v316 = vsel %vm314, %v309, %v267
    %v317 = vsel %vm314, %v310, %v269
    %v318 = vsel %vm314, %v311, %v271
    %v319 = vsel %vm314, %v312, %v273
    %v320 = vsel %vm314, %v313, %v275
    %vm321 = vcmask 916480
    %v322 = vsel %vm321, %v315, %v283
    %v323 = vsel %vm321, %v316, %v285
    %v324 = vsel %vm321, %v317, %v287
    %v325 = vsel %vm321, %v318, %v289
    %v326 = vsel %vm321, %v319, %v291
    %v327 = vsel %vm321, %v320, %v293
    %v328 = vld [vmem:[#allocation2] sm:$0xff]
    %v329 = vld [vmem:[#allocation2 + $0x8] sm:$0xff]
    %v330 = vld [vmem:[#allocation2 + $0x10] sm:$0xff]
    %v331 = vld [vmem:[#allocation2 + $0x18] sm:$0xff]
    %v332 = vld [vmem:[#allocation2 + $0x20] sm:$0xff]
    %v333 = vld [vmem:[#allocation2 + $0x28] sm:$0xff]
    %v334 = vld [vmem:[#allocation2 + $0x30] sm:$0xff]
    %v335 = vld [vmem:[#allocation2 + $0x38] sm:$0xff]
    %v336 = vld [vmem:[#allocation2 + $0x40] sm:$0xff]
    %v337 = vld [vmem:[#allocation2 + $0x48] sm:$0xff]
    %v338 = vld [vmem:[#allocation2 + $0x50] sm:$0xff]
    %v339 = vld [vmem:[#allocation2 + $0x58] sm:$0xff]
    %v340 = vld [vmem:[#allocation2 + $0x60] sm:$0xff]
    %v341 = vld [vmem:[#allocation2 + $0x68] sm:$0xff]
    %v342 = vld [vmem:[#allocation2 + $0x70] sm:$0xff]
    %v343 = vld [vmem:[#allocation2 + $0x78] sm:$0xff]
    %v344 = vld [vmem:[#allocation2 + $0x80] sm:$0xff]
    %v345 = vld [vmem:[#allocation2 + $0x88] sm:$0xff]
    %v346 = vld [vmem:[#allocation2 + $0x90] sm:$0xff]
    %v347 = vld [vmem:[#allocation2 + $0x98] sm:$0xff]
    %v348 = vld [vmem:[#allocation2 + $0xa0] sm:$0xff]
    %v349 = vld [vmem:[#allocation2 + $0xa8] sm:$0xff]
    %v350 = vld [vmem:[#allocation2 + $0xb0] sm:$0xff]
    %v351 = vld [vmem:[#allocation2 + $0xb8] sm:$0xff]
    %v352 = vld [vmem:[#allocation2 + $0xc0] sm:$0xff]
    %v353 = vld [vmem:[#allocation2 + $0xc8] sm:$0xff]
    %v354 = vld [vmem:[#allocation2 + $0xd0] sm:$0xff]
    %v355 = vld [vmem:[#allocation2 + $0xd8] sm:$0xff]
    %v356 = vld [vmem:[#allocation2 + $0xe0] sm:$0xff]
    %v357 = vld [vmem:[#allocation2 + $0xe8] sm:$0xff]
    %v358 = vld [vmem:[#allocation2 + $0xf0] sm:$0xff]
    %v359 = vld [vmem:[#allocation2 + $0xf8] sm:$0xff]
    %v360 = vld [vmem:[#allocation2 + $0x100] sm:$0xff]
    %v361 = vld [vmem:[#allocation2 + $0x108] sm:$0xff]
    %v362 = vld [vmem:[#allocation2 + $0x110] sm:$0xf]
    %v363 = vld [vmem:[#allocation2 + $0x118] sm:$0xf]
    %v364 = vld [vmem:[%s2] sm:$0x3]
    %v366 = vlaneseq
    %v367 = vshrl.u32 %v366, 7
    %v368 = vsub.s32 0, %v367
    %v369 = vrot.slane %v364, %v368
    %v370 = vlaneseq
    %v371 = vshrl.u32 %v370, 7
    %v372 = vsub.s32 1, %v371
    %v373 = vrot.slane %v364, %v372
    %vm376 = vcmask 97280
    %v377 = vsel %vm376, %v283, 0
    %v379 = vsel %vm376, %v285, 0
    %v381 = vsel %vm376, %v287, 0
    %v383 = vsel %vm376, %v289, 0
    %v385 = vsel %vm376, %v291, 0
    %v387 = vsel %vm376, %v293, 0
    %v390 = vsel %vm213, %v362, 0
    %v393 = vsel %vm213, %v363, 0
    %395 = vmatprep.subr.mxu0 %v359
    %396 = vmatpush1.msra.mxu0 %v358
    %397 = vmatprep.subr.mxu0 %v357
    %398 = vmatpush1.msra.mxu0 %v356
    %399 = vmatprep.subr.mxu0 %v355
    %400 = vmatpush1.msra.mxu0 %v354
    %401 = vmatprep.subr.mxu0 %v353
    %402 = vmatpush1.msra.mxu0 %v352
    %403 = vmatprep.subr.mxu0 %v351
    %404 = vmatpush1.msra.mxu0 %v350
    %405 = vmatprep.subr.mxu0 %v349
    %406 = vmatpush1.msra.mxu0 %v348
    %407 = vmatprep.subr.mxu0 %v347
    %408 = vmatpush1.msra.mxu0 %v346
    %409 = vmatprep.subr.mxu0 %v345
    %410 = vmatpush1.msra.mxu0 %v344
    %411 = vmatprep.subr.mxu0 %v343
    %412 = vmatpush1.msra.mxu0 %v342
    %413 = vmatprep.subr.mxu0 %v341
    %414 = vmatpush1.msra.mxu0 %v340
    %415 = vmatprep.subr.mxu0 %v339
    %416 = vmatpush1.msra.mxu0 %v338
    %417 = vmatprep.subr.mxu0 %v337
    %418 = vmatpush1.msra.mxu0 %v336
    %419 = vmatprep.subr.mxu0 %v335
    %420 = vmatpush1.msra.mxu0 %v334
    %421 = vmatprep.subr.mxu0 %v333
    %422 = vmatpush1.msra.mxu0 %v332
    %423 = vmatprep.subr.mxu0 %v331
    %424 = vmatpush1.msra.mxu0 %v330
    %425 = vmatprep.subr.mxu0 %v329
    %426 = vmatpush1.msra.mxu0 %v328
    %427 = vmatprep.subr.mxu0 0.0
    %428 = vmatpush2.msra.mxu0 0.0
    %429 = vmatprep.subr.mxu0 0.0
    %430 = vmatpush2.msra.mxu0 0.0
    %431 = vmatprep.subr.mxu0 0.0
    %432 = vmatpush2.msra.mxu0 0.0
    %433 = vmatprep.subr.mxu0 0.0
    %434 = vmatpush2.msra.mxu0 0.0
    %435 = vmatprep.subr.mxu0 0.0
    %436 = vmatpush2.msra.mxu0 0.0
    %437 = vmatprep.subr.mxu0 0.0
    %438 = vmatpush2.msra.mxu0 0.0
    %439 = vmatprep.subr.mxu0 0.0
    %440 = vmatpush2.msra.mxu0 0.0
    %441 = vmatprep.subr.mxu0 0.0
    %442 = vmatpush2.msra.mxu0 0.0
    %443 = vmatprep.subr.mxu0 0.0
    %444 = vmatpush2.msra.mxu0 0.0
    %445 = vmatprep.subr.mxu0 0.0
    %446 = vmatpush2.msra.mxu0 0.0
    %447 = vmatprep.subr.mxu0 0.0
    %448 = vmatpush2.msra.mxu0 0.0
    %449 = vmatprep.subr.mxu0 0.0
    %450 = vmatpush2.msra.mxu0 0.0
    %451 = vmatprep.subr.mxu0 0.0
    %452 = vmatpush2.msra.mxu0 0.0
    %453 = vmatprep.subr.mxu0 0.0
    %454 = vmatpush2.msra.mxu0 0.0
    %455 = vmatprep.subr.mxu0 %v393
    %456 = vmatpush2.msra.mxu0 %v390
    %457 = vmatprep.subr.mxu0 %v361
    %458 = vmatpush2.msra.mxu0 %v360
    %459 = vmatprep.mubr.f32.mxu0 %v377
    %460 = vmatmul.mubr.f32.gmra.mxu0 %v322
    %v461 = vpop.f32.mrf.mxu0
    %v462 = vadd.f32 %v369, %v461
    %v463 = vpop.f32.mrf.mxu0
    %v464 = vadd.f32 %v373, %v463
    %465 = vmatprep.mubr.f32.mxu0 %v379
    %466 = vmatmul.mubr.f32.gmra.mxu0 %v323
    %v467 = vpop.f32.mrf.mxu0
    %v468 = vadd.f32 %v369, %v467
    %v469 = vpop.f32.mrf.mxu0
    %v470 = vadd.f32 %v373, %v469
    %471 = vmatprep.mubr.f32.mxu0 %v381
    %472 = vmatmul.mubr.f32.gmra.mxu0 %v324
    %v473 = vpop.f32.mrf.mxu0
    %v474 = vadd.f32 %v369, %v473
    %v475 = vpop.f32.mrf.mxu0
    %v476 = vadd.f32 %v373, %v475
    %477 = vmatprep.mubr.f32.mxu0 %v383
    %478 = vmatmul.mubr.f32.gmra.mxu0 %v325
    %v479 = vpop.f32.mrf.mxu0
    %v480 = vadd.f32 %v369, %v479
    %v481 = vpop.f32.mrf.mxu0
    %v482 = vadd.f32 %v373, %v481
    %483 = vmatprep.mubr.f32.mxu0 %v385
    %484 = vmatmul.mubr.f32.gmra.mxu0 %v326
    %v485 = vpop.f32.mrf.mxu0
    %v486 = vadd.f32 %v369, %v485
    %v487 = vpop.f32.mrf.mxu0
    %v488 = vadd.f32 %v373, %v487
    %489 = vmatprep.mubr.f32.mxu0 %v387
    %490 = vmatmul.mubr.f32.gmra.mxu0 %v327
    %v491 = vpop.f32.mrf.mxu0
    %v492 = vadd.f32 %v369, %v491
    %v493 = vpop.f32.mrf.mxu0
    %v494 = vadd.f32 %v373, %v493
    %495 = vdwg.mxu0
    %v496 = vmax.f32 %v462, 0.0
    %v497 = vmax.f32 %v464, 0.0
    %v498 = vmax.f32 %v468, 0.0
    %v499 = vmax.f32 %v470, 0.0
    %v500 = vmax.f32 %v474, 0.0
    %v501 = vmax.f32 %v476, 0.0
    %v502 = vmax.f32 %v480, 0.0
    %v503 = vmax.f32 %v482, 0.0
    %v504 = vmax.f32 %v486, 0.0
    %v505 = vmax.f32 %v488, 0.0
    %v506 = vmax.f32 %v492, 0.0
    %v507 = vmax.f32 %v494, 0.0
    %v508 = vld [vmem:[#allocation5] sm:$0xff]
    %v509 = vld [vmem:[#allocation5 + $0x8] sm:$0xff]
    %v510 = vld [vmem:[#allocation5 + $0x10] sm:$0xff]
    %v511 = vld [vmem:[#allocation5 + $0x18] sm:$0xff]
    %v512 = vld [vmem:[#allocation5 + $0x20] sm:$0xff]
    %v513 = vld [vmem:[#allocation5 + $0x28] sm:$0xff]
    %v514 = vld [vmem:[#allocation5 + $0x30] sm:$0xff]
    %v515 = vld [vmem:[#allocation5 + $0x38] sm:$0xff]
    %v516 = vld [vmem:[#allocation5 + $0x40] sm:$0xff]
    %v517 = vld [vmem:[#allocation5 + $0x48] sm:$0xff]
    %v518 = vld [vmem:[#allocation5 + $0x50] sm:$0xff]
    %v519 = vld [vmem:[#allocation5 + $0x58] sm:$0xff]
    %v520 = vld [vmem:[#allocation5 + $0x60] sm:$0xff]
    %v521 = vld [vmem:[#allocation5 + $0x68] sm:$0xff]
    %v522 = vld [vmem:[#allocation5 + $0x70] sm:$0xff]
    %v523 = vld [vmem:[#allocation5 + $0x78] sm:$0xff]
    %v524 = vld [vmem:[#allocation5 + $0x80] sm:$0xff]
    %v525 = vld [vmem:[#allocation5 + $0x88] sm:$0xff]
    %vm526 = vcmask 130048
    %v528 = vsel %vm526, %v497, 0
    %v531 = vsel %vm526, %v499, 0
    %v534 = vsel %vm526, %v501, 0
    %v537 = vsel %vm526, %v503, 0
    %v540 = vsel %vm526, %v505, 0
    %v543 = vsel %vm526, %v507, 0
    %545 = vmatprep.subr.mxu0 0.0
    %546 = vmatpush1.msra.mxu0 %v523
    %547 = vmatprep.subr.mxu0 0.0
    %548 = vmatpush1.msra.mxu0 %v522
    %549 = vmatprep.subr.mxu0 0.0
    %550 = vmatpush1.msra.mxu0 %v521
    %551 = vmatprep.subr.mxu0 0.0
    %552 = vmatpush1.msra.mxu0 %v520
    %553 = vmatprep.subr.mxu0 0.0
    %554 = vmatpush1.msra.mxu0 %v519
    %555 = vmatprep.subr.mxu0 0.0
    %556 = vmatpush1.msra.mxu0 %v518
    %557 = vmatprep.subr.mxu0 0.0
    %558 = vmatpush1.msra.mxu0 %v517
    %559 = vmatprep.subr.mxu0 0.0
    %560 = vmatpush1.msra.mxu0 %v516
    %561 = vmatprep.subr.mxu0 0.0
    %562 = vmatpush1.msra.mxu0 %v515
    %563 = vmatprep.subr.mxu0 0.0
    %564 = vmatpush1.msra.mxu0 %v514
    %565 = vmatprep.subr.mxu0 0.0
    %566 = vmatpush1.msra.mxu0 %v513
    %567 = vmatprep.subr.mxu0 0.0
    %568 = vmatpush1.msra.mxu0 %v512
    %569 = vmatprep.subr.mxu0 0.0
    %570 = vmatpush1.msra.mxu0 %v511
    %571 = vmatprep.subr.mxu0 0.0
    %572 = vmatpush1.msra.mxu0 %v510
    %573 = vmatprep.subr.mxu0 0.0
    %574 = vmatpush1.msra.mxu0 %v509
    %575 = vmatprep.subr.mxu0 0.0
    %576 = vmatpush1.msra.mxu0 %v508
    %577 = vmatprep.subr.mxu0 0.0
    %578 = vmatpush2.msra.mxu0 0.0
    %579 = vmatprep.subr.mxu0 0.0
    %580 = vmatpush2.msra.mxu0 0.0
    %581 = vmatprep.subr.mxu0 0.0
    %582 = vmatpush2.msra.mxu0 0.0
    %583 = vmatprep.subr.mxu0 0.0
    %584 = vmatpush2.msra.mxu0 0.0
    %585 = vmatprep.subr.mxu0 0.0
    %586 = vmatpush2.msra.mxu0 0.0
    %587 = vmatprep.subr.mxu0 0.0
    %588 = vmatpush2.msra.mxu0 0.0
    %589 = vmatprep.subr.mxu0 0.0
    %590 = vmatpush2.msra.mxu0 0.0
    %591 = vmatprep.subr.mxu0 0.0
    %592 = vmatpush2.msra.mxu0 0.0
    %593 = vmatprep.subr.mxu0 0.0
    %594 = vmatpush2.msra.mxu0 0.0
    %595 = vmatprep.subr.mxu0 0.0
    %596 = vmatpush2.msra.mxu0 0.0
    %597 = vmatprep.subr.mxu0 0.0
    %598 = vmatpush2.msra.mxu0 0.0
    %599 = vmatprep.subr.mxu0 0.0
    %600 = vmatpush2.msra.mxu0 0.0
    %601 = vmatprep.subr.mxu0 0.0
    %602 = vmatpush2.msra.mxu0 0.0
    %603 = vmatprep.subr.mxu0 0.0
    %604 = vmatpush2.msra.mxu0 0.0
    %605 = vmatprep.subr.mxu0 0.0
    %606 = vmatpush2.msra.mxu0 %v525
    %607 = vmatprep.subr.mxu0 0.0
    %608 = vmatpush2.msra.mxu0 %v524
    %609 = vmatprep.mubr.f32.mxu0 %v528
    %610 = vmatmul.mubr.f32.gmra.mxu0 %v496
    %v611 = vpop.f32.mrf.mxu0
    %v612 = vadd.f32 0.0, %v611
    %v613 = vpop.f32.mrf.mxu0
    %614 = vmatprep.mubr.f32.mxu0 %v531
    %615 = vmatmul.mubr.f32.gmra.mxu0 %v498
    %v616 = vpop.f32.mrf.mxu0
    %v617 = vadd.f32 0.0, %v616
    %v618 = vpop.f32.mrf.mxu0
    %619 = vmatprep.mubr.f32.mxu0 %v534
    %620 = vmatmul.mubr.f32.gmra.mxu0 %v500
    %v621 = vpop.f32.mrf.mxu0
    %v622 = vadd.f32 0.0, %v621
    %v623 = vpop.f32.mrf.mxu0
    %624 = vmatprep.mubr.f32.mxu0 %v537
    %625 = vmatmul.mubr.f32.gmra.mxu0 %v502
    %v626 = vpop.f32.mrf.mxu0
    %v627 = vadd.f32 0.0, %v626
    %v628 = vpop.f32.mrf.mxu0
    %629 = vmatprep.mubr.f32.mxu0 %v540
    %630 = vmatmul.mubr.f32.gmra.mxu0 %v504
    %v631 = vpop.f32.mrf.mxu0
    %v632 = vadd.f32 0.0, %v631
    %v633 = vpop.f32.mrf.mxu0
    %634 = vmatprep.mubr.f32.mxu0 %v543
    %635 = vmatmul.mubr.f32.gmra.mxu0 %v506
    %v636 = vpop.f32.mrf.mxu0
    %v637 = vadd.f32 0.0, %v636
    %v638 = vpop.f32.mrf.mxu0
    %639 = vdwg.mxu0
    %s640 = scalar_lea.vmem [#allocation5], 144
    %v641 = vld [vmem:[%s640] sm:$0xff]
    %v642 = vld [vmem:[%s640 + $0x8] sm:$0xff]
    %v643 = vld [vmem:[%s640 + $0x10] sm:$0xff]
    %v644 = vld [vmem:[%s640 + $0x18] sm:$0xff]
    %v645 = vld [vmem:[%s640 + $0x20] sm:$0xff]
    %v646 = vld [vmem:[%s640 + $0x28] sm:$0xff]
    %v647 = vld [vmem:[%s640 + $0x30] sm:$0xff]
    %v648 = vld [vmem:[%s640 + $0x38] sm:$0xff]
    %v649 = vld [vmem:[%s640 + $0x40] sm:$0xff]
    %v650 = vld [vmem:[%s640 + $0x48] sm:$0xff]
    %v651 = vld [vmem:[%s640 + $0x50] sm:$0xff]
    %v652 = vld [vmem:[%s640 + $0x58] sm:$0xff]
    %v653 = vld [vmem:[%s640 + $0x60] sm:$0xff]
    %v654 = vld [vmem:[%s640 + $0x68] sm:$0xff]
    %v655 = vld [vmem:[%s640 + $0x70] sm:$0xff]
    %v656 = vld [vmem:[%s640 + $0x78] sm:$0xff]
    %v657 = vld [vmem:[%s640 + $0x80] sm:$0xff]
    %v658 = vld [vmem:[%s640 + $0x88] sm:$0xff]
    %659 = vmatprep.subr.mxu0 0.0
    %660 = vmatpush1.msra.mxu0 %v656
    %661 = vmatprep.subr.mxu0 0.0
    %662 = vmatpush1.msra.mxu0 %v655
    %663 = vmatprep.subr.mxu0 0.0
    %664 = vmatpush1.msra.mxu0 %v654
    %665 = vmatprep.subr.mxu0 0.0
    %666 = vmatpush1.msra.mxu0 %v653
    %667 = vmatprep.subr.mxu0 0.0
    %668 = vmatpush1.msra.mxu0 %v652
    %669 = vmatprep.subr.mxu0 0.0
    %670 = vmatpush1.msra.mxu0 %v651
    %671 = vmatprep.subr.mxu0 0.0
    %672 = vmatpush1.msra.mxu0 %v650
    %673 = vmatprep.subr.mxu0 0.0
    %674 = vmatpush1.msra.mxu0 %v649
    %675 = vmatprep.subr.mxu0 0.0
    %676 = vmatpush1.msra.mxu0 %v648
    %677 = vmatprep.subr.mxu0 0.0
    %678 = vmatpush1.msra.mxu0 %v647
    %679 = vmatprep.subr.mxu0 0.0
    %680 = vmatpush1.msra.mxu0 %v646
    %681 = vmatprep.subr.mxu0 0.0
    %682 = vmatpush1.msra.mxu0 %v645
    %683 = vmatprep.subr.mxu0 0.0
    %684 = vmatpush1.msra.mxu0 %v644
    %685 = vmatprep.subr.mxu0 0.0
    %686 = vmatpush1.msra.mxu0 %v643
    %687 = vmatprep.subr.mxu0 0.0
    %688 = vmatpush1.msra.mxu0 %v642
    %689 = vmatprep.subr.mxu0 0.0
    %690 = vmatpush1.msra.mxu0 %v641
    %691 = vmatprep.subr.mxu0 0.0
    %692 = vmatpush2.msra.mxu0 0.0
    %693 = vmatprep.subr.mxu0 0.0
    %694 = vmatpush2.msra.mxu0 0.0
    %695 = vmatprep.subr.mxu0 0.0
    %696 = vmatpush2.msra.mxu0 0.0
    %697 = vmatprep.subr.mxu0 0.0
    %698 = vmatpush2.msra.mxu0 0.0
    %699 = vmatprep.subr.mxu0 0.0
    %700 = vmatpush2.msra.mxu0 0.0
    %701 = vmatprep.subr.mxu0 0.0
    %702 = vmatpush2.msra.mxu0 0.0
    %703 = vmatprep.subr.mxu0 0.0
    %704 = vmatpush2.msra.mxu0 0.0
    %705 = vmatprep.subr.mxu0 0.0
    %706 = vmatpush2.msra.mxu0 0.0
    %707 = vmatprep.subr.mxu0 0.0
    %708 = vmatpush2.msra.mxu0 0.0
    %709 = vmatprep.subr.mxu0 0.0
    %710 = vmatpush2.msra.mxu0 0.0
    %711 = vmatprep.subr.mxu0 0.0
    %712 = vmatpush2.msra.mxu0 0.0
    %713 = vmatprep.subr.mxu0 0.0
    %714 = vmatpush2.msra.mxu0 0.0
    %715 = vmatprep.subr.mxu0 0.0
    %716 = vmatpush2.msra.mxu0 0.0
    %717 = vmatprep.subr.mxu0 0.0
    %718 = vmatpush2.msra.mxu0 0.0
    %719 = vmatprep.subr.mxu0 0.0
    %720 = vmatpush2.msra.mxu0 %v658
    %721 = vmatprep.subr.mxu0 0.0
    %722 = vmatpush2.msra.mxu0 %v657
    %723 = vmatprep.mubr.f32.mxu0 %v528
    %724 = vmatmul.mubr.f32.gmra.mxu0 %v496
    %v725 = vpop.f32.mrf.mxu0
    %v726 = vadd.f32 0.0, %v725
    %v727 = vpop.f32.mrf.mxu0
    %728 = vmatprep.mubr.f32.mxu0 %v531
    %729 = vmatmul.mubr.f32.gmra.mxu0 %v498
    %v730 = vpop.f32.mrf.mxu0
    %v731 = vadd.f32 0.0, %v730
    %v732 = vpop.f32.mrf.mxu0
    %733 = vmatprep.mubr.f32.mxu0 %v534
    %734 = vmatmul.mubr.f32.gmra.mxu0 %v500
    %v735 = vpop.f32.mrf.mxu0
    %v736 = vadd.f32 0.0, %v735
    %v737 = vpop.f32.mrf.mxu0
    %738 = vmatprep.mubr.f32.mxu0 %v537
    %739 = vmatmul.mubr.f32.gmra.mxu0 %v502
    %v740 = vpop.f32.mrf.mxu0
    %v741 = vadd.f32 0.0, %v740
    %v742 = vpop.f32.mrf.mxu0
    %743 = vmatprep.mubr.f32.mxu0 %v540
    %744 = vmatmul.mubr.f32.gmra.mxu0 %v504
    %v745 = vpop.f32.mrf.mxu0
    %v746 = vadd.f32 0.0, %v745
    %v747 = vpop.f32.mrf.mxu0
    %748 = vmatprep.mubr.f32.mxu0 %v543
    %749 = vmatmul.mubr.f32.gmra.mxu0 %v506
    %v750 = vpop.f32.mrf.mxu0
    %v751 = vadd.f32 0.0, %v750
    %v752 = vpop.f32.mrf.mxu0
    %753 = vdwg.mxu0
    %v754 = vmax.f32 %v612, %v726
    %v755 = vmax.f32 %v617, %v731
    %v756 = vmax.f32 %v622, %v736
    %v757 = vmax.f32 %v627, %v741
    %v758 = vmax.f32 %v632, %v746
    %v759 = vmax.f32 %v637, %v751
    %v760 = vld [vmem:[#allocation7] sm:$0xff]
    %v761 = vld [vmem:[#allocation7 + $0x8] sm:$0xff]
    %v762 = vld [vmem:[#allocation7 + $0x10] sm:$0xff]
    %vm763 = vcmask 392192
    %v765 = vsel %vm763, %v760, 0
    %v768 = vsel %vm763, %v761, 0
    %v771 = vsel %vm763, %v762, 0
    %773 = vmatprep.subr.mxu0 0.0
    %774 = vmatpush1.msra.mxu0 0.0
    %775 = vmatprep.subr.mxu0 0.0
    %776 = vmatpush1.msra.mxu0 0.0
    %777 = vmatprep.subr.mxu0 0.0
    %778 = vmatpush1.msra.mxu0 0.0
    %779 = vmatprep.subr.mxu0 0.0
    %780 = vmatpush1.msra.mxu0 0.0
    %781 = vmatprep.subr.mxu0 0.0
    %782 = vmatpush1.msra.mxu0 0.0
    %783 = vmatprep.subr.mxu0 0.0
    %784 = vmatpush1.msra.mxu0 0.0
    %785 = vmatprep.subr.mxu0 0.0
    %786 = vmatpush1.msra.mxu0 0.0
    %787 = vmatprep.subr.mxu0 0.0
    %788 = vmatpush1.msra.mxu0 0.0
    %789 = vmatprep.subr.mxu0 0.0
    %790 = vmatpush1.msra.mxu0 0.0
    %791 = vmatprep.subr.mxu0 0.0
    %792 = vmatpush1.msra.mxu0 0.0
    %793 = vmatprep.subr.mxu0 0.0
    %794 = vmatpush1.msra.mxu0 %v759
    %795 = vmatprep.subr.mxu0 0.0
    %796 = vmatpush1.msra.mxu0 %v758
    %797 = vmatprep.subr.mxu0 0.0
    %798 = vmatpush1.msra.mxu0 %v757
    %799 = vmatprep.subr.mxu0 0.0
    %800 = vmatpush1.msra.mxu0 %v756
    %801 = vmatprep.subr.mxu0 0.0
    %802 = vmatpush1.msra.mxu0 %v755
    %803 = vmatprep.subr.mxu0 0.0
    %804 = vmatpush1.msra.mxu0 %v754
    %805 = vmatprep.subr.mxu0 0.0
    %806 = vmatpush2.msra.mxu0 0.0
    %807 = vmatprep.subr.mxu0 0.0
    %808 = vmatpush2.msra.mxu0 0.0
    %809 = vmatprep.subr.mxu0 0.0
    %810 = vmatpush2.msra.mxu0 0.0
    %811 = vmatprep.subr.mxu0 0.0
    %812 = vmatpush2.msra.mxu0 0.0
    %813 = vmatprep.subr.mxu0 0.0
    %814 = vmatpush2.msra.mxu0 0.0
    %815 = vmatprep.subr.mxu0 0.0
    %816 = vmatpush2.msra.mxu0 0.0
    %817 = vmatprep.subr.mxu0 0.0
    %818 = vmatpush2.msra.mxu0 0.0
    %819 = vmatprep.subr.mxu0 0.0
    %820 = vmatpush2.msra.mxu0 0.0
    %821 = vmatprep.subr.mxu0 0.0
    %822 = vmatpush2.msra.mxu0 0.0
    %823 = vmatprep.subr.mxu0 0.0
    %824 = vmatpush2.msra.mxu0 0.0
    %825 = vmatprep.subr.mxu0 0.0
    %826 = vmatpush2.msra.mxu0 0.0
    %827 = vmatprep.subr.mxu0 0.0
    %828 = vmatpush2.msra.mxu0 0.0
    %829 = vmatprep.subr.mxu0 0.0
    %830 = vmatpush2.msra.mxu0 0.0
    %831 = vmatprep.subr.mxu0 0.0
    %832 = vmatpush2.msra.mxu0 0.0
    %833 = vmatprep.subr.mxu0 0.0
    %834 = vmatpush2.msra.mxu0 0.0
    %835 = vmatprep.subr.mxu0 0.0
    %836 = vmatpush2.msra.mxu0 0.0
    %837 = vmatprep.mubr.f32.mxu0 0.0
    %838 = vmatmul.mubr.f32.gmra.mxu0 %v765
    %v839 = vpop.f32.mrf.mxu0
    %v840 = vadd.f32 0.0, %v839
    %v841 = vpop.f32.mrf.mxu0
    %842 = vmatprep.mubr.f32.mxu0 0.0
    %843 = vmatmul.mubr.f32.gmra.mxu0 %v768
    %v844 = vpop.f32.mrf.mxu0
    %v845 = vadd.f32 0.0, %v844
    %v846 = vpop.f32.mrf.mxu0
    %847 = vmatprep.mubr.f32.mxu0 0.0
    %848 = vmatmul.mubr.f32.gmra.mxu0 %v771
    %v849 = vpop.f32.mrf.mxu0
    %v850 = vadd.f32 0.0, %v849
    %v851 = vpop.f32.mrf.mxu0
    %852 = vdwg.mxu0
    %s853 = scalar_lea.vmem [#allocation7], 24
    %v854 = vld [vmem:[%s853] sm:$0xff]
    %v855 = vld [vmem:[%s853 + $0x8] sm:$0xff]
    %v856 = vld [vmem:[%s853 + $0x10] sm:$0xff]
    %v858 = vsel %vm763, %v854, 0
    %v861 = vsel %vm763, %v855, 0
    %v864 = vsel %vm763, %v856, 0
    %866 = vmatprep.subr.mxu0 0.0
    %867 = vmatpush1.msra.mxu0 0.0
    %868 = vmatprep.subr.mxu0 0.0
    %869 = vmatpush1.msra.mxu0 0.0
    %870 = vmatprep.subr.mxu0 0.0
    %871 = vmatpush1.msra.mxu0 0.0
    %872 = vmatprep.subr.mxu0 0.0
    %873 = vmatpush1.msra.mxu0 0.0
    %874 = vmatprep.subr.mxu0 0.0
    %875 = vmatpush1.msra.mxu0 0.0
    %876 = vmatprep.subr.mxu0 0.0
    %877 = vmatpush1.msra.mxu0 0.0
    %878 = vmatprep.subr.mxu0 0.0
    %879 = vmatpush1.msra.mxu0 0.0
    %880 = vmatprep.subr.mxu0 0.0
    %881 = vmatpush1.msra.mxu0 0.0
    %882 = vmatprep.subr.mxu0 0.0
    %883 = vmatpush1.msra.mxu0 0.0
    %884 = vmatprep.subr.mxu0 0.0
    %885 = vmatpush1.msra.mxu0 0.0
    %886 = vmatprep.subr.mxu0 0.0
    %887 = vmatpush1.msra.mxu0 %v759
    %888 = vmatprep.subr.mxu0 0.0
    %889 = vmatpush1.msra.mxu0 %v758
    %890 = vmatprep.subr.mxu0 0.0
    %891 = vmatpush1.msra.mxu0 %v757
    %892 = vmatprep.subr.mxu0 0.0
    %893 = vmatpush1.msra.mxu0 %v756
    %894 = vmatprep.subr.mxu0 0.0
    %895 = vmatpush1.msra.mxu0 %v755
    %896 = vmatprep.subr.mxu0 0.0
    %897 = vmatpush1.msra.mxu0 %v754
    %898 = vmatprep.subr.mxu0 0.0
    %899 = vmatpush2.msra.mxu0 0.0
    %900 = vmatprep.subr.mxu0 0.0
    %901 = vmatpush2.msra.mxu0 0.0
    %902 = vmatprep.subr.mxu0 0.0
    %903 = vmatpush2.msra.mxu0 0.0
    %904 = vmatprep.subr.mxu0 0.0
    %905 = vmatpush2.msra.mxu0 0.0
    %906 = vmatprep.subr.mxu0 0.0
    %907 = vmatpush2.msra.mxu0 0.0
    %908 = vmatprep.subr.mxu0 0.0
    %909 = vmatpush2.msra.mxu0 0.0
    %910 = vmatprep.subr.mxu0 0.0
    %911 = vmatpush2.msra.mxu0 0.0
    %912 = vmatprep.subr.mxu0 0.0
    %913 = vmatpush2.msra.mxu0 0.0
    %914 = vmatprep.subr.mxu0 0.0
    %915 = vmatpush2.msra.mxu0 0.0
    %916 = vmatprep.subr.mxu0 0.0
    %917 = vmatpush2.msra.mxu0 0.0
    %918 = vmatprep.subr.mxu0 0.0
    %919 = vmatpush2.msra.mxu0 0.0
    %920 = vmatprep.subr.mxu0 0.0
    %921 = vmatpush2.msra.mxu0 0.0
    %922 = vmatprep.subr.mxu0 0.0
    %923 = vmatpush2.msra.mxu0 0.0
    %924 = vmatprep.subr.mxu0 0.0
    %925 = vmatpush2.msra.mxu0 0.0
    %926 = vmatprep.subr.mxu0 0.0
    %927 = vmatpush2.msra.mxu0 0.0
    %928 = vmatprep.subr.mxu0 0.0
    %929 = vmatpush2.msra.mxu0 0.0
    %930 = vmatprep.mubr.f32.mxu0 0.0
    %931 = vmatmul.mubr.f32.gmra.mxu0 %v858
    %v932 = vpop.f32.mrf.mxu0
    %v933 = vadd.f32 0.0, %v932
    %v934 = vpop.f32.mrf.mxu0
    %935 = vmatprep.mubr.f32.mxu0 0.0
    %936 = vmatmul.mubr.f32.gmra.mxu0 %v861
    %v937 = vpop.f32.mrf.mxu0
    %v938 = vadd.f32 0.0, %v937
    %v939 = vpop.f32.mrf.mxu0
    %940 = vmatprep.mubr.f32.mxu0 0.0
    %941 = vmatmul.mubr.f32.gmra.mxu0 %v864
    %v942 = vpop.f32.mrf.mxu0
    %v943 = vadd.f32 0.0, %v942
    %v944 = vpop.f32.mrf.mxu0
    %945 = vdwg.mxu0
    %v946 = vmax.f32 %v840, %v933
    %v947 = vmax.f32 %v845, %v938
    %v948 = vmax.f32 %v850, %v943
    %v949 = vld [vmem:[#allocation11] sm:$0xff]
    %v950 = vld [vmem:[#allocation11 + $0x8] sm:$0xff]
    %vm951 = vcmask 195584
    %v953 = vsel %vm951, %v949, 0
    %v956 = vsel %vm951, %v950, 0
    %958 = vmatprep.subr.mxu0 0.0
    %959 = vmatpush1.msra.mxu0 0.0
    %960 = vmatprep.subr.mxu0 0.0
    %961 = vmatpush1.msra.mxu0 0.0
    %962 = vmatprep.subr.mxu0 0.0
    %963 = vmatpush1.msra.mxu0 0.0
    %964 = vmatprep.subr.mxu0 0.0
    %965 = vmatpush1.msra.mxu0 0.0
    %966 = vmatprep.subr.mxu0 0.0
    %967 = vmatpush1.msra.mxu0 0.0
    %968 = vmatprep.subr.mxu0 0.0
    %969 = vmatpush1.msra.mxu0 0.0
    %970 = vmatprep.subr.mxu0 0.0
    %971 = vmatpush1.msra.mxu0 0.0
    %972 = vmatprep.subr.mxu0 0.0
    %973 = vmatpush1.msra.mxu0 0.0
    %974 = vmatprep.subr.mxu0 0.0
    %975 = vmatpush1.msra.mxu0 0.0
    %976 = vmatprep.subr.mxu0 0.0
    %977 = vmatpush1.msra.mxu0 0.0
    %978 = vmatprep.subr.mxu0 0.0
    %979 = vmatpush1.msra.mxu0 0.0
    %980 = vmatprep.subr.mxu0 0.0
    %981 = vmatpush1.msra.mxu0 0.0
    %982 = vmatprep.subr.mxu0 0.0
    %983 = vmatpush1.msra.mxu0 0.0
    %984 = vmatprep.subr.mxu0 0.0
    %985 = vmatpush1.msra.mxu0 %v948
    %986 = vmatprep.subr.mxu0 0.0
    %987 = vmatpush1.msra.mxu0 %v947
    %988 = vmatprep.subr.mxu0 0.0
    %989 = vmatpush1.msra.mxu0 %v946
    %990 = vmatprep.subr.mxu0 0.0
    %991 = vmatpush2.msra.mxu0 0.0
    %992 = vmatprep.subr.mxu0 0.0
    %993 = vmatpush2.msra.mxu0 0.0
    %994 = vmatprep.subr.mxu0 0.0
    %995 = vmatpush2.msra.mxu0 0.0
    %996 = vmatprep.subr.mxu0 0.0
    %997 = vmatpush2.msra.mxu0 0.0
    %998 = vmatprep.subr.mxu0 0.0
    %999 = vmatpush2.msra.mxu0 0.0
    %1000 = vmatprep.subr.mxu0 0.0
    %1001 = vmatpush2.msra.mxu0 0.0
    %1002 = vmatprep.subr.mxu0 0.0
    %1003 = vmatpush2.msra.mxu0 0.0
    %1004 = vmatprep.subr.mxu0 0.0
    %1005 = vmatpush2.msra.mxu0 0.0
    %1006 = vmatprep.subr.mxu0 0.0
    %1007 = vmatpush2.msra.mxu0 0.0
    %1008 = vmatprep.subr.mxu0 0.0
    %1009 = vmatpush2.msra.mxu0 0.0
    %1010 = vmatprep.subr.mxu0 0.0
    %1011 = vmatpush2.msra.mxu0 0.0
    %1012 = vmatprep.subr.mxu0 0.0
    %1013 = vmatpush2.msra.mxu0 0.0
    %1014 = vmatprep.subr.mxu0 0.0
    %1015 = vmatpush2.msra.mxu0 0.0
    %1016 = vmatprep.subr.mxu0 0.0
    %1017 = vmatpush2.msra.mxu0 0.0
    %1018 = vmatprep.subr.mxu0 0.0
    %1019 = vmatpush2.msra.mxu0 0.0
    %1020 = vmatprep.subr.mxu0 0.0
    %1021 = vmatpush2.msra.mxu0 0.0
    %1022 = vmatprep.mubr.f32.mxu0 0.0
    %1023 = vmatmul.mubr.f32.gmra.mxu0 %v953
    %v1024 = vpop.f32.mrf.mxu0
    %v1025 = vadd.f32 0.0, %v1024
    %v1026 = vpop.f32.mrf.mxu0
    %1027 = vmatprep.mubr.f32.mxu0 0.0
    %1028 = vmatmul.mubr.f32.gmra.mxu0 %v956
    %v1029 = vpop.f32.mrf.mxu0
    %v1030 = vadd.f32 0.0, %v1029
    %v1031 = vpop.f32.mrf.mxu0
    %1032 = vdwg.mxu0
    %s1033 = scalar_lea.vmem [#allocation11], 16
    %v1034 = vld [vmem:[%s1033] sm:$0xff]
    %v1035 = vld [vmem:[%s1033 + $0x8] sm:$0xff]
    %v1037 = vsel %vm951, %v1034, 0
    %v1040 = vsel %vm951, %v1035, 0
    %1042 = vmatprep.subr.mxu0 0.0
    %1043 = vmatpush1.msra.mxu0 0.0
    %1044 = vmatprep.subr.mxu0 0.0
    %1045 = vmatpush1.msra.mxu0 0.0
    %1046 = vmatprep.subr.mxu0 0.0
    %1047 = vmatpush1.msra.mxu0 0.0
    %1048 = vmatprep.subr.mxu0 0.0
    %1049 = vmatpush1.msra.mxu0 0.0
    %1050 = vmatprep.subr.mxu0 0.0
    %1051 = vmatpush1.msra.mxu0 0.0
    %1052 = vmatprep.subr.mxu0 0.0
    %1053 = vmatpush1.msra.mxu0 0.0
    %1054 = vmatprep.subr.mxu0 0.0
    %1055 = vmatpush1.msra.mxu0 0.0
    %1056 = vmatprep.subr.mxu0 0.0
    %1057 = vmatpush1.msra.mxu0 0.0
    %1058 = vmatprep.subr.mxu0 0.0
    %1059 = vmatpush1.msra.mxu0 0.0
    %1060 = vmatprep.subr.mxu0 0.0
    %1061 = vmatpush1.msra.mxu0 0.0
    %1062 = vmatprep.subr.mxu0 0.0
    %1063 = vmatpush1.msra.mxu0 0.0
    %1064 = vmatprep.subr.mxu0 0.0
    %1065 = vmatpush1.msra.mxu0 0.0
    %1066 = vmatprep.subr.mxu0 0.0
    %1067 = vmatpush1.msra.mxu0 0.0
    %1068 = vmatprep.subr.mxu0 0.0
    %1069 = vmatpush1.msra.mxu0 %v948
    %1070 = vmatprep.subr.mxu0 0.0
    %1071 = vmatpush1.msra.mxu0 %v947
    %1072 = vmatprep.subr.mxu0 0.0
    %1073 = vmatpush1.msra.mxu0 %v946
    %1074 = vmatprep.subr.mxu0 0.0
    %1075 = vmatpush2.msra.mxu0 0.0
    %1076 = vmatprep.subr.mxu0 0.0
    %1077 = vmatpush2.msra.mxu0 0.0
    %1078 = vmatprep.subr.mxu0 0.0
    %1079 = vmatpush2.msra.mxu0 0.0
    %1080 = vmatprep.subr.mxu0 0.0
    %1081 = vmatpush2.msra.mxu0 0.0
    %1082 = vmatprep.subr.mxu0 0.0
    %1083 = vmatpush2.msra.mxu0 0.0
    %1084 = vmatprep.subr.mxu0 0.0
    %1085 = vmatpush2.msra.mxu0 0.0
    %1086 = vmatprep.subr.mxu0 0.0
    %1087 = vmatpush2.msra.mxu0 0.0
    %1088 = vmatprep.subr.mxu0 0.0
    %1089 = vmatpush2.msra.mxu0 0.0
    %1090 = vmatprep.subr.mxu0 0.0
    %1091 = vmatpush2.msra.mxu0 0.0
    %1092 = vmatprep.subr.mxu0 0.0
    %1093 = vmatpush2.msra.mxu0 0.0
    %1094 = vmatprep.subr.mxu0 0.0
    %1095 = vmatpush2.msra.mxu0 0.0
    %1096 = vmatprep.subr.mxu0 0.0
    %1097 = vmatpush2.msra.mxu0 0.0
    %1098 = vmatprep.subr.mxu0 0.0
    %1099 = vmatpush2.msra.mxu0 0.0
    %1100 = vmatprep.subr.mxu0 0.0
    %1101 = vmatpush2.msra.mxu0 0.0
    %1102 = vmatprep.subr.mxu0 0.0
    %1103 = vmatpush2.msra.mxu0 0.0
    %1104 = vmatprep.subr.mxu0 0.0
    %1105 = vmatpush2.msra.mxu0 0.0
    %1106 = vmatprep.mubr.f32.mxu0 0.0
    %1107 = vmatmul.mubr.f32.gmra.mxu0 %v1037
    %v1108 = vpop.f32.mrf.mxu0
    %v1109 = vadd.f32 0.0, %v1108
    %v1110 = vpop.f32.mrf.mxu0
    %1111 = vmatprep.mubr.f32.mxu0 0.0
    %1112 = vmatmul.mubr.f32.gmra.mxu0 %v1040
    %v1113 = vpop.f32.mrf.mxu0
    %v1114 = vadd.f32 0.0, %v1113
    %v1115 = vpop.f32.mrf.mxu0
    %1116 = vdwg.mxu0
    %s1117 = scalar_lea.vmem [#allocation11], 32
    %v1118 = vld [vmem:[%s1117] sm:$0xff]
    %v1119 = vld [vmem:[%s1117 + $0x8] sm:$0xff]
    %v1121 = vsel %vm951, %v1118, 0
    %v1124 = vsel %vm951, %v1119, 0
    %1126 = vmatprep.subr.mxu0 0.0
    %1127 = vmatpush1.msra.mxu0 0.0
    %1128 = vmatprep.subr.mxu0 0.0
    %1129 = vmatpush1.msra.mxu0 0.0
    %1130 = vmatprep.subr.mxu0 0.0
    %1131 = vmatpush1.msra.mxu0 0.0
    %1132 = vmatprep.subr.mxu0 0.0
    %1133 = vmatpush1.msra.mxu0 0.0
    %1134 = vmatprep.subr.mxu0 0.0
    %1135 = vmatpush1.msra.mxu0 0.0
    %1136 = vmatprep.subr.mxu0 0.0
    %1137 = vmatpush1.msra.mxu0 0.0
    %1138 = vmatprep.subr.mxu0 0.0
    %1139 = vmatpush1.msra.mxu0 0.0
    %1140 = vmatprep.subr.mxu0 0.0
    %1141 = vmatpush1.msra.mxu0 0.0
    %1142 = vmatprep.subr.mxu0 0.0
    %1143 = vmatpush1.msra.mxu0 0.0
    %1144 = vmatprep.subr.mxu0 0.0
    %1145 = vmatpush1.msra.mxu0 0.0
    %1146 = vmatprep.subr.mxu0 0.0
    %1147 = vmatpush1.msra.mxu0 0.0
    %1148 = vmatprep.subr.mxu0 0.0
    %1149 = vmatpush1.msra.mxu0 0.0
    %1150 = vmatprep.subr.mxu0 0.0
    %1151 = vmatpush1.msra.mxu0 0.0
    %1152 = vmatprep.subr.mxu0 0.0
    %1153 = vmatpush1.msra.mxu0 %v948
    %1154 = vmatprep.subr.mxu0 0.0
    %1155 = vmatpush1.msra.mxu0 %v947
    %1156 = vmatprep.subr.mxu0 0.0
    %1157 = vmatpush1.msra.mxu0 %v946
    %1158 = vmatprep.subr.mxu0 0.0
    %1159 = vmatpush2.msra.mxu0 0.0
    %1160 = vmatprep.subr.mxu0 0.0
    %1161 = vmatpush2.msra.mxu0 0.0
    %1162 = vmatprep.subr.mxu0 0.0
    %1163 = vmatpush2.msra.mxu0 0.0
    %1164 = vmatprep.subr.mxu0 0.0
    %1165 = vmatpush2.msra.mxu0 0.0
    %1166 = vmatprep.subr.mxu0 0.0
    %1167 = vmatpush2.msra.mxu0 0.0
    %1168 = vmatprep.subr.mxu0 0.0
    %1169 = vmatpush2.msra.mxu0 0.0
    %1170 = vmatprep.subr.mxu0 0.0
    %1171 = vmatpush2.msra.mxu0 0.0
    %1172 = vmatprep.subr.mxu0 0.0
    %1173 = vmatpush2.msra.mxu0 0.0
    %1174 = vmatprep.subr.mxu0 0.0
    %1175 = vmatpush2.msra.mxu0 0.0
    %1176 = vmatprep.subr.mxu0 0.0
    %1177 = vmatpush2.msra.mxu0 0.0
    %1178 = vmatprep.subr.mxu0 0.0
    %1179 = vmatpush2.msra.mxu0 0.0
    %1180 = vmatprep.subr.mxu0 0.0
    %1181 = vmatpush2.msra.mxu0 0.0
    %1182 = vmatprep.subr.mxu0 0.0
    %1183 = vmatpush2.msra.mxu0 0.0
    %1184 = vmatprep.subr.mxu0 0.0
    %1185 = vmatpush2.msra.mxu0 0.0
    %1186 = vmatprep.subr.mxu0 0.0
    %1187 = vmatpush2.msra.mxu0 0.0
    %1188 = vmatprep.subr.mxu0 0.0
    %1189 = vmatpush2.msra.mxu0 0.0
    %1190 = vmatprep.mubr.f32.mxu0 0.0
    %1191 = vmatmul.mubr.f32.gmra.mxu0 %v1121
    %v1192 = vpop.f32.mrf.mxu0
    %v1193 = vadd.f32 0.0, %v1192
    %v1194 = vpop.f32.mrf.mxu0
    %1195 = vmatprep.mubr.f32.mxu0 0.0
    %1196 = vmatmul.mubr.f32.gmra.mxu0 %v1124
    %v1197 = vpop.f32.mrf.mxu0
    %v1198 = vadd.f32 0.0, %v1197
    %v1199 = vpop.f32.mrf.mxu0
    %1200 = vdwg.mxu0
    %s1201 = scalar_lea.vmem [#allocation11], 48
    %v1202 = vld [vmem:[%s1201] sm:$0xff]
    %v1203 = vld [vmem:[%s1201 + $0x8] sm:$0xff]
    %v1205 = vsel %vm951, %v1202, 0
    %v1208 = vsel %vm951, %v1203, 0
    %1210 = vmatprep.subr.mxu0 0.0
    %1211 = vmatpush1.msra.mxu0 0.0
    %1212 = vmatprep.subr.mxu0 0.0
    %1213 = vmatpush1.msra.mxu0 0.0
    %1214 = vmatprep.subr.mxu0 0.0
    %1215 = vmatpush1.msra.mxu0 0.0
    %1216 = vmatprep.subr.mxu0 0.0
    %1217 = vmatpush1.msra.mxu0 0.0
    %1218 = vmatprep.subr.mxu0 0.0
    %1219 = vmatpush1.msra.mxu0 0.0
    %1220 = vmatprep.subr.mxu0 0.0
    %1221 = vmatpush1.msra.mxu0 0.0
    %1222 = vmatprep.subr.mxu0 0.0
    %1223 = vmatpush1.msra.mxu0 0.0
    %1224 = vmatprep.subr.mxu0 0.0
    %1225 = vmatpush1.msra.mxu0 0.0
    %1226 = vmatprep.subr.mxu0 0.0
    %1227 = vmatpush1.msra.mxu0 0.0
    %1228 = vmatprep.subr.mxu0 0.0
    %1229 = vmatpush1.msra.mxu0 0.0
    %1230 = vmatprep.subr.mxu0 0.0
    %1231 = vmatpush1.msra.mxu0 0.0
    %1232 = vmatprep.subr.mxu0 0.0
    %1233 = vmatpush1.msra.mxu0 0.0
    %1234 = vmatprep.subr.mxu0 0.0
    %1235 = vmatpush1.msra.mxu0 0.0
    %1236 = vmatprep.subr.mxu0 0.0
    %1237 = vmatpush1.msra.mxu0 %v948
    %1238 = vmatprep.subr.mxu0 0.0
    %1239 = vmatpush1.msra.mxu0 %v947
    %1240 = vmatprep.subr.mxu0 0.0
    %1241 = vmatpush1.msra.mxu0 %v946
    %1242 = vmatprep.subr.mxu0 0.0
    %1243 = vmatpush2.msra.mxu0 0.0
    %1244 = vmatprep.subr.mxu0 0.0
    %1245 = vmatpush2.msra.mxu0 0.0
    %1246 = vmatprep.subr.mxu0 0.0
    %1247 = vmatpush2.msra.mxu0 0.0
    %1248 = vmatprep.subr.mxu0 0.0
    %1249 = vmatpush2.msra.mxu0 0.0
    %1250 = vmatprep.subr.mxu0 0.0
    %1251 = vmatpush2.msra.mxu0 0.0
    %1252 = vmatprep.subr.mxu0 0.0
    %1253 = vmatpush2.msra.mxu0 0.0
    %1254 = vmatprep.subr.mxu0 0.0
    %1255 = vmatpush2.msra.mxu0 0.0
    %1256 = vmatprep.subr.mxu0 0.0
    %1257 = vmatpush2.msra.mxu0 0.0
    %1258 = vmatprep.subr.mxu0 0.0
    %1259 = vmatpush2.msra.mxu0 0.0
    %1260 = vmatprep.subr.mxu0 0.0
    %1261 = vmatpush2.msra.mxu0 0.0
    %1262 = vmatprep.subr.mxu0 0.0
    %1263 = vmatpush2.msra.mxu0 0.0
    %1264 = vmatprep.subr.mxu0 0.0
    %1265 = vmatpush2.msra.mxu0 0.0
    %1266 = vmatprep.subr.mxu0 0.0
    %1267 = vmatpush2.msra.mxu0 0.0
    %1268 = vmatprep.subr.mxu0 0.0
    %1269 = vmatpush2.msra.mxu0 0.0
    %1270 = vmatprep.subr.mxu0 0.0
    %1271 = vmatpush2.msra.mxu0 0.0
    %1272 = vmatprep.subr.mxu0 0.0
    %1273 = vmatpush2.msra.mxu0 0.0
    %1274 = vmatprep.mubr.f32.mxu0 0.0
    %1275 = vmatmul.mubr.f32.gmra.mxu0 %v1205
    %v1276 = vpop.f32.mrf.mxu0
    %v1277 = vadd.f32 0.0, %v1276
    %v1278 = vpop.f32.mrf.mxu0
    %1279 = vmatprep.mubr.f32.mxu0 0.0
    %1280 = vmatmul.mubr.f32.gmra.mxu0 %v1208
    %v1281 = vpop.f32.mrf.mxu0
    %v1282 = vadd.f32 0.0, %v1281
    %v1283 = vpop.f32.mrf.mxu0
    %1284 = vdwg.mxu0
    %s1285 = scalar_lea.vmem [#allocation11], 64
    %v1286 = vld [vmem:[%s1285] sm:$0xff]
    %v1287 = vld [vmem:[%s1285 + $0x8] sm:$0xff]
    %v1289 = vsel %vm951, %v1286, 0
    %v1292 = vsel %vm951, %v1287, 0
    %1294 = vmatprep.subr.mxu0 0.0
    %1295 = vmatpush1.msra.mxu0 0.0
    %1296 = vmatprep.subr.mxu0 0.0
    %1297 = vmatpush1.msra.mxu0 0.0
    %1298 = vmatprep.subr.mxu0 0.0
    %1299 = vmatpush1.msra.mxu0 0.0
    %1300 = vmatprep.subr.mxu0 0.0
    %1301 = vmatpush1.msra.mxu0 0.0
    %1302 = vmatprep.subr.mxu0 0.0
    %1303 = vmatpush1.msra.mxu0 0.0
    %1304 = vmatprep.subr.mxu0 0.0
    %1305 = vmatpush1.msra.mxu0 0.0
    %1306 = vmatprep.subr.mxu0 0.0
    %1307 = vmatpush1.msra.mxu0 0.0
    %1308 = vmatprep.subr.mxu0 0.0
    %1309 = vmatpush1.msra.mxu0 0.0
    %1310 = vmatprep.subr.mxu0 0.0
    %1311 = vmatpush1.msra.mxu0 0.0
    %1312 = vmatprep.subr.mxu0 0.0
    %1313 = vmatpush1.msra.mxu0 0.0
    %1314 = vmatprep.subr.mxu0 0.0
    %1315 = vmatpush1.msra.mxu0 0.0
    %1316 = vmatprep.subr.mxu0 0.0
    %1317 = vmatpush1.msra.mxu0 0.0
    %1318 = vmatprep.subr.mxu0 0.0
    %1319 = vmatpush1.msra.mxu0 0.0
    %1320 = vmatprep.subr.mxu0 0.0
    %1321 = vmatpush1.msra.mxu0 %v948
    %1322 = vmatprep.subr.mxu0 0.0
    %1323 = vmatpush1.msra.mxu0 %v947
    %1324 = vmatprep.subr.mxu0 0.0
    %1325 = vmatpush1.msra.mxu0 %v946
    %1326 = vmatprep.subr.mxu0 0.0
    %1327 = vmatpush2.msra.mxu0 0.0
    %1328 = vmatprep.subr.mxu0 0.0
    %1329 = vmatpush2.msra.mxu0 0.0
    %1330 = vmatprep.subr.mxu0 0.0
    %1331 = vmatpush2.msra.mxu0 0.0
    %1332 = vmatprep.subr.mxu0 0.0
    %1333 = vmatpush2.msra.mxu0 0.0
    %1334 = vmatprep.subr.mxu0 0.0
    %1335 = vmatpush2.msra.mxu0 0.0
    %1336 = vmatprep.subr.mxu0 0.0
    %1337 = vmatpush2.msra.mxu0 0.0
    %1338 = vmatprep.subr.mxu0 0.0
    %1339 = vmatpush2.msra.mxu0 0.0
    %1340 = vmatprep.subr.mxu0 0.0
    %1341 = vmatpush2.msra.mxu0 0.0
    %1342 = vmatprep.subr.mxu0 0.0
    %1343 = vmatpush2.msra.mxu0 0.0
    %1344 = vmatprep.subr.mxu0 0.0
    %1345 = vmatpush2.msra.mxu0 0.0
    %1346 = vmatprep.subr.mxu0 0.0
    %1347 = vmatpush2.msra.mxu0 0.0
    %1348 = vmatprep.subr.mxu0 0.0
    %1349 = vmatpush2.msra.mxu0 0.0
    %1350 = vmatprep.subr.mxu0 0.0
    %1351 = vmatpush2.msra.mxu0 0.0
    %1352 = vmatprep.subr.mxu0 0.0
    %1353 = vmatpush2.msra.mxu0 0.0
    %1354 = vmatprep.subr.mxu0 0.0
    %1355 = vmatpush2.msra.mxu0 0.0
    %1356 = vmatprep.subr.mxu0 0.0
    %1357 = vmatpush2.msra.mxu0 0.0
    %1358 = vmatprep.mubr.f32.mxu0 0.0
    %1359 = vmatmul.mubr.f32.gmra.mxu0 %v1289
    %v1360 = vpop.f32.mrf.mxu0
    %v1361 = vadd.f32 0.0, %v1360
    %v1362 = vpop.f32.mrf.mxu0
    %1363 = vmatprep.mubr.f32.mxu0 0.0
    %1364 = vmatmul.mubr.f32.gmra.mxu0 %v1292
    %v1365 = vpop.f32.mrf.mxu0
    %v1366 = vadd.f32 0.0, %v1365
    %v1367 = vpop.f32.mrf.mxu0
    %1368 = vdwg.mxu0
    %1371 = vrot.lane.b32.xlu0 %v1109, 72
    %v1372 = vpop.permute.xlu0 %1371
    %1373 = vrot.lane.b32.xlu0 %v1114, 72
    %v1374 = vpop.permute.xlu0 %1373
    %1379 = vrot.lane.b32.xlu0 %v1193, 16
    %v1380 = vpop.permute.xlu0 %1379
    %1381 = vrot.lane.b32.xlu0 %v1198, 16
    %v1382 = vpop.permute.xlu0 %1381
    %1387 = vrot.lane.b32.xlu0 %v1277, 88
    %v1388 = vpop.permute.xlu0 %1387
    %1389 = vrot.lane.b32.xlu0 %v1282, 88
    %v1390 = vpop.permute.xlu0 %1389
    %1395 = vrot.lane.b32.xlu0 %v1361, 32
    %v1396 = vpop.permute.xlu0 %1395
    %1397 = vrot.lane.b32.xlu0 %v1366, 32
    %v1398 = vpop.permute.xlu0 %1397
    %vm1401 = vcmask 588800
    %v1402 = vsel %vm1401, %v1025, %v1372
    %v1403 = vsel %vm1401, %v1030, %v1374
    %v1404 = vsel %vm526, %v1372, %v1380
    %v1405 = vsel %vm526, %v1374, %v1382
    %vm1406 = vcmask 719872
    %v1407 = vsel %vm1406, %v1404, %v1388
    %v1408 = vsel %vm1406, %v1405, %v1390
    %vm1409 = vcmask 261120
    %v1410 = vsel %vm1409, %v1388, %v1396
    %v1411 = vsel %vm1409, %v1390, %v1398
    %v1412 = vld [vmem:[#allocation8] sm:$0xff]
    %v1413 = vld [vmem:[#allocation8 + $0x8] sm:$0xff]
    %v1414 = vld [vmem:[#allocation8 + $0x10] sm:$0xff]
    %v1415 = vld [vmem:[#allocation8 + $0x18] sm:$0xff]
    %v1416 = vld [vmem:[#allocation8 + $0x20] sm:$0xff]
    %v1417 = vld [vmem:[#allocation8 + $0x28] sm:$0xff]
    %v1418 = vld [vmem:[#allocation8 + $0x30] sm:$0xff]
    %v1419 = vld [vmem:[#allocation8 + $0x38] sm:$0xff]
    %v1420 = vld [vmem:[#allocation8 + $0x40] sm:$0xff]
    %v1421 = vld [vmem:[#allocation8 + $0x48] sm:$0xff]
    %v1422 = vld [vmem:[#allocation8 + $0x50] sm:$0xff]
    %v1423 = vld [vmem:[#allocation8 + $0x58] sm:$0xff]
    %v1424 = vld [vmem:[#allocation8 + $0x60] sm:$0xff]
    %v1425 = vld [vmem:[#allocation8 + $0x68] sm:$0xff]
    %v1426 = vld [vmem:[#allocation8 + $0x70] sm:$0xff]
    %v1427 = vld [vmem:[#allocation8 + $0x78] sm:$0xff]
    %v1428 = vld [vmem:[#allocation8 + $0x80] sm:$0xff]
    %v1429 = vld [vmem:[#allocation8 + $0x88] sm:$0xff]
    %v1430 = vld [vmem:[#allocation8 + $0x90] sm:$0xff]
    %v1431 = vld [vmem:[#allocation8 + $0x98] sm:$0xff]
    %v1432 = vld [vmem:[#allocation8 + $0xa0] sm:$0xff]
    %v1433 = vld [vmem:[#allocation8 + $0xa8] sm:$0xff]
    %v1434 = vld [vmem:[#allocation8 + $0xb0] sm:$0xff]
    %v1435 = vld [vmem:[#allocation8 + $0xb8] sm:$0xff]
    %v1436 = vld [vmem:[#allocation8 + $0xc0] sm:$0xff]
    %v1437 = vld [vmem:[#allocation8 + $0xc8] sm:$0xff]
    %v1438 = vld [vmem:[#allocation8 + $0xd0] sm:$0xff]
    %v1439 = vld [vmem:[#allocation8 + $0xd8] sm:$0xff]
    %v1440 = vld [vmem:[#allocation8 + $0xe0] sm:$0xff]
    %v1441 = vld [vmem:[#allocation8 + $0xe8] sm:$0xff]
    %v1442 = vld [vmem:[#allocation8 + $0xf0] sm:$0xff]
    %v1443 = vld [vmem:[#allocation8 + $0xf8] sm:$0xff]
    %v1444 = vld [vmem:[#allocation8 + $0x100] sm:$0xff]
    %v1445 = vld [vmem:[#allocation8 + $0x108] sm:$0xff]
    %v1446 = vld [vmem:[#allocation8 + $0x110] sm:$0xff]
    %v1447 = vld [vmem:[#allocation8 + $0x118] sm:$0xff]
    %v1448 = vld [vmem:[#allocation8 + $0x120] sm:$0xff]
    %v1449 = vld [vmem:[#allocation8 + $0x128] sm:$0xff]
    %v1450 = vld [vmem:[#allocation8 + $0x130] sm:$0xff]
    %v1451 = vld [vmem:[#allocation8 + $0x138] sm:$0xff]
    %v1452 = vld [vmem:[#allocation8 + $0x140] sm:$0xff]
    %v1453 = vld [vmem:[#allocation8 + $0x148] sm:$0xff]
    %v1454 = vld [vmem:[#allocation8 + $0x150] sm:$0xff]
    %v1455 = vld [vmem:[#allocation8 + $0x158] sm:$0xff]
    %v1456 = vld [vmem:[#allocation8 + $0x160] sm:$0xff]
    %v1457 = vld [vmem:[%s6] sm:$0x1]
    %v1459 = vlaneseq
    %v1460 = vshrl.u32 %v1459, 7
    %v1461 = vsub.s32 0, %v1460
    %v1462 = vrot.slane %v1457, %v1461
    %vm1464 = vcmask 850944
    %v1466 = vsel %vm1464, %v1410, 0
    %v1469 = vsel %vm1464, %v1411, 0
    %1471 = vmatprep.subr.mxu0 0.0
    %1472 = vmatpush1.msra.mxu0 %v1427
    %1473 = vmatprep.subr.mxu0 0.0
    %1474 = vmatpush1.msra.mxu0 %v1426
    %1475 = vmatprep.subr.mxu0 0.0
    %1476 = vmatpush1.msra.mxu0 %v1425
    %1477 = vmatprep.subr.mxu0 0.0
    %1478 = vmatpush1.msra.mxu0 %v1424
    %1479 = vmatprep.subr.mxu0 0.0
    %1480 = vmatpush1.msra.mxu0 %v1423
    %1481 = vmatprep.subr.mxu0 0.0
    %1482 = vmatpush1.msra.mxu0 %v1422
    %1483 = vmatprep.subr.mxu0 0.0
    %1484 = vmatpush1.msra.mxu0 %v1421
    %1485 = vmatprep.subr.mxu0 0.0
    %1486 = vmatpush1.msra.mxu0 %v1420
    %1487 = vmatprep.subr.mxu0 0.0
    %1488 = vmatpush1.msra.mxu0 %v1419
    %1489 = vmatprep.subr.mxu0 0.0
    %1490 = vmatpush1.msra.mxu0 %v1418
    %1491 = vmatprep.subr.mxu0 0.0
    %1492 = vmatpush1.msra.mxu0 %v1417
    %1493 = vmatprep.subr.mxu0 0.0
    %1494 = vmatpush1.msra.mxu0 %v1416
    %1495 = vmatprep.subr.mxu0 0.0
    %1496 = vmatpush1.msra.mxu0 %v1415
    %1497 = vmatprep.subr.mxu0 0.0
    %1498 = vmatpush1.msra.mxu0 %v1414
    %1499 = vmatprep.subr.mxu0 0.0
    %1500 = vmatpush1.msra.mxu0 %v1413
    %1501 = vmatprep.subr.mxu0 0.0
    %1502 = vmatpush1.msra.mxu0 %v1412
    %1503 = vmatprep.subr.mxu0 0.0
    %1504 = vmatpush2.msra.mxu0 %v1443
    %1505 = vmatprep.subr.mxu0 0.0
    %1506 = vmatpush2.msra.mxu0 %v1442
    %1507 = vmatprep.subr.mxu0 0.0
    %1508 = vmatpush2.msra.mxu0 %v1441
    %1509 = vmatprep.subr.mxu0 0.0
    %1510 = vmatpush2.msra.mxu0 %v1440
    %1511 = vmatprep.subr.mxu0 0.0
    %1512 = vmatpush2.msra.mxu0 %v1439
    %1513 = vmatprep.subr.mxu0 0.0
    %1514 = vmatpush2.msra.mxu0 %v1438
    %1515 = vmatprep.subr.mxu0 0.0
    %1516 = vmatpush2.msra.mxu0 %v1437
    %1517 = vmatprep.subr.mxu0 0.0
    %1518 = vmatpush2.msra.mxu0 %v1436
    %1519 = vmatprep.subr.mxu0 0.0
    %1520 = vmatpush2.msra.mxu0 %v1435
    %1521 = vmatprep.subr.mxu0 0.0
    %1522 = vmatpush2.msra.mxu0 %v1434
    %1523 = vmatprep.subr.mxu0 0.0
    %1524 = vmatpush2.msra.mxu0 %v1433
    %1525 = vmatprep.subr.mxu0 0.0
    %1526 = vmatpush2.msra.mxu0 %v1432
    %1527 = vmatprep.subr.mxu0 0.0
    %1528 = vmatpush2.msra.mxu0 %v1431
    %1529 = vmatprep.subr.mxu0 0.0
    %1530 = vmatpush2.msra.mxu0 %v1430
    %1531 = vmatprep.subr.mxu0 0.0
    %1532 = vmatpush2.msra.mxu0 %v1429
    %1533 = vmatprep.subr.mxu0 0.0
    %1534 = vmatpush2.msra.mxu0 %v1428
    %1535 = vmatprep.mubr.f32.mxu0 %v1407
    %1536 = vmatmul.mubr.f32.gmra.mxu0 %v1402
    %v1537 = vpop.f32.mrf.mxu0
    %v1538 = vadd.f32 %v1462, %v1537
    %v1539 = vpop.f32.mrf.mxu0
    %1540 = vmatprep.mubr.f32.mxu0 %v1408
    %1541 = vmatmul.mubr.f32.gmra.mxu0 %v1403
    %v1542 = vpop.f32.mrf.mxu0
    %v1543 = vadd.f32 %v1462, %v1542
    %v1544 = vpop.f32.mrf.mxu0
    %1545 = vdwg.mxu0
    %1546 = vmatprep.subr.mxu0 0.0
    %1547 = vmatpush1.msra.mxu0 0.0
    %1548 = vmatprep.subr.mxu0 0.0
    %1549 = vmatpush1.msra.mxu0 0.0
    %1550 = vmatprep.subr.mxu0 0.0
    %1551 = vmatpush1.msra.mxu0 0.0
    %1552 = vmatprep.subr.mxu0 0.0
    %1553 = vmatpush1.msra.mxu0 %v1456
    %1554 = vmatprep.subr.mxu0 0.0
    %1555 = vmatpush1.msra.mxu0 %v1455
    %1556 = vmatprep.subr.mxu0 0.0
    %1557 = vmatpush1.msra.mxu0 %v1454
    %1558 = vmatprep.subr.mxu0 0.0
    %1559 = vmatpush1.msra.mxu0 %v1453
    %1560 = vmatprep.subr.mxu0 0.0
    %1561 = vmatpush1.msra.mxu0 %v1452
    %1562 = vmatprep.subr.mxu0 0.0
    %1563 = vmatpush1.msra.mxu0 %v1451
    %1564 = vmatprep.subr.mxu0 0.0
    %1565 = vmatpush1.msra.mxu0 %v1450
    %1566 = vmatprep.subr.mxu0 0.0
    %1567 = vmatpush1.msra.mxu0 %v1449
    %1568 = vmatprep.subr.mxu0 0.0
    %1569 = vmatpush1.msra.mxu0 %v1448
    %1570 = vmatprep.subr.mxu0 0.0
    %1571 = vmatpush1.msra.mxu0 %v1447
    %1572 = vmatprep.subr.mxu0 0.0
    %1573 = vmatpush1.msra.mxu0 %v1446
    %1574 = vmatprep.subr.mxu0 0.0
    %1575 = vmatpush1.msra.mxu0 %v1445
    %1576 = vmatprep.subr.mxu0 0.0
    %1577 = vmatpush1.msra.mxu0 %v1444
    %1578 = vmatprep.subr.mxu0 0.0
    %1579 = vmatpush2.msra.mxu0 0.0
    %1580 = vmatprep.subr.mxu0 0.0
    %1581 = vmatpush2.msra.mxu0 0.0
    %1582 = vmatprep.subr.mxu0 0.0
    %1583 = vmatpush2.msra.mxu0 0.0
    %1584 = vmatprep.subr.mxu0 0.0
    %1585 = vmatpush2.msra.mxu0 0.0
    %1586 = vmatprep.subr.mxu0 0.0
    %1587 = vmatpush2.msra.mxu0 0.0
    %1588 = vmatprep.subr.mxu0 0.0
    %1589 = vmatpush2.msra.mxu0 0.0
    %1590 = vmatprep.subr.mxu0 0.0
    %1591 = vmatpush2.msra.mxu0 0.0
    %1592 = vmatprep.subr.mxu0 0.0
    %1593 = vmatpush2.msra.mxu0 0.0
    %1594 = vmatprep.subr.mxu0 0.0
    %1595 = vmatpush2.msra.mxu0 0.0
    %1596 = vmatprep.subr.mxu0 0.0
    %1597 = vmatpush2.msra.mxu0 0.0
    %1598 = vmatprep.subr.mxu0 0.0
    %1599 = vmatpush2.msra.mxu0 0.0
    %1600 = vmatprep.subr.mxu0 0.0
    %1601 = vmatpush2.msra.mxu0 0.0
    %1602 = vmatprep.subr.mxu0 0.0
    %1603 = vmatpush2.msra.mxu0 0.0
    %1604 = vmatprep.subr.mxu0 0.0
    %1605 = vmatpush2.msra.mxu0 0.0
    %1606 = vmatprep.subr.mxu0 0.0
    %1607 = vmatpush2.msra.mxu0 0.0
    %1608 = vmatprep.subr.mxu0 0.0
    %1609 = vmatpush2.msra.mxu0 0.0
    %1610 = vmatprep.mubr.f32.mxu0 0.0
    %1611 = vmatmul.mubr.f32.gmra.mxu0 %v1466
    %v1612 = vpop.f32.mrf.mxu0
    %v1613 = vadd.f32 %v1538, %v1612
    %v1614 = vpop.f32.mrf.mxu0
    %1615 = vmatprep.mubr.f32.mxu0 0.0
    %1616 = vmatmul.mubr.f32.gmra.mxu0 %v1469
    %v1617 = vpop.f32.mrf.mxu0
    %v1618 = vadd.f32 %v1543, %v1617
    %v1619 = vpop.f32.mrf.mxu0
    %1620 = vdwg.mxu0
    %v1621 = vmax.f32 %v1613, 0.0
    %v1622 = vmax.f32 %v1618, 0.0
    %v1623 = vld [vmem:[#allocation10] sm:$0xff]
    %v1624 = vld [vmem:[#allocation10 + $0x8] sm:$0xff]
    %v1625 = vld [vmem:[#allocation10 + $0x10] sm:$0xff]
    %v1626 = vld [vmem:[#allocation10 + $0x18] sm:$0xff]
    %v1627 = vld [vmem:[#allocation10 + $0x20] sm:$0xff]
    %v1628 = vld [vmem:[#allocation10 + $0x28] sm:$0xff]
    %v1629 = vld [vmem:[#allocation10 + $0x30] sm:$0xff]
    %v1630 = vld [vmem:[#allocation10 + $0x38] sm:$0xff]
    %v1631 = vld [vmem:[#allocation10 + $0x40] sm:$0xff]
    %v1632 = vld [vmem:[#allocation10 + $0x48] sm:$0xff]
    %v1633 = vld [vmem:[#allocation10 + $0x50] sm:$0xff]
    %v1634 = vld [vmem:[#allocation10 + $0x58] sm:$0xff]
    %v1635 = vld [vmem:[#allocation10 + $0x60] sm:$0xff]
    %v1636 = vld [vmem:[#allocation10 + $0x68] sm:$0xff]
    %v1637 = vld [vmem:[#allocation10 + $0x70] sm:$0xff]
    %v1638 = vld [vmem:[#allocation10 + $0x78] sm:$0xff]
    %1639 = vmatprep.subr.mxu0 0.0
    %1640 = vmatpush1.msra.mxu0 %v1638
    %1641 = vmatprep.subr.mxu0 0.0
    %1642 = vmatpush1.msra.mxu0 %v1637
    %1643 = vmatprep.subr.mxu0 0.0
    %1644 = vmatpush1.msra.mxu0 %v1636
    %1645 = vmatprep.subr.mxu0 0.0
    %1646 = vmatpush1.msra.mxu0 %v1635
    %1647 = vmatprep.subr.mxu0 0.0
    %1648 = vmatpush1.msra.mxu0 %v1634
    %1649 = vmatprep.subr.mxu0 0.0
    %1650 = vmatpush1.msra.mxu0 %v1633
    %1651 = vmatprep.subr.mxu0 0.0
    %1652 = vmatpush1.msra.mxu0 %v1632
    %1653 = vmatprep.subr.mxu0 0.0
    %1654 = vmatpush1.msra.mxu0 %v1631
    %1655 = vmatprep.subr.mxu0 0.0
    %1656 = vmatpush1.msra.mxu0 %v1630
    %1657 = vmatprep.subr.mxu0 0.0
    %1658 = vmatpush1.msra.mxu0 %v1629
    %1659 = vmatprep.subr.mxu0 0.0
    %1660 = vmatpush1.msra.mxu0 %v1628
    %1661 = vmatprep.subr.mxu0 0.0
    %1662 = vmatpush1.msra.mxu0 %v1627
    %1663 = vmatprep.subr.mxu0 0.0
    %1664 = vmatpush1.msra.mxu0 %v1626
    %1665 = vmatprep.subr.mxu0 0.0
    %1666 = vmatpush1.msra.mxu0 %v1625
    %1667 = vmatprep.subr.mxu0 0.0
    %1668 = vmatpush1.msra.mxu0 %v1624
    %1669 = vmatprep.subr.mxu0 0.0
    %1670 = vmatpush1.msra.mxu0 %v1623
    %1671 = vmatprep.subr.mxu0 0.0
    %1672 = vmatpush2.msra.mxu0 0.0
    %1673 = vmatprep.subr.mxu0 0.0
    %1674 = vmatpush2.msra.mxu0 0.0
    %1675 = vmatprep.subr.mxu0 0.0
    %1676 = vmatpush2.msra.mxu0 0.0
    %1677 = vmatprep.subr.mxu0 0.0
    %1678 = vmatpush2.msra.mxu0 0.0
    %1679 = vmatprep.subr.mxu0 0.0
    %1680 = vmatpush2.msra.mxu0 0.0
    %1681 = vmatprep.subr.mxu0 0.0
    %1682 = vmatpush2.msra.mxu0 0.0
    %1683 = vmatprep.subr.mxu0 0.0
    %1684 = vmatpush2.msra.mxu0 0.0
    %1685 = vmatprep.subr.mxu0 0.0
    %1686 = vmatpush2.msra.mxu0 0.0
    %1687 = vmatprep.subr.mxu0 0.0
    %1688 = vmatpush2.msra.mxu0 0.0
    %1689 = vmatprep.subr.mxu0 0.0
    %1690 = vmatpush2.msra.mxu0 0.0
    %1691 = vmatprep.subr.mxu0 0.0
    %1692 = vmatpush2.msra.mxu0 0.0
    %1693 = vmatprep.subr.mxu0 0.0
    %1694 = vmatpush2.msra.mxu0 0.0
    %1695 = vmatprep.subr.mxu0 0.0
    %1696 = vmatpush2.msra.mxu0 0.0
    %1697 = vmatprep.subr.mxu0 0.0
    %1698 = vmatpush2.msra.mxu0 0.0
    %1699 = vmatprep.subr.mxu0 0.0
    %1700 = vmatpush2.msra.mxu0 0.0
    %1701 = vmatprep.subr.mxu0 0.0
    %1702 = vmatpush2.msra.mxu0 0.0
    %1703 = vmatprep.mubr.f32.mxu0 0.0
    %1704 = vmatmul.mubr.f32.gmra.mxu0 %v1621
    %v1705 = vpop.f32.mrf.mxu0
    %v1706 = vadd.f32 0.0, %v1705
    %v1707 = vpop.f32.mrf.mxu0
    %1708 = vmatprep.mubr.f32.mxu0 0.0
    %1709 = vmatmul.mubr.f32.gmra.mxu0 %v1622
    %v1710 = vpop.f32.mrf.mxu0
    %v1711 = vadd.f32 0.0, %v1710
    %v1712 = vpop.f32.mrf.mxu0
    %1713 = vdwg.mxu0
    %s1714 = scalar_lea.vmem [#allocation10], 128
    %v1715 = vld [vmem:[%s1714] sm:$0xff]
    %v1716 = vld [vmem:[%s1714 + $0x8] sm:$0xff]
    %v1717 = vld [vmem:[%s1714 + $0x10] sm:$0xff]
    %v1718 = vld [vmem:[%s1714 + $0x18] sm:$0xff]
    %v1719 = vld [vmem:[%s1714 + $0x20] sm:$0xff]
    %v1720 = vld [vmem:[%s1714 + $0x28] sm:$0xff]
    %v1721 = vld [vmem:[%s1714 + $0x30] sm:$0xff]
    %v1722 = vld [vmem:[%s1714 + $0x38] sm:$0xff]
    %v1723 = vld [vmem:[%s1714 + $0x40] sm:$0xff]
    %v1724 = vld [vmem:[%s1714 + $0x48] sm:$0xff]
    %v1725 = vld [vmem:[%s1714 + $0x50] sm:$0xff]
    %v1726 = vld [vmem:[%s1714 + $0x58] sm:$0xff]
    %v1727 = vld [vmem:[%s1714 + $0x60] sm:$0xff]
    %v1728 = vld [vmem:[%s1714 + $0x68] sm:$0xff]
    %v1729 = vld [vmem:[%s1714 + $0x70] sm:$0xff]
    %v1730 = vld [vmem:[%s1714 + $0x78] sm:$0xff]
    %1731 = vmatprep.subr.mxu0 0.0
    %1732 = vmatpush1.msra.mxu0 %v1730
    %1733 = vmatprep.subr.mxu0 0.0
    %1734 = vmatpush1.msra.mxu0 %v1729
    %1735 = vmatprep.subr.mxu0 0.0
    %1736 = vmatpush1.msra.mxu0 %v1728
    %1737 = vmatprep.subr.mxu0 0.0
    %1738 = vmatpush1.msra.mxu0 %v1727
    %1739 = vmatprep.subr.mxu0 0.0
    %1740 = vmatpush1.msra.mxu0 %v1726
    %1741 = vmatprep.subr.mxu0 0.0
    %1742 = vmatpush1.msra.mxu0 %v1725
    %1743 = vmatprep.subr.mxu0 0.0
    %1744 = vmatpush1.msra.mxu0 %v1724
    %1745 = vmatprep.subr.mxu0 0.0
    %1746 = vmatpush1.msra.mxu0 %v1723
    %1747 = vmatprep.subr.mxu0 0.0
    %1748 = vmatpush1.msra.mxu0 %v1722
    %1749 = vmatprep.subr.mxu0 0.0
    %1750 = vmatpush1.msra.mxu0 %v1721
    %1751 = vmatprep.subr.mxu0 0.0
    %1752 = vmatpush1.msra.mxu0 %v1720
    %1753 = vmatprep.subr.mxu0 0.0
    %1754 = vmatpush1.msra.mxu0 %v1719
    %1755 = vmatprep.subr.mxu0 0.0
    %1756 = vmatpush1.msra.mxu0 %v1718
    %1757 = vmatprep.subr.mxu0 0.0
    %1758 = vmatpush1.msra.mxu0 %v1717
    %1759 = vmatprep.subr.mxu0 0.0
    %1760 = vmatpush1.msra.mxu0 %v1716
    %1761 = vmatprep.subr.mxu0 0.0
    %1762 = vmatpush1.msra.mxu0 %v1715
    %1763 = vmatprep.subr.mxu0 0.0
    %1764 = vmatpush2.msra.mxu0 0.0
    %1765 = vmatprep.subr.mxu0 0.0
    %1766 = vmatpush2.msra.mxu0 0.0
    %1767 = vmatprep.subr.mxu0 0.0
    %1768 = vmatpush2.msra.mxu0 0.0
    %1769 = vmatprep.subr.mxu0 0.0
    %1770 = vmatpush2.msra.mxu0 0.0
    %1771 = vmatprep.subr.mxu0 0.0
    %1772 = vmatpush2.msra.mxu0 0.0
    %1773 = vmatprep.subr.mxu0 0.0
    %1774 = vmatpush2.msra.mxu0 0.0
    %1775 = vmatprep.subr.mxu0 0.0
    %1776 = vmatpush2.msra.mxu0 0.0
    %1777 = vmatprep.subr.mxu0 0.0
    %1778 = vmatpush2.msra.mxu0 0.0
    %1779 = vmatprep.subr.mxu0 0.0
    %1780 = vmatpush2.msra.mxu0 0.0
    %1781 = vmatprep.subr.mxu0 0.0
    %1782 = vmatpush2.msra.mxu0 0.0
    %1783 = vmatprep.subr.mxu0 0.0
    %1784 = vmatpush2.msra.mxu0 0.0
    %1785 = vmatprep.subr.mxu0 0.0
    %1786 = vmatpush2.msra.mxu0 0.0
    %1787 = vmatprep.subr.mxu0 0.0
    %1788 = vmatpush2.msra.mxu0 0.0
    %1789 = vmatprep.subr.mxu0 0.0
    %1790 = vmatpush2.msra.mxu0 0.0
    %1791 = vmatprep.subr.mxu0 0.0
    %1792 = vmatpush2.msra.mxu0 0.0
    %1793 = vmatprep.subr.mxu0 0.0
    %1794 = vmatpush2.msra.mxu0 0.0
    %1795 = vmatprep.mubr.f32.mxu0 0.0
    %1796 = vmatmul.mubr.f32.gmra.mxu0 %v1621
    %v1797 = vpop.f32.mrf.mxu0
    %v1798 = vadd.f32 0.0, %v1797
    %v1799 = vpop.f32.mrf.mxu0
    %1800 = vmatprep.mubr.f32.mxu0 0.0
    %1801 = vmatmul.mubr.f32.gmra.mxu0 %v1622
    %v1802 = vpop.f32.mrf.mxu0
    %v1803 = vadd.f32 0.0, %v1802
    %v1804 = vpop.f32.mrf.mxu0
    %1805 = vdwg.mxu0
    %v1806 = vmax.f32 %v1706, %v1798
    %v1807 = vmax.f32 %v1711, %v1803
    %v1808 = vld [vmem:[%s8] sm:$0xff]
    %v1810 = vsel %vm526, %v1808, 0
    %1812 = vmatprep.subr.mxu0 0.0
    %1813 = vmatpush1.msra.mxu0 0.0
    %1814 = vmatprep.subr.mxu0 0.0
    %1815 = vmatpush1.msra.mxu0 0.0
    %1816 = vmatprep.subr.mxu0 0.0
    %1817 = vmatpush1.msra.mxu0 0.0
    %1818 = vmatprep.subr.mxu0 0.0
    %1819 = vmatpush1.msra.mxu0 0.0
    %1820 = vmatprep.subr.mxu0 0.0
    %1821 = vmatpush1.msra.mxu0 0.0
    %1822 = vmatprep.subr.mxu0 0.0
    %1823 = vmatpush1.msra.mxu0 0.0
    %1824 = vmatprep.subr.mxu0 0.0
    %1825 = vmatpush1.msra.mxu0 0.0
    %1826 = vmatprep.subr.mxu0 0.0
    %1827 = vmatpush1.msra.mxu0 0.0
    %1828 = vmatprep.subr.mxu0 0.0
    %1829 = vmatpush1.msra.mxu0 0.0
    %1830 = vmatprep.subr.mxu0 0.0
    %1831 = vmatpush1.msra.mxu0 0.0
    %1832 = vmatprep.subr.mxu0 0.0
    %1833 = vmatpush1.msra.mxu0 0.0
    %1834 = vmatprep.subr.mxu0 0.0
    %1835 = vmatpush1.msra.mxu0 0.0
    %1836 = vmatprep.subr.mxu0 0.0
    %1837 = vmatpush1.msra.mxu0 0.0
    %1838 = vmatprep.subr.mxu0 0.0
    %1839 = vmatpush1.msra.mxu0 0.0
    %1840 = vmatprep.subr.mxu0 0.0
    %1841 = vmatpush1.msra.mxu0 %v1807
    %1842 = vmatprep.subr.mxu0 0.0
    %1843 = vmatpush1.msra.mxu0 %v1806
    %1844 = vmatprep.subr.mxu0 0.0
    %1845 = vmatpush2.msra.mxu0 0.0
    %1846 = vmatprep.subr.mxu0 0.0
    %1847 = vmatpush2.msra.mxu0 0.0
    %1848 = vmatprep.subr.mxu0 0.0
    %1849 = vmatpush2.msra.mxu0 0.0
    %1850 = vmatprep.subr.mxu0 0.0
    %1851 = vmatpush2.msra.mxu0 0.0
    %1852 = vmatprep.subr.mxu0 0.0
    %1853 = vmatpush2.msra.mxu0 0.0
    %1854 = vmatprep.subr.mxu0 0.0
    %1855 = vmatpush2.msra.mxu0 0.0
    %1856 = vmatprep.subr.mxu0 0.0
    %1857 = vmatpush2.msra.mxu0 0.0
    %1858 = vmatprep.subr.mxu0 0.0
    %1859 = vmatpush2.msra.mxu0 0.0
    %1860 = vmatprep.subr.mxu0 0.0
    %1861 = vmatpush2.msra.mxu0 0.0
    %1862 = vmatprep.subr.mxu0 0.0
    %1863 = vmatpush2.msra.mxu0 0.0
    %1864 = vmatprep.subr.mxu0 0.0
    %1865 = vmatpush2.msra.mxu0 0.0
    %1866 = vmatprep.subr.mxu0 0.0
    %1867 = vmatpush2.msra.mxu0 0.0
    %1868 = vmatprep.subr.mxu0 0.0
    %1869 = vmatpush2.msra.mxu0 0.0
    %1870 = vmatprep.subr.mxu0 0.0
    %1871 = vmatpush2.msra.mxu0 0.0
    %1872 = vmatprep.subr.mxu0 0.0
    %1873 = vmatpush2.msra.mxu0 0.0
    %1874 = vmatprep.subr.mxu0 0.0
    %1875 = vmatpush2.msra.mxu0 0.0
    %1876 = vmatprep.mubr.f32.mxu0 0.0
    %1877 = vmatmul.mubr.f32.gmra.mxu0 %v1810
    %v1878 = vpop.f32.mrf.mxu0
    %v1879 = vadd.f32 0.0, %v1878
    %v1880 = vpop.f32.mrf.mxu0
    %1881 = vdwg.mxu0
    %s1882 = scalar_lea.vmem %s8, 8
    %v1883 = vld [vmem:[%s1882] sm:$0xff]
    %v1885 = vsel %vm526, %v1883, 0
    %1887 = vmatprep.subr.mxu0 0.0
    %1888 = vmatpush1.msra.mxu0 0.0
    %1889 = vmatprep.subr.mxu0 0.0
    %1890 = vmatpush1.msra.mxu0 0.0
    %1891 = vmatprep.subr.mxu0 0.0
    %1892 = vmatpush1.msra.mxu0 0.0
    %1893 = vmatprep.subr.mxu0 0.0
    %1894 = vmatpush1.msra.mxu0 0.0
    %1895 = vmatprep.subr.mxu0 0.0
    %1896 = vmatpush1.msra.mxu0 0.0
    %1897 = vmatprep.subr.mxu0 0.0
    %1898 = vmatpush1.msra.mxu0 0.0
    %1899 = vmatprep.subr.mxu0 0.0
    %1900 = vmatpush1.msra.mxu0 0.0
    %1901 = vmatprep.subr.mxu0 0.0
    %1902 = vmatpush1.msra.mxu0 0.0
    %1903 = vmatprep.subr.mxu0 0.0
    %1904 = vmatpush1.msra.mxu0 0.0
    %1905 = vmatprep.subr.mxu0 0.0
    %1906 = vmatpush1.msra.mxu0 0.0
    %1907 = vmatprep.subr.mxu0 0.0
    %1908 = vmatpush1.msra.mxu0 0.0
    %1909 = vmatprep.subr.mxu0 0.0
    %1910 = vmatpush1.msra.mxu0 0.0
    %1911 = vmatprep.subr.mxu0 0.0
    %1912 = vmatpush1.msra.mxu0 0.0
    %1913 = vmatprep.subr.mxu0 0.0
    %1914 = vmatpush1.msra.mxu0 0.0
    %1915 = vmatprep.subr.mxu0 0.0
    %1916 = vmatpush1.msra.mxu0 %v1807
    %1917 = vmatprep.subr.mxu0 0.0
    %1918 = vmatpush1.msra.mxu0 %v1806
    %1919 = vmatprep.subr.mxu0 0.0
    %1920 = vmatpush2.msra.mxu0 0.0
    %1921 = vmatprep.subr.mxu0 0.0
    %1922 = vmatpush2.msra.mxu0 0.0
    %1923 = vmatprep.subr.mxu0 0.0
    %1924 = vmatpush2.msra.mxu0 0.0
    %1925 = vmatprep.subr.mxu0 0.0
    %1926 = vmatpush2.msra.mxu0 0.0
    %1927 = vmatprep.subr.mxu0 0.0
    %1928 = vmatpush2.msra.mxu0 0.0
    %1929 = vmatprep.subr.mxu0 0.0
    %1930 = vmatpush2.msra.mxu0 0.0
    %1931 = vmatprep.subr.mxu0 0.0
    %1932 = vmatpush2.msra.mxu0 0.0
    %1933 = vmatprep.subr.mxu0 0.0
    %1934 = vmatpush2.msra.mxu0 0.0
    %1935 = vmatprep.subr.mxu0 0.0
    %1936 = vmatpush2.msra.mxu0 0.0
    %1937 = vmatprep.subr.mxu0 0.0
    %1938 = vmatpush2.msra.mxu0 0.0
    %1939 = vmatprep.subr.mxu0 0.0
    %1940 = vmatpush2.msra.mxu0 0.0
    %1941 = vmatprep.subr.mxu0 0.0
    %1942 = vmatpush2.msra.mxu0 0.0
    %1943 = vmatprep.subr.mxu0 0.0
    %1944 = vmatpush2.msra.mxu0 0.0
    %1945 = vmatprep.subr.mxu0 0.0
    %1946 = vmatpush2.msra.mxu0 0.0
    %1947 = vmatprep.subr.mxu0 0.0
    %1948 = vmatpush2.msra.mxu0 0.0
    %1949 = vmatprep.subr.mxu0 0.0
    %1950 = vmatpush2.msra.mxu0 0.0
    %1951 = vmatprep.mubr.f32.mxu0 0.0
    %1952 = vmatmul.mubr.f32.gmra.mxu0 %v1885
    %v1953 = vpop.f32.mrf.mxu0
    %v1954 = vadd.f32 0.0, %v1953
    %v1955 = vpop.f32.mrf.mxu0
    %1956 = vdwg.mxu0
    %v1957 = vmax.f32 %v1879, %v1954
    %v1958 = vld [vmem:[%s10] sm:$0x3]
    %vm1959 = vcmask 64512
    %v1961 = vsel %vm1959, %v1958, 0
    %1963 = vmatprep.subr.mxu0 0.0
    %1964 = vmatpush1.msra.mxu0 0.0
    %1965 = vmatprep.subr.mxu0 0.0
    %1966 = vmatpush1.msra.mxu0 0.0
    %1967 = vmatprep.subr.mxu0 0.0
    %1968 = vmatpush1.msra.mxu0 0.0
    %1969 = vmatprep.subr.mxu0 0.0
    %1970 = vmatpush1.msra.mxu0 0.0
    %1971 = vmatprep.subr.mxu0 0.0
    %1972 = vmatpush1.msra.mxu0 0.0
    %1973 = vmatprep.subr.mxu0 0.0
    %1974 = vmatpush1.msra.mxu0 0.0
    %1975 = vmatprep.subr.mxu0 0.0
    %1976 = vmatpush1.msra.mxu0 0.0
    %1977 = vmatprep.subr.mxu0 0.0
    %1978 = vmatpush1.msra.mxu0 0.0
    %1979 = vmatprep.subr.mxu0 0.0
    %1980 = vmatpush1.msra.mxu0 0.0
    %1981 = vmatprep.subr.mxu0 0.0
    %1982 = vmatpush1.msra.mxu0 0.0
    %1983 = vmatprep.subr.mxu0 0.0
    %1984 = vmatpush1.msra.mxu0 0.0
    %1985 = vmatprep.subr.mxu0 0.0
    %1986 = vmatpush1.msra.mxu0 0.0
    %1987 = vmatprep.subr.mxu0 0.0
    %1988 = vmatpush1.msra.mxu0 0.0
    %1989 = vmatprep.subr.mxu0 0.0
    %1990 = vmatpush1.msra.mxu0 0.0
    %1991 = vmatprep.subr.mxu0 0.0
    %1992 = vmatpush1.msra.mxu0 0.0
    %1993 = vmatprep.subr.mxu0 0.0
    %1994 = vmatpush1.msra.mxu0 %v1957
    %1995 = vmatprep.subr.mxu0 0.0
    %1996 = vmatpush2.msra.mxu0 0.0
    %1997 = vmatprep.subr.mxu0 0.0
    %1998 = vmatpush2.msra.mxu0 0.0
    %1999 = vmatprep.subr.mxu0 0.0
    %2000 = vmatpush2.msra.mxu0 0.0
    %2001 = vmatprep.subr.mxu0 0.0
    %2002 = vmatpush2.msra.mxu0 0.0
    %2003 = vmatprep.subr.mxu0 0.0
    %2004 = vmatpush2.msra.mxu0 0.0
    %2005 = vmatprep.subr.mxu0 0.0
    %2006 = vmatpush2.msra.mxu0 0.0
    %2007 = vmatprep.subr.mxu0 0.0
    %2008 = vmatpush2.msra.mxu0 0.0
    %2009 = vmatprep.subr.mxu0 0.0
    %2010 = vmatpush2.msra.mxu0 0.0
    %2011 = vmatprep.subr.mxu0 0.0
    %2012 = vmatpush2.msra.mxu0 0.0
    %2013 = vmatprep.subr.mxu0 0.0
    %2014 = vmatpush2.msra.mxu0 0.0
    %2015 = vmatprep.subr.mxu0 0.0
    %2016 = vmatpush2.msra.mxu0 0.0
    %2017 = vmatprep.subr.mxu0 0.0
    %2018 = vmatpush2.msra.mxu0 0.0
    %2019 = vmatprep.subr.mxu0 0.0
    %2020 = vmatpush2.msra.mxu0 0.0
    %2021 = vmatprep.subr.mxu0 0.0
    %2022 = vmatpush2.msra.mxu0 0.0
    %2023 = vmatprep.subr.mxu0 0.0
    %2024 = vmatpush2.msra.mxu0 0.0
    %2025 = vmatprep.subr.mxu0 0.0
    %2026 = vmatpush2.msra.mxu0 0.0
    %2027 = vmatprep.mubr.f32.mxu0 0.0
    %2028 = vmatmul.mubr.f32.gmra.mxu0 %v1961
    %v2029 = vpop.f32.mrf.mxu0
    %v2030 = vadd.f32 0.0, %v2029
    %v2031 = vpop.f32.mrf.mxu0
    %2032 = vdwg.mxu0
    %v2033 = vld [vmem:[#allocation13] sm:$0xff]
    %v2034 = vld [vmem:[#allocation13 + $0x8] sm:$0xff]
    %v2035 = vld [vmem:[#allocation13 + $0x10] sm:$0xff]
    %v2036 = vld [vmem:[#allocation13 + $0x18] sm:$0xff]
    %v2037 = vld [vmem:[#allocation13 + $0x20] sm:$0xff]
    %v2038 = vld [vmem:[#allocation13 + $0x28] sm:$0xff]
    %v2039 = vld [vmem:[#allocation13 + $0x30] sm:$0xff]
    %v2040 = vld [vmem:[#allocation13 + $0x38] sm:$0xff]
    %s2041 = scalar_lea.vmem %s10, 2
    %v2042 = vld [vmem:[%s2041] sm:$0x3]
    %v2044 = vsel %vm1959, %v2042, 0
    %2046 = vmatprep.subr.mxu0 0.0
    %2047 = vmatpush1.msra.mxu0 0.0
    %2048 = vmatprep.subr.mxu0 0.0
    %2049 = vmatpush1.msra.mxu0 0.0
    %2050 = vmatprep.subr.mxu0 0.0
    %2051 = vmatpush1.msra.mxu0 0.0
    %2052 = vmatprep.subr.mxu0 0.0
    %2053 = vmatpush1.msra.mxu0 0.0
    %2054 = vmatprep.subr.mxu0 0.0
    %2055 = vmatpush1.msra.mxu0 0.0
    %2056 = vmatprep.subr.mxu0 0.0
    %2057 = vmatpush1.msra.mxu0 0.0
    %2058 = vmatprep.subr.mxu0 0.0
    %2059 = vmatpush1.msra.mxu0 0.0
    %2060 = vmatprep.subr.mxu0 0.0
    %2061 = vmatpush1.msra.mxu0 0.0
    %2062 = vmatprep.subr.mxu0 0.0
    %2063 = vmatpush1.msra.mxu0 0.0
    %2064 = vmatprep.subr.mxu0 0.0
    %2065 = vmatpush1.msra.mxu0 0.0
    %2066 = vmatprep.subr.mxu0 0.0
    %2067 = vmatpush1.msra.mxu0 0.0
    %2068 = vmatprep.subr.mxu0 0.0
    %2069 = vmatpush1.msra.mxu0 0.0
    %2070 = vmatprep.subr.mxu0 0.0
    %2071 = vmatpush1.msra.mxu0 0.0
    %2072 = vmatprep.subr.mxu0 0.0
    %2073 = vmatpush1.msra.mxu0 0.0
    %2074 = vmatprep.subr.mxu0 0.0
    %2075 = vmatpush1.msra.mxu0 0.0
    %2076 = vmatprep.subr.mxu0 0.0
    %2077 = vmatpush1.msra.mxu0 %v1957
    %2078 = vmatprep.subr.mxu0 0.0
    %2079 = vmatpush2.msra.mxu0 0.0
    %2080 = vmatprep.subr.mxu0 0.0
    %2081 = vmatpush2.msra.mxu0 0.0
    %2082 = vmatprep.subr.mxu0 0.0
    %2083 = vmatpush2.msra.mxu0 0.0
    %2084 = vmatprep.subr.mxu0 0.0
    %2085 = vmatpush2.msra.mxu0 0.0
    %2086 = vmatprep.subr.mxu0 0.0
    %2087 = vmatpush2.msra.mxu0 0.0
    %2088 = vmatprep.subr.mxu0 0.0
    %2089 = vmatpush2.msra.mxu0 0.0
    %2090 = vmatprep.subr.mxu0 0.0
    %2091 = vmatpush2.msra.mxu0 0.0
    %2092 = vmatprep.subr.mxu0 0.0
    %2093 = vmatpush2.msra.mxu0 0.0
    %2094 = vmatprep.subr.mxu0 0.0
    %2095 = vmatpush2.msra.mxu0 0.0
    %2096 = vmatprep.subr.mxu0 0.0
    %2097 = vmatpush2.msra.mxu0 0.0
    %2098 = vmatprep.subr.mxu0 0.0
    %2099 = vmatpush2.msra.mxu0 0.0
    %2100 = vmatprep.subr.mxu0 0.0
    %2101 = vmatpush2.msra.mxu0 0.0
    %2102 = vmatprep.subr.mxu0 0.0
    %2103 = vmatpush2.msra.mxu0 0.0
    %2104 = vmatprep.subr.mxu0 0.0
    %2105 = vmatpush2.msra.mxu0 0.0
    %2106 = vmatprep.subr.mxu0 0.0
    %2107 = vmatpush2.msra.mxu0 0.0
    %2108 = vmatprep.subr.mxu0 0.0
    %2109 = vmatpush2.msra.mxu0 0.0
    %2110 = vmatprep.mubr.f32.mxu0 0.0
    %2111 = vmatmul.mubr.f32.gmra.mxu0 %v2044
    %v2112 = vpop.f32.mrf.mxu0
    %v2113 = vadd.f32 0.0, %v2112
    %v2114 = vpop.f32.mrf.mxu0
    %2115 = vdwg.mxu0
    %s2116 = scalar_lea.vmem [#allocation13], 64
    %v2117 = vld [vmem:[%s2116] sm:$0xff]
    %v2118 = vld [vmem:[%s2116 + $0x8] sm:$0xff]
    %v2119 = vld [vmem:[%s2116 + $0x10] sm:$0xff]
    %v2120 = vld [vmem:[%s2116 + $0x18] sm:$0xff]
    %v2121 = vld [vmem:[%s2116 + $0x20] sm:$0xff]
    %v2122 = vld [vmem:[%s2116 + $0x28] sm:$0xff]
    %v2123 = vld [vmem:[%s2116 + $0x30] sm:$0xff]
    %v2124 = vld [vmem:[%s2116 + $0x38] sm:$0xff]
    %vm2125 = vcmask 523264
    %v2127 = vsel %vm2125, %v2113, 0
    %2129 = vmatprep.subr.mxu0 0.0
    %2130 = vmatpush1.msra.mxu0 0.0
    %2131 = vmatprep.subr.mxu0 0.0
    %2132 = vmatpush1.msra.mxu0 0.0
    %2133 = vmatprep.subr.mxu0 0.0
    %2134 = vmatpush1.msra.mxu0 0.0
    %2135 = vmatprep.subr.mxu0 0.0
    %2136 = vmatpush1.msra.mxu0 0.0
    %2137 = vmatprep.subr.mxu0 0.0
    %2138 = vmatpush1.msra.mxu0 0.0
    %2139 = vmatprep.subr.mxu0 0.0
    %2140 = vmatpush1.msra.mxu0 0.0
    %2141 = vmatprep.subr.mxu0 0.0
    %2142 = vmatpush1.msra.mxu0 0.0
    %2143 = vmatprep.subr.mxu0 0.0
    %2144 = vmatpush1.msra.mxu0 0.0
    %2145 = vmatprep.subr.mxu0 0.0
    %2146 = vmatpush1.msra.mxu0 %v2124
    %2147 = vmatprep.subr.mxu0 0.0
    %2148 = vmatpush1.msra.mxu0 %v2123
    %2149 = vmatprep.subr.mxu0 0.0
    %2150 = vmatpush1.msra.mxu0 %v2122
    %2151 = vmatprep.subr.mxu0 0.0
    %2152 = vmatpush1.msra.mxu0 %v2121
    %2153 = vmatprep.subr.mxu0 0.0
    %2154 = vmatpush1.msra.mxu0 %v2120
    %2155 = vmatprep.subr.mxu0 0.0
    %2156 = vmatpush1.msra.mxu0 %v2119
    %2157 = vmatprep.subr.mxu0 0.0
    %2158 = vmatpush1.msra.mxu0 %v2118
    %2159 = vmatprep.subr.mxu0 0.0
    %2160 = vmatpush1.msra.mxu0 %v2117
    %2161 = vmatprep.subr.mxu0 0.0
    %2162 = vmatpush2.msra.mxu0 0.0
    %2163 = vmatprep.subr.mxu0 0.0
    %2164 = vmatpush2.msra.mxu0 0.0
    %2165 = vmatprep.subr.mxu0 0.0
    %2166 = vmatpush2.msra.mxu0 0.0
    %2167 = vmatprep.subr.mxu0 0.0
    %2168 = vmatpush2.msra.mxu0 0.0
    %2169 = vmatprep.subr.mxu0 0.0
    %2170 = vmatpush2.msra.mxu0 0.0
    %2171 = vmatprep.subr.mxu0 0.0
    %2172 = vmatpush2.msra.mxu0 0.0
    %2173 = vmatprep.subr.mxu0 0.0
    %2174 = vmatpush2.msra.mxu0 0.0
    %2175 = vmatprep.subr.mxu0 0.0
    %2176 = vmatpush2.msra.mxu0 0.0
    %2177 = vmatprep.subr.mxu0 0.0
    %2178 = vmatpush2.msra.mxu0 0.0
    %2179 = vmatprep.subr.mxu0 0.0
    %2180 = vmatpush2.msra.mxu0 0.0
    %2181 = vmatprep.subr.mxu0 0.0
    %2182 = vmatpush2.msra.mxu0 0.0
    %2183 = vmatprep.subr.mxu0 0.0
    %2184 = vmatpush2.msra.mxu0 0.0
    %2185 = vmatprep.subr.mxu0 0.0
    %2186 = vmatpush2.msra.mxu0 0.0
    %2187 = vmatprep.subr.mxu0 0.0
    %2188 = vmatpush2.msra.mxu0 0.0
    %2189 = vmatprep.subr.mxu0 0.0
    %2190 = vmatpush2.msra.mxu0 0.0
    %2191 = vmatprep.subr.mxu0 0.0
    %2192 = vmatpush2.msra.mxu0 0.0
    %2193 = vmatprep.mubr.f32.mxu0 0.0
    %2194 = vmatmul.mubr.f32.gmra.mxu0 %v2127
    %v2195 = vpop.f32.mrf.mxu0
    %v2196 = vadd.f32 0.0, %v2195
    %v2197 = vpop.f32.mrf.mxu0
    %2198 = vdwg.mxu0
    %v2200 = vsel %vm2125, %v2030, 0
    %2202 = vmatprep.subr.mxu0 0.0
    %2203 = vmatpush1.msra.mxu0 0.0
    %2204 = vmatprep.subr.mxu0 0.0
    %2205 = vmatpush1.msra.mxu0 0.0
    %2206 = vmatprep.subr.mxu0 0.0
    %2207 = vmatpush1.msra.mxu0 0.0
    %2208 = vmatprep.subr.mxu0 0.0
    %2209 = vmatpush1.msra.mxu0 0.0
    %2210 = vmatprep.subr.mxu0 0.0
    %2211 = vmatpush1.msra.mxu0 0.0
    %2212 = vmatprep.subr.mxu0 0.0
    %2213 = vmatpush1.msra.mxu0 0.0
    %2214 = vmatprep.subr.mxu0 0.0
    %2215 = vmatpush1.msra.mxu0 0.0
    %2216 = vmatprep.subr.mxu0 0.0
    %2217 = vmatpush1.msra.mxu0 0.0
    %2218 = vmatprep.subr.mxu0 0.0
    %2219 = vmatpush1.msra.mxu0 %v2040
    %2220 = vmatprep.subr.mxu0 0.0
    %2221 = vmatpush1.msra.mxu0 %v2039
    %2222 = vmatprep.subr.mxu0 0.0
    %2223 = vmatpush1.msra.mxu0 %v2038
    %2224 = vmatprep.subr.mxu0 0.0
    %2225 = vmatpush1.msra.mxu0 %v2037
    %2226 = vmatprep.subr.mxu0 0.0
    %2227 = vmatpush1.msra.mxu0 %v2036
    %2228 = vmatprep.subr.mxu0 0.0
    %2229 = vmatpush1.msra.mxu0 %v2035
    %2230 = vmatprep.subr.mxu0 0.0
    %2231 = vmatpush1.msra.mxu0 %v2034
    %2232 = vmatprep.subr.mxu0 0.0
    %2233 = vmatpush1.msra.mxu0 %v2033
    %2234 = vmatprep.subr.mxu0 0.0
    %2235 = vmatpush2.msra.mxu0 0.0
    %2236 = vmatprep.subr.mxu0 0.0
    %2237 = vmatpush2.msra.mxu0 0.0
    %2238 = vmatprep.subr.mxu0 0.0
    %2239 = vmatpush2.msra.mxu0 0.0
    %2240 = vmatprep.subr.mxu0 0.0
    %2241 = vmatpush2.msra.mxu0 0.0
    %2242 = vmatprep.subr.mxu0 0.0
    %2243 = vmatpush2.msra.mxu0 0.0
    %2244 = vmatprep.subr.mxu0 0.0
    %2245 = vmatpush2.msra.mxu0 0.0
    %2246 = vmatprep.subr.mxu0 0.0
    %2247 = vmatpush2.msra.mxu0 0.0
    %2248 = vmatprep.subr.mxu0 0.0
    %2249 = vmatpush2.msra.mxu0 0.0
    %2250 = vmatprep.subr.mxu0 0.0
    %2251 = vmatpush2.msra.mxu0 0.0
    %2252 = vmatprep.subr.mxu0 0.0
    %2253 = vmatpush2.msra.mxu0 0.0
    %2254 = vmatprep.subr.mxu0 0.0
    %2255 = vmatpush2.msra.mxu0 0.0
    %2256 = vmatprep.subr.mxu0 0.0
    %2257 = vmatpush2.msra.mxu0 0.0
    %2258 = vmatprep.subr.mxu0 0.0
    %2259 = vmatpush2.msra.mxu0 0.0
    %2260 = vmatprep.subr.mxu0 0.0
    %2261 = vmatpush2.msra.mxu0 0.0
    %2262 = vmatprep.subr.mxu0 0.0
    %2263 = vmatpush2.msra.mxu0 0.0
    %2264 = vmatprep.subr.mxu0 0.0
    %2265 = vmatpush2.msra.mxu0 0.0
    %2266 = vmatprep.mubr.f32.mxu0 0.0
    %2267 = vmatmul.mubr.f32.gmra.mxu0 %v2200
    %v2268 = vpop.f32.mrf.mxu0
    %v2269 = vadd.f32 %v2196, %v2268
    %v2270 = vpop.f32.mrf.mxu0
    %2271 = vdwg.mxu0
    %s2272 = scalar_lea.vmem %s10, 4
    %v2273 = vld [vmem:[%s2272] sm:$0x3]
    %v2275 = vsel %vm1959, %v2273, 0
    %2277 = vmatprep.subr.mxu0 0.0
    %2278 = vmatpush1.msra.mxu0 0.0
    %2279 = vmatprep.subr.mxu0 0.0
    %2280 = vmatpush1.msra.mxu0 0.0
    %2281 = vmatprep.subr.mxu0 0.0
    %2282 = vmatpush1.msra.mxu0 0.0
    %2283 = vmatprep.subr.mxu0 0.0
    %2284 = vmatpush1.msra.mxu0 0.0
    %2285 = vmatprep.subr.mxu0 0.0
    %2286 = vmatpush1.msra.mxu0 0.0
    %2287 = vmatprep.subr.mxu0 0.0
    %2288 = vmatpush1.msra.mxu0 0.0
    %2289 = vmatprep.subr.mxu0 0.0
    %2290 = vmatpush1.msra.mxu0 0.0
    %2291 = vmatprep.subr.mxu0 0.0
    %2292 = vmatpush1.msra.mxu0 0.0
    %2293 = vmatprep.subr.mxu0 0.0
    %2294 = vmatpush1.msra.mxu0 0.0
    %2295 = vmatprep.subr.mxu0 0.0
    %2296 = vmatpush1.msra.mxu0 0.0
    %2297 = vmatprep.subr.mxu0 0.0
    %2298 = vmatpush1.msra.mxu0 0.0
    %2299 = vmatprep.subr.mxu0 0.0
    %2300 = vmatpush1.msra.mxu0 0.0
    %2301 = vmatprep.subr.mxu0 0.0
    %2302 = vmatpush1.msra.mxu0 0.0
    %2303 = vmatprep.subr.mxu0 0.0
    %2304 = vmatpush1.msra.mxu0 0.0
    %2305 = vmatprep.subr.mxu0 0.0
    %2306 = vmatpush1.msra.mxu0 0.0
    %2307 = vmatprep.subr.mxu0 0.0
    %2308 = vmatpush1.msra.mxu0 %v1957
    %2309 = vmatprep.subr.mxu0 0.0
    %2310 = vmatpush2.msra.mxu0 0.0
    %2311 = vmatprep.subr.mxu0 0.0
    %2312 = vmatpush2.msra.mxu0 0.0
    %2313 = vmatprep.subr.mxu0 0.0
    %2314 = vmatpush2.msra.mxu0 0.0
    %2315 = vmatprep.subr.mxu0 0.0
    %2316 = vmatpush2.msra.mxu0 0.0
    %2317 = vmatprep.subr.mxu0 0.0
    %2318 = vmatpush2.msra.mxu0 0.0
    %2319 = vmatprep.subr.mxu0 0.0
    %2320 = vmatpush2.msra.mxu0 0.0
    %2321 = vmatprep.subr.mxu0 0.0
    %2322 = vmatpush2.msra.mxu0 0.0
    %2323 = vmatprep.subr.mxu0 0.0
    %2324 = vmatpush2.msra.mxu0 0.0
    %2325 = vmatprep.subr.mxu0 0.0
    %2326 = vmatpush2.msra.mxu0 0.0
    %2327 = vmatprep.subr.mxu0 0.0
    %2328 = vmatpush2.msra.mxu0 0.0
    %2329 = vmatprep.subr.mxu0 0.0
    %2330 = vmatpush2.msra.mxu0 0.0
    %2331 = vmatprep.subr.mxu0 0.0
    %2332 = vmatpush2.msra.mxu0 0.0
    %2333 = vmatprep.subr.mxu0 0.0
    %2334 = vmatpush2.msra.mxu0 0.0
    %2335 = vmatprep.subr.mxu0 0.0
    %2336 = vmatpush2.msra.mxu0 0.0
    %2337 = vmatprep.subr.mxu0 0.0
    %2338 = vmatpush2.msra.mxu0 0.0
    %2339 = vmatprep.subr.mxu0 0.0
    %2340 = vmatpush2.msra.mxu0 0.0
    %2341 = vmatprep.mubr.f32.mxu0 0.0
    %2342 = vmatmul.mubr.f32.gmra.mxu0 %v2275
    %v2343 = vpop.f32.mrf.mxu0
    %v2344 = vadd.f32 0.0, %v2343
    %v2345 = vpop.f32.mrf.mxu0
    %2346 = vdwg.mxu0
    %s2347 = scalar_lea.vmem [#allocation13], 128
    %v2348 = vld [vmem:[%s2347] sm:$0xff]
    %v2349 = vld [vmem:[%s2347 + $0x8] sm:$0xff]
    %v2350 = vld [vmem:[%s2347 + $0x10] sm:$0xff]
    %v2351 = vld [vmem:[%s2347 + $0x18] sm:$0xff]
    %v2352 = vld [vmem:[%s2347 + $0x20] sm:$0xff]
    %v2353 = vld [vmem:[%s2347 + $0x28] sm:$0xff]
    %v2354 = vld [vmem:[%s2347 + $0x30] sm:$0xff]
    %v2355 = vld [vmem:[%s2347 + $0x38] sm:$0xff]
    %v2357 = vsel %vm2125, %v2344, 0
    %2359 = vmatprep.subr.mxu0 0.0
    %2360 = vmatpush1.msra.mxu0 0.0
    %2361 = vmatprep.subr.mxu0 0.0
    %2362 = vmatpush1.msra.mxu0 0.0
    %2363 = vmatprep.subr.mxu0 0.0
    %2364 = vmatpush1.msra.mxu0 0.0
    %2365 = vmatprep.subr.mxu0 0.0
    %2366 = vmatpush1.msra.mxu0 0.0
    %2367 = vmatprep.subr.mxu0 0.0
    %2368 = vmatpush1.msra.mxu0 0.0
    %2369 = vmatprep.subr.mxu0 0.0
    %2370 = vmatpush1.msra.mxu0 0.0
    %2371 = vmatprep.subr.mxu0 0.0
    %2372 = vmatpush1.msra.mxu0 0.0
    %2373 = vmatprep.subr.mxu0 0.0
    %2374 = vmatpush1.msra.mxu0 0.0
    %2375 = vmatprep.subr.mxu0 0.0
    %2376 = vmatpush1.msra.mxu0 %v2355
    %2377 = vmatprep.subr.mxu0 0.0
    %2378 = vmatpush1.msra.mxu0 %v2354
    %2379 = vmatprep.subr.mxu0 0.0
    %2380 = vmatpush1.msra.mxu0 %v2353
    %2381 = vmatprep.subr.mxu0 0.0
    %2382 = vmatpush1.msra.mxu0 %v2352
    %2383 = vmatprep.subr.mxu0 0.0
    %2384 = vmatpush1.msra.mxu0 %v2351
    %2385 = vmatprep.subr.mxu0 0.0
    %2386 = vmatpush1.msra.mxu0 %v2350
    %2387 = vmatprep.subr.mxu0 0.0
    %2388 = vmatpush1.msra.mxu0 %v2349
    %2389 = vmatprep.subr.mxu0 0.0
    %2390 = vmatpush1.msra.mxu0 %v2348
    %2391 = vmatprep.subr.mxu0 0.0
    %2392 = vmatpush2.msra.mxu0 0.0
    %2393 = vmatprep.subr.mxu0 0.0
    %2394 = vmatpush2.msra.mxu0 0.0
    %2395 = vmatprep.subr.mxu0 0.0
    %2396 = vmatpush2.msra.mxu0 0.0
    %2397 = vmatprep.subr.mxu0 0.0
    %2398 = vmatpush2.msra.mxu0 0.0
    %2399 = vmatprep.subr.mxu0 0.0
    %2400 = vmatpush2.msra.mxu0 0.0
    %2401 = vmatprep.subr.mxu0 0.0
    %2402 = vmatpush2.msra.mxu0 0.0
    %2403 = vmatprep.subr.mxu0 0.0
    %2404 = vmatpush2.msra.mxu0 0.0
    %2405 = vmatprep.subr.mxu0 0.0
    %2406 = vmatpush2.msra.mxu0 0.0
    %2407 = vmatprep.subr.mxu0 0.0
    %2408 = vmatpush2.msra.mxu0 0.0
    %2409 = vmatprep.subr.mxu0 0.0
    %2410 = vmatpush2.msra.mxu0 0.0
    %2411 = vmatprep.subr.mxu0 0.0
    %2412 = vmatpush2.msra.mxu0 0.0
    %2413 = vmatprep.subr.mxu0 0.0
    %2414 = vmatpush2.msra.mxu0 0.0
    %2415 = vmatprep.subr.mxu0 0.0
    %2416 = vmatpush2.msra.mxu0 0.0
    %2417 = vmatprep.subr.mxu0 0.0
    %2418 = vmatpush2.msra.mxu0 0.0
    %2419 = vmatprep.subr.mxu0 0.0
    %2420 = vmatpush2.msra.mxu0 0.0
    %2421 = vmatprep.subr.mxu0 0.0
    %2422 = vmatpush2.msra.mxu0 0.0
    %2423 = vmatprep.mubr.f32.mxu0 0.0
    %2424 = vmatmul.mubr.f32.gmra.mxu0 %v2357
    %v2425 = vpop.f32.mrf.mxu0
    %v2426 = vadd.f32 0.0, %v2425
    %v2427 = vpop.f32.mrf.mxu0
    %2428 = vdwg.mxu0
    %v2429 = vadd.f32 %v2269, %v2426
    %s2430 = scalar_lea.vmem %s10, 6
    %v2431 = vld [vmem:[%s2430] sm:$0x3]
    %v2433 = vsel %vm1959, %v2431, 0
    %2435 = vmatprep.subr.mxu0 0.0
    %2436 = vmatpush1.msra.mxu0 0.0
    %2437 = vmatprep.subr.mxu0 0.0
    %2438 = vmatpush1.msra.mxu0 0.0
    %2439 = vmatprep.subr.mxu0 0.0
    %2440 = vmatpush1.msra.mxu0 0.0
    %2441 = vmatprep.subr.mxu0 0.0
    %2442 = vmatpush1.msra.mxu0 0.0
    %2443 = vmatprep.subr.mxu0 0.0
    %2444 = vmatpush1.msra.mxu0 0.0
    %2445 = vmatprep.subr.mxu0 0.0
    %2446 = vmatpush1.msra.mxu0 0.0
    %2447 = vmatprep.subr.mxu0 0.0
    %2448 = vmatpush1.msra.mxu0 0.0
    %2449 = vmatprep.subr.mxu0 0.0
    %2450 = vmatpush1.msra.mxu0 0.0
    %2451 = vmatprep.subr.mxu0 0.0
    %2452 = vmatpush1.msra.mxu0 0.0
    %2453 = vmatprep.subr.mxu0 0.0
    %2454 = vmatpush1.msra.mxu0 0.0
    %2455 = vmatprep.subr.mxu0 0.0
    %2456 = vmatpush1.msra.mxu0 0.0
    %2457 = vmatprep.subr.mxu0 0.0
    %2458 = vmatpush1.msra.mxu0 0.0
    %2459 = vmatprep.subr.mxu0 0.0
    %2460 = vmatpush1.msra.mxu0 0.0
    %2461 = vmatprep.subr.mxu0 0.0
    %2462 = vmatpush1.msra.mxu0 0.0
    %2463 = vmatprep.subr.mxu0 0.0
    %2464 = vmatpush1.msra.mxu0 0.0
    %2465 = vmatprep.subr.mxu0 0.0
    %2466 = vmatpush1.msra.mxu0 %v1957
    %2467 = vmatprep.subr.mxu0 0.0
    %2468 = vmatpush2.msra.mxu0 0.0
    %2469 = vmatprep.subr.mxu0 0.0
    %2470 = vmatpush2.msra.mxu0 0.0
    %2471 = vmatprep.subr.mxu0 0.0
    %2472 = vmatpush2.msra.mxu0 0.0
    %2473 = vmatprep.subr.mxu0 0.0
    %2474 = vmatpush2.msra.mxu0 0.0
    %2475 = vmatprep.subr.mxu0 0.0
    %2476 = vmatpush2.msra.mxu0 0.0
    %2477 = vmatprep.subr.mxu0 0.0
    %2478 = vmatpush2.msra.mxu0 0.0
    %2479 = vmatprep.subr.mxu0 0.0
    %2480 = vmatpush2.msra.mxu0 0.0
    %2481 = vmatprep.subr.mxu0 0.0
    %2482 = vmatpush2.msra.mxu0 0.0
    %2483 = vmatprep.subr.mxu0 0.0
    %2484 = vmatpush2.msra.mxu0 0.0
    %2485 = vmatprep.subr.mxu0 0.0
    %2486 = vmatpush2.msra.mxu0 0.0
    %2487 = vmatprep.subr.mxu0 0.0
    %2488 = vmatpush2.msra.mxu0 0.0
    %2489 = vmatprep.subr.mxu0 0.0
    %2490 = vmatpush2.msra.mxu0 0.0
    %2491 = vmatprep.subr.mxu0 0.0
    %2492 = vmatpush2.msra.mxu0 0.0
    %2493 = vmatprep.subr.mxu0 0.0
    %2494 = vmatpush2.msra.mxu0 0.0
    %2495 = vmatprep.subr.mxu0 0.0
    %2496 = vmatpush2.msra.mxu0 0.0
    %2497 = vmatprep.subr.mxu0 0.0
    %2498 = vmatpush2.msra.mxu0 0.0
    %2499 = vmatprep.mubr.f32.mxu0 0.0
    %2500 = vmatmul.mubr.f32.gmra.mxu0 %v2433
    %v2501 = vpop.f32.mrf.mxu0
    %v2502 = vadd.f32 0.0, %v2501
    %v2503 = vpop.f32.mrf.mxu0
    %2504 = vdwg.mxu0
    %s2505 = scalar_lea.vmem [#allocation13], 192
    %v2506 = vld [vmem:[%s2505] sm:$0xff]
    %v2507 = vld [vmem:[%s2505 + $0x8] sm:$0xff]
    %v2508 = vld [vmem:[%s2505 + $0x10] sm:$0xff]
    %v2509 = vld [vmem:[%s2505 + $0x18] sm:$0xff]
    %v2510 = vld [vmem:[%s2505 + $0x20] sm:$0xff]
    %v2511 = vld [vmem:[%s2505 + $0x28] sm:$0xff]
    %v2512 = vld [vmem:[%s2505 + $0x30] sm:$0xff]
    %v2513 = vld [vmem:[%s2505 + $0x38] sm:$0xff]
    %v2515 = vsel %vm2125, %v2502, 0
    %2517 = vmatprep.subr.mxu0 0.0
    %2518 = vmatpush1.msra.mxu0 0.0
    %2519 = vmatprep.subr.mxu0 0.0
    %2520 = vmatpush1.msra.mxu0 0.0
    %2521 = vmatprep.subr.mxu0 0.0
    %2522 = vmatpush1.msra.mxu0 0.0
    %2523 = vmatprep.subr.mxu0 0.0
    %2524 = vmatpush1.msra.mxu0 0.0
    %2525 = vmatprep.subr.mxu0 0.0
    %2526 = vmatpush1.msra.mxu0 0.0
    %2527 = vmatprep.subr.mxu0 0.0
    %2528 = vmatpush1.msra.mxu0 0.0
    %2529 = vmatprep.subr.mxu0 0.0
    %2530 = vmatpush1.msra.mxu0 0.0
    %2531 = vmatprep.subr.mxu0 0.0
    %2532 = vmatpush1.msra.mxu0 0.0
    %2533 = vmatprep.subr.mxu0 0.0
    %2534 = vmatpush1.msra.mxu0 %v2513
    %2535 = vmatprep.subr.mxu0 0.0
    %2536 = vmatpush1.msra.mxu0 %v2512
    %2537 = vmatprep.subr.mxu0 0.0
    %2538 = vmatpush1.msra.mxu0 %v2511
    %2539 = vmatprep.subr.mxu0 0.0
    %2540 = vmatpush1.msra.mxu0 %v2510
    %2541 = vmatprep.subr.mxu0 0.0
    %2542 = vmatpush1.msra.mxu0 %v2509
    %2543 = vmatprep.subr.mxu0 0.0
    %2544 = vmatpush1.msra.mxu0 %v2508
    %2545 = vmatprep.subr.mxu0 0.0
    %2546 = vmatpush1.msra.mxu0 %v2507
    %2547 = vmatprep.subr.mxu0 0.0
    %2548 = vmatpush1.msra.mxu0 %v2506
    %2549 = vmatprep.subr.mxu0 0.0
    %2550 = vmatpush2.msra.mxu0 0.0
    %2551 = vmatprep.subr.mxu0 0.0
    %2552 = vmatpush2.msra.mxu0 0.0
    %2553 = vmatprep.subr.mxu0 0.0
    %2554 = vmatpush2.msra.mxu0 0.0
    %2555 = vmatprep.subr.mxu0 0.0
    %2556 = vmatpush2.msra.mxu0 0.0
    %2557 = vmatprep.subr.mxu0 0.0
    %2558 = vmatpush2.msra.mxu0 0.0
    %2559 = vmatprep.subr.mxu0 0.0
    %2560 = vmatpush2.msra.mxu0 0.0
    %2561 = vmatprep.subr.mxu0 0.0
    %2562 = vmatpush2.msra.mxu0 0.0
    %2563 = vmatprep.subr.mxu0 0.0
    %2564 = vmatpush2.msra.mxu0 0.0
    %2565 = vmatprep.subr.mxu0 0.0
    %2566 = vmatpush2.msra.mxu0 0.0
    %2567 = vmatprep.subr.mxu0 0.0
    %2568 = vmatpush2.msra.mxu0 0.0
    %2569 = vmatprep.subr.mxu0 0.0
    %2570 = vmatpush2.msra.mxu0 0.0
    %2571 = vmatprep.subr.mxu0 0.0
    %2572 = vmatpush2.msra.mxu0 0.0
    %2573 = vmatprep.subr.mxu0 0.0
    %2574 = vmatpush2.msra.mxu0 0.0
    %2575 = vmatprep.subr.mxu0 0.0
    %2576 = vmatpush2.msra.mxu0 0.0
    %2577 = vmatprep.subr.mxu0 0.0
    %2578 = vmatpush2.msra.mxu0 0.0
    %2579 = vmatprep.subr.mxu0 0.0
    %2580 = vmatpush2.msra.mxu0 0.0
    %2581 = vmatprep.mubr.f32.mxu0 0.0
    %2582 = vmatmul.mubr.f32.gmra.mxu0 %v2515
    %v2583 = vpop.f32.mrf.mxu0
    %v2584 = vadd.f32 0.0, %v2583
    %v2585 = vpop.f32.mrf.mxu0
    %2586 = vdwg.mxu0
    %v2587 = vadd.f32 %v2429, %v2584
    %v2588 = vld [vmem:[%s12] sm:$0x1]
    %v2590 = vlaneseq
    %v2591 = vshrl.u32 %v2590, 7
    %v2592 = vsub.s32 0, %v2591
    %v2593 = vrot.slane %v2588, %v2592
    %v2595 = vadd.f32 %v2587, %v2593
    %v2596 = vmax.f32 %v2595, 0.0
    %v2597 = vld [vmem:[%s13] sm:$0xff]
    %v2598 = vld [vmem:[%s13 + $0x8] sm:$0xff]
    %v2599 = vld [vmem:[%s13 + $0x10] sm:$0xff]
    %v2600 = vld [vmem:[%s13 + $0x18] sm:$0xff]
    %v2601 = vld [vmem:[%s13 + $0x20] sm:$0xff]
    %v2602 = vld [vmem:[%s13 + $0x28] sm:$0xff]
    %v2603 = vld [vmem:[%s13 + $0x30] sm:$0xff]
    %v2604 = vld [vmem:[%s13 + $0x38] sm:$0xff]
    %v2605 = vld [vmem:[%s13 + $0x40] sm:$0xff]
    %v2606 = vld [vmem:[%s13 + $0x48] sm:$0xff]
    %v2607 = vld [vmem:[%s13 + $0x50] sm:$0xff]
    %v2608 = vld [vmem:[%s13 + $0x58] sm:$0xff]
    %v2609 = vld [vmem:[%s13 + $0x60] sm:$0xff]
    %v2610 = vld [vmem:[%s13 + $0x68] sm:$0xff]
    %v2611 = vld [vmem:[%s13 + $0x70] sm:$0xff]
    %v2612 = vld [vmem:[%s14] sm:$0x1]
    %v2614 = vlaneseq
    %v2615 = vshrl.u32 %v2614, 7
    %v2616 = vsub.s32 0, %v2615
    %v2617 = vrot.slane %v2612, %v2616
    %vm2619 = vcmask 982016
    %v2621 = vsel %vm2619, %v2596, 0
    %2623 = vmatprep.subr.mxu0 0.0
    %2624 = vmatpush1.msra.mxu0 0.0
    %2625 = vmatprep.subr.mxu0 0.0
    %2626 = vmatpush1.msra.mxu0 %v2611
    %2627 = vmatprep.subr.mxu0 0.0
    %2628 = vmatpush1.msra.mxu0 %v2610
    %2629 = vmatprep.subr.mxu0 0.0
    %2630 = vmatpush1.msra.mxu0 %v2609
    %2631 = vmatprep.subr.mxu0 0.0
    %2632 = vmatpush1.msra.mxu0 %v2608
    %2633 = vmatprep.subr.mxu0 0.0
    %2634 = vmatpush1.msra.mxu0 %v2607
    %2635 = vmatprep.subr.mxu0 0.0
    %2636 = vmatpush1.msra.mxu0 %v2606
    %2637 = vmatprep.subr.mxu0 0.0
    %2638 = vmatpush1.msra.mxu0 %v2605
    %2639 = vmatprep.subr.mxu0 0.0
    %2640 = vmatpush1.msra.mxu0 %v2604
    %2641 = vmatprep.subr.mxu0 0.0
    %2642 = vmatpush1.msra.mxu0 %v2603
    %2643 = vmatprep.subr.mxu0 0.0
    %2644 = vmatpush1.msra.mxu0 %v2602
    %2645 = vmatprep.subr.mxu0 0.0
    %2646 = vmatpush1.msra.mxu0 %v2601
    %2647 = vmatprep.subr.mxu0 0.0
    %2648 = vmatpush1.msra.mxu0 %v2600
    %2649 = vmatprep.subr.mxu0 0.0
    %2650 = vmatpush1.msra.mxu0 %v2599
    %2651 = vmatprep.subr.mxu0 0.0
    %2652 = vmatpush1.msra.mxu0 %v2598
    %2653 = vmatprep.subr.mxu0 0.0
    %2654 = vmatpush1.msra.mxu0 %v2597
    %2655 = vmatprep.subr.mxu0 0.0
    %2656 = vmatpush2.msra.mxu0 0.0
    %2657 = vmatprep.subr.mxu0 0.0
    %2658 = vmatpush2.msra.mxu0 0.0
    %2659 = vmatprep.subr.mxu0 0.0
    %2660 = vmatpush2.msra.mxu0 0.0
    %2661 = vmatprep.subr.mxu0 0.0
    %2662 = vmatpush2.msra.mxu0 0.0
    %2663 = vmatprep.subr.mxu0 0.0
    %2664 = vmatpush2.msra.mxu0 0.0
    %2665 = vmatprep.subr.mxu0 0.0
    %2666 = vmatpush2.msra.mxu0 0.0
    %2667 = vmatprep.subr.mxu0 0.0
    %2668 = vmatpush2.msra.mxu0 0.0
    %2669 = vmatprep.subr.mxu0 0.0
    %2670 = vmatpush2.msra.mxu0 0.0
    %2671 = vmatprep.subr.mxu0 0.0
    %2672 = vmatpush2.msra.mxu0 0.0
    %2673 = vmatprep.subr.mxu0 0.0
    %2674 = vmatpush2.msra.mxu0 0.0
    %2675 = vmatprep.subr.mxu0 0.0
    %2676 = vmatpush2.msra.mxu0 0.0
    %2677 = vmatprep.subr.mxu0 0.0
    %2678 = vmatpush2.msra.mxu0 0.0
    %2679 = vmatprep.subr.mxu0 0.0
    %2680 = vmatpush2.msra.mxu0 0.0
    %2681 = vmatprep.subr.mxu0 0.0
    %2682 = vmatpush2.msra.mxu0 0.0
    %2683 = vmatprep.subr.mxu0 0.0
    %2684 = vmatpush2.msra.mxu0 0.0
    %2685 = vmatprep.subr.mxu0 0.0
    %2686 = vmatpush2.msra.mxu0 0.0
    %2687 = vmatprep.mubr.f32.mxu0 0.0
    %2688 = vmatmul.mubr.f32.gmra.mxu0 %v2621
    %v2689 = vpop.f32.mrf.mxu0
    %v2690 = vadd.f32 %v2617, %v2689
    %v2691 = vpop.f32.mrf.mxu0
    %2692 = vdwg.mxu0
    %v2693 = vmax.f32 %v2690, 0.0
    %v2694 = vld [vmem:[%s15] sm:$0xff]
    %v2695 = vld [vmem:[%s15 + $0x8] sm:$0xff]
    %v2696 = vld [vmem:[%s15 + $0x10] sm:$0xff]
    %v2697 = vld [vmem:[%s15 + $0x18] sm:$0xff]
    %v2698 = vld [vmem:[%s15 + $0x20] sm:$0xff]
    %v2699 = vld [vmem:[%s15 + $0x28] sm:$0xff]
    %v2700 = vld [vmem:[%s15 + $0x30] sm:$0xff]
    %v2701 = vld [vmem:[%s15 + $0x38] sm:$0xff]
    %v2702 = vld [vmem:[%s15 + $0x40] sm:$0xff]
    %v2703 = vld [vmem:[%s15 + $0x48] sm:$0xff]
    %v2704 = vld [vmem:[%s15 + $0x50] sm:$0xf]
    %v2705 = vld [vmem:[%s16] sm:$0x1]
    %v2707 = vlaneseq
    %v2708 = vshrl.u32 %v2707, 7
    %v2709 = vsub.s32 0, %v2708
    %v2710 = vrot.slane %v2705, %v2709
    %v2713 = vsel %vm314, %v2693, 0
    %v2716 = vsel %vm213, %v2704, 0
    %2718 = vmatprep.subr.mxu0 0.0
    %2719 = vmatpush1.msra.mxu0 0.0
    %2720 = vmatprep.subr.mxu0 0.0
    %2721 = vmatpush1.msra.mxu0 0.0
    %2722 = vmatprep.subr.mxu0 0.0
    %2723 = vmatpush1.msra.mxu0 0.0
    %2724 = vmatprep.subr.mxu0 0.0
    %2725 = vmatpush1.msra.mxu0 0.0
    %2726 = vmatprep.subr.mxu0 0.0
    %2727 = vmatpush1.msra.mxu0 0.0
    %2728 = vmatprep.subr.mxu0 0.0
    %2729 = vmatpush1.msra.mxu0 %v2716
    %2730 = vmatprep.subr.mxu0 0.0
    %2731 = vmatpush1.msra.mxu0 %v2703
    %2732 = vmatprep.subr.mxu0 0.0
    %2733 = vmatpush1.msra.mxu0 %v2702
    %2734 = vmatprep.subr.mxu0 0.0
    %2735 = vmatpush1.msra.mxu0 %v2701
    %2736 = vmatprep.subr.mxu0 0.0
    %2737 = vmatpush1.msra.mxu0 %v2700
    %2738 = vmatprep.subr.mxu0 0.0
    %2739 = vmatpush1.msra.mxu0 %v2699
    %2740 = vmatprep.subr.mxu0 0.0
    %2741 = vmatpush1.msra.mxu0 %v2698
    %2742 = vmatprep.subr.mxu0 0.0
    %2743 = vmatpush1.msra.mxu0 %v2697
    %2744 = vmatprep.subr.mxu0 0.0
    %2745 = vmatpush1.msra.mxu0 %v2696
    %2746 = vmatprep.subr.mxu0 0.0
    %2747 = vmatpush1.msra.mxu0 %v2695
    %2748 = vmatprep.subr.mxu0 0.0
    %2749 = vmatpush1.msra.mxu0 %v2694
    %2750 = vmatprep.subr.mxu0 0.0
    %2751 = vmatpush2.msra.mxu0 0.0
    %2752 = vmatprep.subr.mxu0 0.0
    %2753 = vmatpush2.msra.mxu0 0.0
    %2754 = vmatprep.subr.mxu0 0.0
    %2755 = vmatpush2.msra.mxu0 0.0
    %2756 = vmatprep.subr.mxu0 0.0
    %2757 = vmatpush2.msra.mxu0 0.0
    %2758 = vmatprep.subr.mxu0 0.0
    %2759 = vmatpush2.msra.mxu0 0.0
    %2760 = vmatprep.subr.mxu0 0.0
    %2761 = vmatpush2.msra.mxu0 0.0
    %2762 = vmatprep.subr.mxu0 0.0
    %2763 = vmatpush2.msra.mxu0 0.0
    %2764 = vmatprep.subr.mxu0 0.0
    %2765 = vmatpush2.msra.mxu0 0.0
    %2766 = vmatprep.subr.mxu0 0.0
    %2767 = vmatpush2.msra.mxu0 0.0
    %2768 = vmatprep.subr.mxu0 0.0
    %2769 = vmatpush2.msra.mxu0 0.0
    %2770 = vmatprep.subr.mxu0 0.0
    %2771 = vmatpush2.msra.mxu0 0.0
    %2772 = vmatprep.subr.mxu0 0.0
    %2773 = vmatpush2.msra.mxu0 0.0
    %2774 = vmatprep.subr.mxu0 0.0
    %2775 = vmatpush2.msra.mxu0 0.0
    %2776 = vmatprep.subr.mxu0 0.0
    %2777 = vmatpush2.msra.mxu0 0.0
    %2778 = vmatprep.subr.mxu0 0.0
    %2779 = vmatpush2.msra.mxu0 0.0
    %2780 = vmatprep.subr.mxu0 0.0
    %2781 = vmatpush2.msra.mxu0 0.0
    %2782 = vmatprep.mubr.f32.mxu0 0.0
    %2783 = vmatmul.mubr.f32.gmra.mxu0 %v2713
    %v2784 = vpop.f32.mrf.mxu0
    %v2785 = vadd.f32 %v2710, %v2784
    %v2786 = vpop.f32.mrf.mxu0
    %2787 = vdwg.mxu0
    %2788 = vst [vmem:[#allocation14] sm:$0x3] %v2785
    // Predicated region
    $region98: #{forward.1} parent=1 // pred_check
      _
    $region99: #{forward.1} parent=1 // pred_check_branch
      %2790 = sbr.rel (0) target = $region101
    $region100: #{forward.1} parent=1 // pred_region
      %s2792 = ssub.s32 32, 32
      %2793 = vsyncadd [#allocation4], %s2792
      %s2795 = sshll.u32 [#allocation14], 4
      %s2796 = int_to_ptr.vmem [resolvable:$true] %s2795
      %2798 = dma.vmem_to_hbm [thread:$0]  %s2796, 32, %s17, [#allocation4]
    $region101: #{forward.1} parent=1 // pred_fallthru
      _
    // Predicated region
    $region102: #{forward.1} parent=1 // pred_check
      _
    $region103: #{forward.1} parent=1 // pred_check_branch
      %2800 = sbr.rel (0) target = $region105
    $region104: #{forward.1} parent=1 // pred_region
      %2801 = dma.done [#allocation4], 32
    $region105: #{forward.1} parent=1 // pred_fallthru
      _
    %2802 = vsyncpa [#allocation3], 1
    %2803 = vsyncpa [#allocation6], 1
    %2804 = vsyncpa [#allocation9], 1
    %2805 = vsyncpa [#allocation12], 1
    %2806 = vsyncpa [#allocation4], 1

</llo_original>
